<compile_context>
chip_gen: v7x
topology: tpu7x:2x2x1
jax: 0.10.0
libtpu: 0.0.40
codegen_flags: <defaults>
</compile_context>

<pallas_src>
import jax
import jax.numpy as jnp
from jax import lax
from jax.experimental import pallas as pl
from jax.experimental.pallas import tpu as pltpu


def _group_matrix(C, G):
    """(C, G) one-hot map: column g selects the channels belonging to group g."""
    cpg = C // G
    ch_group = jnp.arange(C) // cpg
    return (ch_group[:, None] == jnp.arange(G)[None, :]).astype(jnp.float32)


def _is_pow2(v):
    return v > 0 and (v & (v - 1)) == 0


def _pick_block_n(N, HW, Cin, Cout, target_m=1024, act_budget=24 << 20):
    """Images per grid step.

    Aim for ~target_m rows per block (amortizes the ~0.35us/step overhead and
    keeps the MXU dense), but (a) keep the rough per-block live activation set
    under act_budget and (b) leave >= 2 grid steps when N >= 2 so v7x's two
    TensorCores both get work via dimension_semantics=("parallel",).
    """
    bytes_per_row = 4 * (Cin + 4 * Cout)          # x + h/acc/out temporaries (rough)
    cap_rows = max(HW, act_budget // max(bytes_per_row, 1))
    nb = max(1, min(N, max(1, target_m // HW), max(1, cap_rows // HW)))
    if N >= 2:
        nb = min(nb, N // 2)
    nb = max(1, nb)
    while N % nb:
        nb -= 1
    return nb


def _vmem_limit_bytes():
    # ~96 MiB on 128-MiB-VMEM parts (v5e/v6e), ~48 MiB on v7x (64 MiB/TC).
    try:
        cap = int(pltpu.get_tpu_info().vmem_capacity_bytes)
    except Exception:   # conservative fallback if the query is unavailable
        cap = 64 << 20
    return max(32 << 20, min(96 << 20, (3 * cap) // 4))


def _make_kernel(Nb, H, W, Cin, Cout, G, has_shortcut, eps=1e-6):
    HW = H * W
    M = Nb * HW
    inv_n1 = 1.0 / float(HW * (Cin // G))
    inv_n2 = 1.0 / float(HW * (Cout // G))

    def swish(v):
        # exp + approximate reciprocal both issue on the EUP (off the VALU path).
        return v * pl.reciprocal(1.0 + jnp.exp(-v), approx=True)

    def kernel(x_ref, tp_ref,
               g1_ref, b1_ref, m1_ref, m1t_ref, w1_ref, wb1_ref,
               g2_ref, b2_ref, m2_ref, m2t_ref, w2_ref, wb2_ref,
               ws_ref, bs_ref, o_ref):
        x2 = x_ref[...]                                   # (M, Cin) f32
        tp = tp_ref[0]                                    # (Nb, Cout) f32

        # ---- 3x3 boundary masks from in-register iota (zero VMEM/DMA cost) ----
        idx = lax.broadcasted_iota(jnp.int32, (M, 1), 0)
        if _is_pow2(W) and _is_pow2(HW):
            col = jnp.bitwise_and(idx, W - 1)
            row = jnp.right_shift(jnp.bitwise_and(idx, HW - 1), W.bit_length() - 1)
        else:
            pos = idx % HW
            row = pos // W
            col = pos % W
        up_ok = (row >= 1).astype(jnp.float32)            # tap dy = -1 valid
        dn_ok = (row <= H - 2).astype(jnp.float32)        # tap dy = +1 valid
        lf_ok = (col >= 1).astype(jnp.float32)            # tap dx = -1 valid
        rt_ok = (col <= W - 2).astype(jnp.float32)        # tap dx = +1 valid

        def group_norm(h2, gm, gmt, gamma, beta, inv_n, add_rows=None):
            """Per-sample GroupNorm (torch semantics, biased var) folded into a
            single per-(sample, channel) scale/shift.  Optionally adds a
            per-sample row (temb) before the statistics."""
            C = h2.shape[-1]
            if Nb == 1:
                if add_rows is not None:
                    h2 = h2 + add_rows                    # (1, C) over (M, C)
                s = jnp.sum(h2, axis=0, keepdims=True)    # (1, C)
                ss = jnp.sum(h2 * h2, axis=0, keepdims=True)
            else:
                h3 = h2.reshape(Nb, HW, C)
                if add_rows is not None:
                    h3 = h3 + add_rows[:, None, :]
                    h2 = h3.reshape(M, C)
                s = jnp.sum(h3, axis=1)                   # (Nb, C)
                ss = jnp.sum(h3 * h3, axis=1)
            mean_g = jnp.dot(s, gm, preferred_element_type=jnp.float32) * inv_n
            msq_g = jnp.dot(ss, gm, preferred_element_type=jnp.float32) * inv_n
            # TODO(synk): single-pass variance (E[x^2]-E[x]^2); switch to a
            #             two-pass form if large-mean activations need it.
            var_g = jnp.maximum(msq_g - mean_g * mean_g, 0.0)      # (Nb, G)
            mean_c = jnp.dot(mean_g, gmt, preferred_element_type=jnp.float32)
            var_c = jnp.dot(var_g, gmt, preferred_element_type=jnp.float32)
            scale = lax.rsqrt(var_c + eps) * gamma                  # (Nb, C)
            shift = beta - mean_c * scale
            if Nb == 1:
                return h2 * scale + shift                 # (1, C) broadcasts
            return (h2.reshape(Nb, HW, C) * scale[:, None, :]
                    + shift[:, None, :]).reshape(M, C)

        def conv3x3(h2, w_ref, bias):
            """3x3 SAME conv: register-resident halo via pltpu.roll + masks.
            bf16 operands with f32 accumulation.  When C % 128 == 0 the 3 dx
            taps of a kernel row are fused along K (one K=3C matmul per row)."""
            C = h2.shape[-1]
            fuse = (C % 128 == 0)
            acc = None
            for iy, dy in enumerate((-1, 0, 1)):
                if dy == 0:
                    hrow = h2                             # center row: no mask
                else:
                    # rolls stay f32: packed-bf16 sublane rotation by odd shifts
                    # is layout-hostile; taps are cast to bf16 just before use.
                    hrow = pltpu.roll(h2, shift=(-dy * W) % M, axis=0)
                    hrow = hrow * (up_ok if dy == -1 else dn_ok)
                taps = []
                for dx in (-1, 0, 1):
                    if dx == 0:
                        t = hrow
                    else:
                        t = pltpu.roll(hrow, shift=(-dx) % M, axis=0)
                        t = t * (lf_ok if dx == -1 else rt_ok)
                    taps.append(t.astype(jnp.bfloat16))
                wrow = w_ref[iy]                          # (3C, Cout) bf16
                if fuse:
                    op = jnp.concatenate(taps, axis=-1)   # (M, 3C)
                    part = jnp.dot(op, wrow, preferred_element_type=jnp.float32)
                    acc = part if acc is None else acc + part
                else:
                    for ix in range(3):
                        part = jnp.dot(taps[ix], wrow[ix * C:(ix + 1) * C, :],
                                       preferred_element_type=jnp.float32)
                        acc = part if acc is None else acc + part
            return acc + bias

        # norm1 -> swish -> conv1
        h = swish(group_norm(x2, m1_ref[...], m1t_ref[...],
                             g1_ref[...], b1_ref[...], inv_n1))
        h = conv3x3(h, w1_ref, wb1_ref[...])              # (M, Cout) f32

        # + temb (folded into norm2's per-sample path) -> norm2 -> swish -> conv2
        # TODO(synk): dropout is identity (inference); training-mode mask not implemented.
        h = swish(group_norm(h, m2_ref[...], m2t_ref[...],
                             g2_ref[...], b2_ref[...], inv_n2, add_rows=tp))
        h = conv3x3(h, w2_ref, wb2_ref[...])

        # 1x1 nin_shortcut (or identity) + residual add
        if has_shortcut:
            sc = jnp.dot(x2.astype(jnp.bfloat16), ws_ref[...],
                         preferred_element_type=jnp.float32) + bs_ref[...]
        else:
            sc = x2
        o_ref[...] = sc + h

    return kernel


def resnet_block_pallas(x, temb, p, G=32, eps=1e-6):
    """x: (N, H, W, Cin) f32 NHWC; temb: (N, Tch) f32. Returns (N, H, W, Cout) f32."""
    N, H, W, Cin = x.shape
    Cout = p["w1"].shape[-1]
    HW = H * W
    assert Cin % G == 0 and Cout % G == 0, "GroupNorm needs C % 32 == 0"
    assert HW % 8 == 0, "H*W must be a multiple of 8 (sublane tiling)"
    Nb = _pick_block_n(N, HW, Cin, Cout)
    M = Nb * HW

    # Hoisted temb projection: one small GEMM; enters the kernel per block as a
    # (1, Nb, Cout) slab instead of a materialized (N*HW, Cout) broadcast.
    t = temb * jax.nn.sigmoid(temb)
    tproj = (t @ p["wt"] + p["bt"]).astype(jnp.float32).reshape(N // Nb, Nb, Cout)

    # Tiny per-group one-hot maps (only used on (Nb, C)-sized statistics).
    m1 = _group_matrix(Cin, G)
    m2 = _group_matrix(Cout, G)

    # Conv weights HWIO -> (ky, 3*Cin, Cout) bf16: dx taps stacked on K so the
    # kernel can run one K=3C matmul per kernel row when lanes are aligned.
    w1 = p["w1"].reshape(3, 3 * Cin, Cout).astype(jnp.bfloat16)
    w2 = p["w2"].reshape(3, 3 * Cout, Cout).astype(jnp.bfloat16)

    has_shortcut = "ws" in p
    if has_shortcut:
        ws = p["ws"].astype(jnp.bfloat16)
        bs = p["bs"].reshape(1, Cout).astype(jnp.float32)
    else:  # in_channels == out_channels -> identity shortcut (ws/bs unused)
        ws = jnp.zeros((Cin, Cout), jnp.bfloat16)
        bs = jnp.zeros((1, Cout), jnp.float32)

    # x stays f32 so GroupNorm statistics match the f32 reference.
    x_flat = x.astype(jnp.float32).reshape(N * HW, Cin)

    args = (x_flat, tproj,
            p["g1"].reshape(1, Cin).astype(jnp.float32),
            p["b1"].reshape(1, Cin).astype(jnp.float32),
            m1, m1.T, w1, p["wb1"].reshape(1, Cout).astype(jnp.float32),
            p["g2"].reshape(1, Cout).astype(jnp.float32),
            p["b2"].reshape(1, Cout).astype(jnp.float32),
            m2, m2.T, w2, p["wb2"].reshape(1, Cout).astype(jnp.float32),
            ws, bs)

    def const_spec(a):
        nd = a.ndim
        return pl.BlockSpec(a.shape, lambda b, _n=nd: (0,) * _n)

    in_specs = [pl.BlockSpec((M, Cin), lambda b: (b, 0)),          # x rows
                pl.BlockSpec((1, Nb, Cout), lambda b: (b, 0, 0))]  # temb rows
    in_specs += [const_spec(a) for a in args[2:]]

    flops = int(2 * N * HW * (9 * Cin * Cout + 9 * Cout * Cout
                              + (Cin * Cout if has_shortcut else 0)))
    transcendentals = int(N * HW * (Cin + Cout))
    bytes_accessed = int(sum(int(a.size) * a.dtype.itemsize for a in args)
                         + N * HW * Cout * 4)

    kernel = _make_kernel(Nb, H, W, Cin, Cout, G, has_shortcut, eps)

    out = pl.pallas_call(
        kernel,
        out_shape=jax.ShapeDtypeStruct((N * HW, Cout), jnp.float32),
        grid_spec=pltpu.PrefetchScalarGridSpec(
            num_scalar_prefetch=0,
            grid=(N // Nb,),
            in_specs=in_specs,
            out_specs=pl.BlockSpec((M, Cout), lambda b: (b, 0))),
        compiler_params=pltpu.CompilerParams(
            dimension_semantics=("parallel",),       # batch blocks -> v7x 2 TCs
            vmem_limit_bytes=_vmem_limit_bytes()),
        cost_estimate=pl.CostEstimate(flops=flops,
                                      transcendentals=transcendentals,
                                      bytes_accessed=bytes_accessed),
    )(*args)
    return out.reshape(N, H, W, Cout)


def resnet_block_ref(x, temb, p, G=32, eps=1e-6):
    """Pure-JAX f32 reference (NHWC), matching the PyTorch module semantics."""
    def gn(h, gamma, beta):
        n, hh, ww, c = h.shape
        hg = h.reshape(n, hh, ww, G, c // G)
        mean = hg.mean(axis=(1, 2, 4), keepdims=True)
        var = ((hg - mean) ** 2).mean(axis=(1, 2, 4), keepdims=True)
        hg = (hg - mean) / jnp.sqrt(var + eps)
        return hg.reshape(n, hh, ww, c) * gamma + beta

    def conv(h, w, b):
        return lax.conv_general_dilated(
            h, w, window_strides=(1, 1), padding="SAME",
            dimension_numbers=("NHWC", "HWIO", "NHWC")) + b

    swish = lambda v: v * jax.nn.sigmoid(v)
    h = swish(gn(x, p["g1"], p["b1"]))
    h = conv(h, p["w1"], p["wb1"])
    h = h + (swish(temb) @ p["wt"] + p["bt"])[:, None, None, :]
    h = swish(gn(h, p["g2"], p["b2"]))
    # dropout: identity (inference)
    h = conv(h, p["w2"], p["wb2"])
    sc = x @ p["ws"] + p["bs"]        # 1x1 nin_shortcut
    return sc + h


if __name__ == "__main__":
    # Small shapes consistent with the module (GroupNorm needs C % 32 == 0).
    N, H, W = 2, 8, 8
    Cin, Cout, Tch = 64, 128, 128

    key = jax.random.PRNGKey(0)
    keys = jax.random.split(key, 16)

    def init(k, shape, scale=0.05):
        return scale * jax.random.normal(k, shape, jnp.float32)

    params = {
        "g1": 1.0 + init(keys[0], (Cin,)),
        "b1": init(keys[1], (Cin,)),
        "w1": init(keys[2], (3, 3, Cin, Cout)),      # HWIO
        "wb1": init(keys[3], (Cout,)),
        "wt": init(keys[4], (Tch, Cout)),            # temb Linear weight (transposed)
        "bt": init(keys[5], (Cout,)),
        "g2": 1.0 + init(keys[6], (Cout,)),
        "b2": init(keys[7], (Cout,)),
        "w2": init(keys[8], (3, 3, Cout, Cout)),     # HWIO
        "wb2": init(keys[9], (Cout,)),
        "ws": init(keys[10], (Cin, Cout)),           # 1x1 nin_shortcut weight
        "bs": init(keys[11], (Cout,)),
    }

    x = jax.random.normal(keys[12], (N, H, W, Cin), jnp.float32)
    temb = jax.random.normal(keys[13], (N, Tch), jnp.float32)

    out = jax.block_until_ready(resnet_block_pallas(x, temb, params))

    ref = resnet_block_ref(x, temb, params)
    err = float(jnp.max(jnp.abs(out - ref)))
    # bf16 matmul operands (f32 accumulation) -> tolerance loosened vs pure f32.
    if err > 8e-2:
        raise AssertionError(f"Pallas ResnetBlock mismatch: max abs err = {err}")
    print("KERNEL_OK")
</pallas_src>

<mosaic_0001>
module attributes {stable_mosaic.version = 11 : i64} {
  func.func @kernel(%arg0: i32, %arg1: memref<64x64xf32, #tpu.memory_space<vmem>>, %arg2: memref<1x1x128xf32, #tpu.memory_space<vmem>>, %arg3: memref<1x64xf32, #tpu.memory_space<vmem>>, %arg4: memref<1x64xf32, #tpu.memory_space<vmem>>, %arg5: memref<64x32xf32, #tpu.memory_space<vmem>>, %arg6: memref<32x64xf32, #tpu.memory_space<vmem>>, %arg7: memref<3x192x128xbf16, #tpu.memory_space<vmem>>, %arg8: memref<1x128xf32, #tpu.memory_space<vmem>>, %arg9: memref<1x128xf32, #tpu.memory_space<vmem>>, %arg10: memref<1x128xf32, #tpu.memory_space<vmem>>, %arg11: memref<128x32xf32, #tpu.memory_space<vmem>>, %arg12: memref<32x128xf32, #tpu.memory_space<vmem>>, %arg13: memref<3x384x128xbf16, #tpu.memory_space<vmem>>, %arg14: memref<1x128xf32, #tpu.memory_space<vmem>>, %arg15: memref<64x128xbf16, #tpu.memory_space<vmem>>, %arg16: memref<1x128xf32, #tpu.memory_space<vmem>>, %arg17: memref<64x128xf32, #tpu.memory_space<vmem>>) attributes {dimension_semantics = [#tpu.dimension_semantics<parallel>], iteration_bounds = array<i64: 2>, scalar_prefetch = 0 : i64, scratch_operands = 0 : i64, tpu.core_type = #tpu.core_type<tc>, window_params = [{transform_indices = @transform_0, window_bounds = array<i64: 64, 64>}, {transform_indices = @transform_1, window_bounds = array<i64: 1, 1, 128>}, {pipeline_mode = #tpu.pipeline_mode<synchronous>, transform_indices = @transform_2, window_bounds = array<i64: 1, 64>}, {pipeline_mode = #tpu.pipeline_mode<synchronous>, transform_indices = @transform_3, window_bounds = array<i64: 1, 64>}, {pipeline_mode = #tpu.pipeline_mode<synchronous>, transform_indices = @transform_4, window_bounds = array<i64: 64, 32>}, {pipeline_mode = #tpu.pipeline_mode<synchronous>, transform_indices = @transform_5, window_bounds = array<i64: 32, 64>}, {pipeline_mode = #tpu.pipeline_mode<synchronous>, transform_indices = @transform_6, window_bounds = array<i64: 3, 192, 128>}, {pipeline_mode = #tpu.pipeline_mode<synchronous>, transform_indices = @transform_7, window_bounds = array<i64: 1, 128>}, {pipeline_mode = #tpu.pipeline_mode<synchronous>, transform_indices = @transform_8, window_bounds = array<i64: 1, 128>}, {pipeline_mode = #tpu.pipeline_mode<synchronous>, transform_indices = @transform_9, window_bounds = array<i64: 1, 128>}, {pipeline_mode = #tpu.pipeline_mode<synchronous>, transform_indices = @transform_10, window_bounds = array<i64: 128, 32>}, {pipeline_mode = #tpu.pipeline_mode<synchronous>, transform_indices = @transform_11, window_bounds = array<i64: 32, 128>}, {pipeline_mode = #tpu.pipeline_mode<synchronous>, transform_indices = @transform_12, window_bounds = array<i64: 3, 384, 128>}, {pipeline_mode = #tpu.pipeline_mode<synchronous>, transform_indices = @transform_13, window_bounds = array<i64: 1, 128>}, {pipeline_mode = #tpu.pipeline_mode<synchronous>, transform_indices = @transform_14, window_bounds = array<i64: 64, 128>}, {pipeline_mode = #tpu.pipeline_mode<synchronous>, transform_indices = @transform_15, window_bounds = array<i64: 1, 128>}, {transform_indices = @transform_16, window_bounds = array<i64: 64, 128>}]} {
    %c0 = arith.constant 0 : index
    %c0_0 = arith.constant 0 : index
    %0 = vector.load %arg1[%c0, %c0_0] : memref<64x64xf32, #tpu.memory_space<vmem>>, vector<64x64xf32>
    %c0_1 = arith.constant 0 : index
    %c0_2 = arith.constant 0 : index
    %c0_3 = arith.constant 0 : index
    %1 = vector.load %arg2[%c0_1, %c0_2, %c0_3] : memref<1x1x128xf32, #tpu.memory_space<vmem>>, vector<1x1x128xf32>
    %2 = vector.shape_cast %1 : vector<1x1x128xf32> to vector<1x128xf32>
    %3 = tpu.iota {dimensions = array<i32: 0>} : vector<64x1xi32>
    %c7_i32 = arith.constant 7 : i32
    %4 = vector.broadcast %c7_i32 : i32 to vector<64x1xi32>
    %5 = arith.andi %3, %4 : vector<64x1xi32>
    %c63_i32 = arith.constant 63 : i32
    %6 = vector.broadcast %c63_i32 : i32 to vector<64x1xi32>
    %7 = arith.andi %3, %6 : vector<64x1xi32>
    %c3_i32 = arith.constant 3 : i32
    %8 = vector.broadcast %c3_i32 : i32 to vector<64x1xi32>
    %9 = arith.shrsi %7, %8 : vector<64x1xi32>
    %c1_i32 = arith.constant 1 : i32
    %10 = vector.broadcast %c1_i32 : i32 to vector<64x1xi32>
    %11 = arith.cmpi sge, %9, %10 : vector<64x1xi32>
    %12 = arith.extui %11 : vector<64x1xi1> to vector<64x1xi32>
    %13 = arith.sitofp %12 : vector<64x1xi32> to vector<64x1xf32>
    %c6_i32 = arith.constant 6 : i32
    %14 = vector.broadcast %c6_i32 : i32 to vector<64x1xi32>
    %15 = arith.cmpi sle, %9, %14 : vector<64x1xi32>
    %16 = arith.extui %15 : vector<64x1xi1> to vector<64x1xi32>
    %17 = arith.sitofp %16 : vector<64x1xi32> to vector<64x1xf32>
    %c1_i32_4 = arith.constant 1 : i32
    %18 = vector.broadcast %c1_i32_4 : i32 to vector<64x1xi32>
    %19 = arith.cmpi sge, %5, %18 : vector<64x1xi32>
    %20 = arith.extui %19 : vector<64x1xi1> to vector<64x1xi32>
    %21 = arith.sitofp %20 : vector<64x1xi32> to vector<64x1xf32>
    %c6_i32_5 = arith.constant 6 : i32
    %22 = vector.broadcast %c6_i32_5 : i32 to vector<64x1xi32>
    %23 = arith.cmpi sle, %5, %22 : vector<64x1xi32>
    %24 = arith.extui %23 : vector<64x1xi1> to vector<64x1xi32>
    %25 = arith.sitofp %24 : vector<64x1xi32> to vector<64x1xf32>
    %c0_6 = arith.constant 0 : index
    %c0_7 = arith.constant 0 : index
    %26 = vector.load %arg5[%c0_6, %c0_7] : memref<64x32xf32, #tpu.memory_space<vmem>>, vector<64x32xf32>
    %c0_8 = arith.constant 0 : index
    %c0_9 = arith.constant 0 : index
    %27 = vector.load %arg6[%c0_8, %c0_9] : memref<32x64xf32, #tpu.memory_space<vmem>>, vector<32x64xf32>
    %c0_10 = arith.constant 0 : index
    %c0_11 = arith.constant 0 : index
    %28 = vector.load %arg3[%c0_10, %c0_11] : memref<1x64xf32, #tpu.memory_space<vmem>>, vector<1x64xf32>
    %c0_12 = arith.constant 0 : index
    %c0_13 = arith.constant 0 : index
    %29 = vector.load %arg4[%c0_12, %c0_13] : memref<1x64xf32, #tpu.memory_space<vmem>>, vector<1x64xf32>
    %cst = arith.constant dense<0.000000e+00> : vector<64xf32>
    %30 = vector.multi_reduction <add>, %0, %cst [0] : vector<64x64xf32> to vector<64xf32>
    %31 = vector.shape_cast %30 : vector<64xf32> to vector<1x64xf32>
    %32 = arith.mulf %0, %0 : vector<64x64xf32>
    %cst_14 = arith.constant dense<0.000000e+00> : vector<64xf32>
    %33 = vector.multi_reduction <add>, %32, %cst_14 [0] : vector<64x64xf32> to vector<64xf32>
    %34 = vector.shape_cast %33 : vector<64xf32> to vector<1x64xf32>
    %cst_15 = arith.constant dense<0.000000e+00> : vector<1x32xf32>
    %35 = tpu.matmul %31, %26, %cst_15 {dimension_numbers = #tpu.dot_dimension_numbers<[1], [0], [0], [1], [0, 0, 1, 1], [], []>} : vector<1x64xf32>, vector<64x32xf32>, vector<1x32xf32> -> vector<1x32xf32>
    %cst_16 = arith.constant 7.812500e-03 : f32
    %36 = vector.broadcast %cst_16 : f32 to vector<1x32xf32>
    %37 = arith.mulf %35, %36 : vector<1x32xf32>
    %cst_17 = arith.constant dense<0.000000e+00> : vector<1x32xf32>
    %38 = tpu.matmul %34, %26, %cst_17 {dimension_numbers = #tpu.dot_dimension_numbers<[1], [0], [0], [1], [0, 0, 1, 1], [], []>} : vector<1x64xf32>, vector<64x32xf32>, vector<1x32xf32> -> vector<1x32xf32>
    %cst_18 = arith.constant 7.812500e-03 : f32
    %39 = vector.broadcast %cst_18 : f32 to vector<1x32xf32>
    %40 = arith.mulf %38, %39 : vector<1x32xf32>
    %41 = arith.mulf %37, %37 : vector<1x32xf32>
    %42 = arith.subf %40, %41 : vector<1x32xf32>
    %cst_19 = arith.constant 0.000000e+00 : f32
    %43 = vector.broadcast %cst_19 : f32 to vector<1x32xf32>
    %44 = arith.maximumf %42, %43 : vector<1x32xf32>
    %cst_20 = arith.constant dense<0.000000e+00> : vector<1x64xf32>
    %45 = tpu.matmul %37, %27, %cst_20 {dimension_numbers = #tpu.dot_dimension_numbers<[1], [0], [0], [1], [0, 0, 1, 1], [], []>} : vector<1x32xf32>, vector<32x64xf32>, vector<1x64xf32> -> vector<1x64xf32>
    %cst_21 = arith.constant dense<0.000000e+00> : vector<1x64xf32>
    %46 = tpu.matmul %44, %27, %cst_21 {dimension_numbers = #tpu.dot_dimension_numbers<[1], [0], [0], [1], [0, 0, 1, 1], [], []>} : vector<1x32xf32>, vector<32x64xf32>, vector<1x64xf32> -> vector<1x64xf32>
    %cst_22 = arith.constant 9.99999997E-7 : f32
    %47 = vector.broadcast %cst_22 : f32 to vector<1x64xf32>
    %48 = arith.addf %46, %47 : vector<1x64xf32>
    %49 = math.rsqrt %48 : vector<1x64xf32>
    %50 = arith.mulf %49, %28 : vector<1x64xf32>
    %51 = arith.mulf %45, %50 : vector<1x64xf32>
    %52 = arith.subf %29, %51 : vector<1x64xf32>
    %53 = vector.broadcast %50 : vector<1x64xf32> to vector<64x64xf32>
    %54 = arith.mulf %0, %53 : vector<64x64xf32>
    %55 = vector.broadcast %52 : vector<1x64xf32> to vector<64x64xf32>
    %56 = arith.addf %54, %55 : vector<64x64xf32>
    %cst_23 = arith.constant 0.000000e+00 : f32
    %57 = vector.broadcast %cst_23 : f32 to vector<64x64xf32>
    %58 = arith.subf %57, %56 : vector<64x64xf32>
    %59 = math.exp %58 : vector<64x64xf32>
    %cst_24 = arith.constant 1.000000e+00 : f32
    %60 = vector.broadcast %cst_24 : f32 to vector<64x64xf32>
    %61 = arith.addf %60, %59 : vector<64x64xf32>
    %62 = tpu.reciprocal %61 {approx = true} : vector<64x64xf32> -> vector<64x64xf32>
    %63 = arith.mulf %56, %62 : vector<64x64xf32>
    %c0_25 = arith.constant 0 : index
    %c0_26 = arith.constant 0 : index
    %64 = vector.load %arg8[%c0_25, %c0_26] : memref<1x128xf32, #tpu.memory_space<vmem>>, vector<1x128xf32>
    %c8_i32 = arith.constant 8 : i32
    %65 = tpu.dynamic_rotate %63 by %c8_i32 dim 0 : vector<64x64xf32>, i32 -> vector<64x64xf32>
    %66 = vector.broadcast %13 : vector<64x1xf32> to vector<64x64xf32>
    %67 = arith.mulf %65, %66 : vector<64x64xf32>
    %c1_i32_27 = arith.constant 1 : i32
    %68 = tpu.dynamic_rotate %67 by %c1_i32_27 dim 0 : vector<64x64xf32>, i32 -> vector<64x64xf32>
    %69 = vector.broadcast %21 : vector<64x1xf32> to vector<64x64xf32>
    %70 = arith.mulf %68, %69 : vector<64x64xf32>
    %71 = arith.truncf %70 : vector<64x64xf32> to vector<64x64xbf16>
    %72 = arith.truncf %67 : vector<64x64xf32> to vector<64x64xbf16>
    %c63_i32_28 = arith.constant 63 : i32
    %73 = tpu.dynamic_rotate %67 by %c63_i32_28 dim 0 : vector<64x64xf32>, i32 -> vector<64x64xf32>
    %74 = vector.broadcast %25 : vector<64x1xf32> to vector<64x64xf32>
    %75 = arith.mulf %73, %74 : vector<64x64xf32>
    %76 = arith.truncf %75 : vector<64x64xf32> to vector<64x64xbf16>
    %c0_29 = arith.constant 0 : index
    %c0_30 = arith.constant 0 : index
    %c0_31 = arith.constant 0 : index
    %77 = vector.load %arg7[%c0_29, %c0_30, %c0_31] : memref<3x192x128xbf16, #tpu.memory_space<vmem>>, vector<1x192x128xbf16>
    %78 = vector.shape_cast %77 : vector<1x192x128xbf16> to vector<192x128xbf16>
    %79 = vector.extract_strided_slice %78 {offsets = [0, 0], sizes = [64, 128], strides = [1, 1]} : vector<192x128xbf16> to vector<64x128xbf16>
    %cst_32 = arith.constant dense<0.000000e+00> : vector<64x128xf32>
    %80 = tpu.matmul %71, %79, %cst_32 {dimension_numbers = #tpu.dot_dimension_numbers<[1], [0], [0], [1], [0, 0, 1, 1], [], []>} : vector<64x64xbf16>, vector<64x128xbf16>, vector<64x128xf32> -> vector<64x128xf32>
    %81 = vector.extract_strided_slice %78 {offsets = [64, 0], sizes = [64, 128], strides = [1, 1]} : vector<192x128xbf16> to vector<64x128xbf16>
    %cst_33 = arith.constant dense<0.000000e+00> : vector<64x128xf32>
    %82 = tpu.matmul %72, %81, %cst_33 {dimension_numbers = #tpu.dot_dimension_numbers<[1], [0], [0], [1], [0, 0, 1, 1], [], []>} : vector<64x64xbf16>, vector<64x128xbf16>, vector<64x128xf32> -> vector<64x128xf32>
    %83 = arith.addf %80, %82 : vector<64x128xf32>
    %84 = vector.extract_strided_slice %78 {offsets = [128, 0], sizes = [64, 128], strides = [1, 1]} : vector<192x128xbf16> to vector<64x128xbf16>
    %cst_34 = arith.constant dense<0.000000e+00> : vector<64x128xf32>
    %85 = tpu.matmul %76, %84, %cst_34 {dimension_numbers = #tpu.dot_dimension_numbers<[1], [0], [0], [1], [0, 0, 1, 1], [], []>} : vector<64x64xbf16>, vector<64x128xbf16>, vector<64x128xf32> -> vector<64x128xf32>
    %86 = arith.addf %83, %85 : vector<64x128xf32>
    %c1_i32_35 = arith.constant 1 : i32
    %87 = tpu.dynamic_rotate %63 by %c1_i32_35 dim 0 : vector<64x64xf32>, i32 -> vector<64x64xf32>
    %88 = vector.broadcast %21 : vector<64x1xf32> to vector<64x64xf32>
    %89 = arith.mulf %87, %88 : vector<64x64xf32>
    %90 = arith.truncf %89 : vector<64x64xf32> to vector<64x64xbf16>
    %91 = arith.truncf %63 : vector<64x64xf32> to vector<64x64xbf16>
    %c63_i32_36 = arith.constant 63 : i32
    %92 = tpu.dynamic_rotate %63 by %c63_i32_36 dim 0 : vector<64x64xf32>, i32 -> vector<64x64xf32>
    %93 = vector.broadcast %25 : vector<64x1xf32> to vector<64x64xf32>
    %94 = arith.mulf %92, %93 : vector<64x64xf32>
    %95 = arith.truncf %94 : vector<64x64xf32> to vector<64x64xbf16>
    %c1 = arith.constant 1 : index
    %c0_37 = arith.constant 0 : index
    %c0_38 = arith.constant 0 : index
    %96 = vector.load %arg7[%c1, %c0_37, %c0_38] : memref<3x192x128xbf16, #tpu.memory_space<vmem>>, vector<1x192x128xbf16>
    %97 = vector.shape_cast %96 : vector<1x192x128xbf16> to vector<192x128xbf16>
    %98 = vector.extract_strided_slice %97 {offsets = [0, 0], sizes = [64, 128], strides = [1, 1]} : vector<192x128xbf16> to vector<64x128xbf16>
    %cst_39 = arith.constant dense<0.000000e+00> : vector<64x128xf32>
    %99 = tpu.matmul %90, %98, %cst_39 {dimension_numbers = #tpu.dot_dimension_numbers<[1], [0], [0], [1], [0, 0, 1, 1], [], []>} : vector<64x64xbf16>, vector<64x128xbf16>, vector<64x128xf32> -> vector<64x128xf32>
    %100 = arith.addf %86, %99 : vector<64x128xf32>
    %101 = vector.extract_strided_slice %97 {offsets = [64, 0], sizes = [64, 128], strides = [1, 1]} : vector<192x128xbf16> to vector<64x128xbf16>
    %cst_40 = arith.constant dense<0.000000e+00> : vector<64x128xf32>
    %102 = tpu.matmul %91, %101, %cst_40 {dimension_numbers = #tpu.dot_dimension_numbers<[1], [0], [0], [1], [0, 0, 1, 1], [], []>} : vector<64x64xbf16>, vector<64x128xbf16>, vector<64x128xf32> -> vector<64x128xf32>
    %103 = arith.addf %100, %102 : vector<64x128xf32>
    %104 = vector.extract_strided_slice %97 {offsets = [128, 0], sizes = [64, 128], strides = [1, 1]} : vector<192x128xbf16> to vector<64x128xbf16>
    %cst_41 = arith.constant dense<0.000000e+00> : vector<64x128xf32>
    %105 = tpu.matmul %95, %104, %cst_41 {dimension_numbers = #tpu.dot_dimension_numbers<[1], [0], [0], [1], [0, 0, 1, 1], [], []>} : vector<64x64xbf16>, vector<64x128xbf16>, vector<64x128xf32> -> vector<64x128xf32>
    %106 = arith.addf %103, %105 : vector<64x128xf32>
    %c56_i32 = arith.constant 56 : i32
    %107 = tpu.dynamic_rotate %63 by %c56_i32 dim 0 : vector<64x64xf32>, i32 -> vector<64x64xf32>
    %108 = vector.broadcast %17 : vector<64x1xf32> to vector<64x64xf32>
    %109 = arith.mulf %107, %108 : vector<64x64xf32>
    %c1_i32_42 = arith.constant 1 : i32
    %110 = tpu.dynamic_rotate %109 by %c1_i32_42 dim 0 : vector<64x64xf32>, i32 -> vector<64x64xf32>
    %111 = vector.broadcast %21 : vector<64x1xf32> to vector<64x64xf32>
    %112 = arith.mulf %110, %111 : vector<64x64xf32>
    %113 = arith.truncf %112 : vector<64x64xf32> to vector<64x64xbf16>
    %114 = arith.truncf %109 : vector<64x64xf32> to vector<64x64xbf16>
    %c63_i32_43 = arith.constant 63 : i32
    %115 = tpu.dynamic_rotate %109 by %c63_i32_43 dim 0 : vector<64x64xf32>, i32 -> vector<64x64xf32>
    %116 = vector.broadcast %25 : vector<64x1xf32> to vector<64x64xf32>
    %117 = arith.mulf %115, %116 : vector<64x64xf32>
    %118 = arith.truncf %117 : vector<64x64xf32> to vector<64x64xbf16>
    %c2 = arith.constant 2 : index
    %c0_44 = arith.constant 0 : index
    %c0_45 = arith.constant 0 : index
    %119 = vector.load %arg7[%c2, %c0_44, %c0_45] : memref<3x192x128xbf16, #tpu.memory_space<vmem>>, vector<1x192x128xbf16>
    %120 = vector.shape_cast %119 : vector<1x192x128xbf16> to vector<192x128xbf16>
    %121 = vector.extract_strided_slice %120 {offsets = [0, 0], sizes = [64, 128], strides = [1, 1]} : vector<192x128xbf16> to vector<64x128xbf16>
    %cst_46 = arith.constant dense<0.000000e+00> : vector<64x128xf32>
    %122 = tpu.matmul %113, %121, %cst_46 {dimension_numbers = #tpu.dot_dimension_numbers<[1], [0], [0], [1], [0, 0, 1, 1], [], []>} : vector<64x64xbf16>, vector<64x128xbf16>, vector<64x128xf32> -> vector<64x128xf32>
    %123 = arith.addf %106, %122 : vector<64x128xf32>
    %124 = vector.extract_strided_slice %120 {offsets = [64, 0], sizes = [64, 128], strides = [1, 1]} : vector<192x128xbf16> to vector<64x128xbf16>
    %cst_47 = arith.constant dense<0.000000e+00> : vector<64x128xf32>
    %125 = tpu.matmul %114, %124, %cst_47 {dimension_numbers = #tpu.dot_dimension_numbers<[1], [0], [0], [1], [0, 0, 1, 1], [], []>} : vector<64x64xbf16>, vector<64x128xbf16>, vector<64x128xf32> -> vector<64x128xf32>
    %126 = arith.addf %123, %125 : vector<64x128xf32>
    %127 = vector.extract_strided_slice %120 {offsets = [128, 0], sizes = [64, 128], strides = [1, 1]} : vector<192x128xbf16> to vector<64x128xbf16>
    %cst_48 = arith.constant dense<0.000000e+00> : vector<64x128xf32>
    %128 = tpu.matmul %118, %127, %cst_48 {dimension_numbers = #tpu.dot_dimension_numbers<[1], [0], [0], [1], [0, 0, 1, 1], [], []>} : vector<64x64xbf16>, vector<64x128xbf16>, vector<64x128xf32> -> vector<64x128xf32>
    %129 = arith.addf %126, %128 : vector<64x128xf32>
    %130 = vector.broadcast %64 : vector<1x128xf32> to vector<64x128xf32>
    %131 = arith.addf %129, %130 : vector<64x128xf32>
    %c0_49 = arith.constant 0 : index
    %c0_50 = arith.constant 0 : index
    %132 = vector.load %arg11[%c0_49, %c0_50] : memref<128x32xf32, #tpu.memory_space<vmem>>, vector<128x32xf32>
    %c0_51 = arith.constant 0 : index
    %c0_52 = arith.constant 0 : index
    %133 = vector.load %arg12[%c0_51, %c0_52] : memref<32x128xf32, #tpu.memory_space<vmem>>, vector<32x128xf32>
    %c0_53 = arith.constant 0 : index
    %c0_54 = arith.constant 0 : index
    %134 = vector.load %arg9[%c0_53, %c0_54] : memref<1x128xf32, #tpu.memory_space<vmem>>, vector<1x128xf32>
    %c0_55 = arith.constant 0 : index
    %c0_56 = arith.constant 0 : index
    %135 = vector.load %arg10[%c0_55, %c0_56] : memref<1x128xf32, #tpu.memory_space<vmem>>, vector<1x128xf32>
    %136 = vector.broadcast %2 : vector<1x128xf32> to vector<64x128xf32>
    %137 = arith.addf %131, %136 : vector<64x128xf32>
    %cst_57 = arith.constant dense<0.000000e+00> : vector<128xf32>
    %138 = vector.multi_reduction <add>, %137, %cst_57 [0] : vector<64x128xf32> to vector<128xf32>
    %139 = vector.shape_cast %138 : vector<128xf32> to vector<1x128xf32>
    %140 = arith.mulf %137, %137 : vector<64x128xf32>
    %cst_58 = arith.constant dense<0.000000e+00> : vector<128xf32>
    %141 = vector.multi_reduction <add>, %140, %cst_58 [0] : vector<64x128xf32> to vector<128xf32>
    %142 = vector.shape_cast %141 : vector<128xf32> to vector<1x128xf32>
    %cst_59 = arith.constant dense<0.000000e+00> : vector<1x32xf32>
    %143 = tpu.matmul %139, %132, %cst_59 {dimension_numbers = #tpu.dot_dimension_numbers<[1], [0], [0], [1], [0, 0, 1, 1], [], []>} : vector<1x128xf32>, vector<128x32xf32>, vector<1x32xf32> -> vector<1x32xf32>
    %cst_60 = arith.constant 3.906250e-03 : f32
    %144 = vector.broadcast %cst_60 : f32 to vector<1x32xf32>
    %145 = arith.mulf %143, %144 : vector<1x32xf32>
    %cst_61 = arith.constant dense<0.000000e+00> : vector<1x32xf32>
    %146 = tpu.matmul %142, %132, %cst_61 {dimension_numbers = #tpu.dot_dimension_numbers<[1], [0], [0], [1], [0, 0, 1, 1], [], []>} : vector<1x128xf32>, vector<128x32xf32>, vector<1x32xf32> -> vector<1x32xf32>
    %cst_62 = arith.constant 3.906250e-03 : f32
    %147 = vector.broadcast %cst_62 : f32 to vector<1x32xf32>
    %148 = arith.mulf %146, %147 : vector<1x32xf32>
    %149 = arith.mulf %145, %145 : vector<1x32xf32>
    %150 = arith.subf %148, %149 : vector<1x32xf32>
    %cst_63 = arith.constant 0.000000e+00 : f32
    %151 = vector.broadcast %cst_63 : f32 to vector<1x32xf32>
    %152 = arith.maximumf %150, %151 : vector<1x32xf32>
    %cst_64 = arith.constant dense<0.000000e+00> : vector<1x128xf32>
    %153 = tpu.matmul %145, %133, %cst_64 {dimension_numbers = #tpu.dot_dimension_numbers<[1], [0], [0], [1], [0, 0, 1, 1], [], []>} : vector<1x32xf32>, vector<32x128xf32>, vector<1x128xf32> -> vector<1x128xf32>
    %cst_65 = arith.constant dense<0.000000e+00> : vector<1x128xf32>
    %154 = tpu.matmul %152, %133, %cst_65 {dimension_numbers = #tpu.dot_dimension_numbers<[1], [0], [0], [1], [0, 0, 1, 1], [], []>} : vector<1x32xf32>, vector<32x128xf32>, vector<1x128xf32> -> vector<1x128xf32>
    %cst_66 = arith.constant 9.99999997E-7 : f32
    %155 = vector.broadcast %cst_66 : f32 to vector<1x128xf32>
    %156 = arith.addf %154, %155 : vector<1x128xf32>
    %157 = math.rsqrt %156 : vector<1x128xf32>
    %158 = arith.mulf %157, %134 : vector<1x128xf32>
    %159 = arith.mulf %153, %158 : vector<1x128xf32>
    %160 = arith.subf %135, %159 : vector<1x128xf32>
    %161 = vector.broadcast %158 : vector<1x128xf32> to vector<64x128xf32>
    %162 = arith.mulf %137, %161 : vector<64x128xf32>
    %163 = vector.broadcast %160 : vector<1x128xf32> to vector<64x128xf32>
    %164 = arith.addf %162, %163 : vector<64x128xf32>
    %cst_67 = arith.constant 0.000000e+00 : f32
    %165 = vector.broadcast %cst_67 : f32 to vector<64x128xf32>
    %166 = arith.subf %165, %164 : vector<64x128xf32>
    %167 = math.exp %166 : vector<64x128xf32>
    %cst_68 = arith.constant 1.000000e+00 : f32
    %168 = vector.broadcast %cst_68 : f32 to vector<64x128xf32>
    %169 = arith.addf %168, %167 : vector<64x128xf32>
    %170 = tpu.reciprocal %169 {approx = true} : vector<64x128xf32> -> vector<64x128xf32>
    %171 = arith.mulf %164, %170 : vector<64x128xf32>
    %c0_69 = arith.constant 0 : index
    %c0_70 = arith.constant 0 : index
    %172 = vector.load %arg14[%c0_69, %c0_70] : memref<1x128xf32, #tpu.memory_space<vmem>>, vector<1x128xf32>
    %c8_i32_71 = arith.constant 8 : i32
    %173 = tpu.dynamic_rotate %171 by %c8_i32_71 dim 0 : vector<64x128xf32>, i32 -> vector<64x128xf32>
    %174 = vector.broadcast %13 : vector<64x1xf32> to vector<64x128xf32>
    %175 = arith.mulf %173, %174 : vector<64x128xf32>
    %c1_i32_72 = arith.constant 1 : i32
    %176 = tpu.dynamic_rotate %175 by %c1_i32_72 dim 0 : vector<64x128xf32>, i32 -> vector<64x128xf32>
    %177 = vector.broadcast %21 : vector<64x1xf32> to vector<64x128xf32>
    %178 = arith.mulf %176, %177 : vector<64x128xf32>
    %179 = arith.truncf %178 : vector<64x128xf32> to vector<64x128xbf16>
    %180 = arith.truncf %175 : vector<64x128xf32> to vector<64x128xbf16>
    %c63_i32_73 = arith.constant 63 : i32
    %181 = tpu.dynamic_rotate %175 by %c63_i32_73 dim 0 : vector<64x128xf32>, i32 -> vector<64x128xf32>
    %182 = vector.broadcast %25 : vector<64x1xf32> to vector<64x128xf32>
    %183 = arith.mulf %181, %182 : vector<64x128xf32>
    %184 = arith.truncf %183 : vector<64x128xf32> to vector<64x128xbf16>
    %c0_74 = arith.constant 0 : index
    %c0_75 = arith.constant 0 : index
    %c0_76 = arith.constant 0 : index
    %185 = vector.load %arg13[%c0_74, %c0_75, %c0_76] : memref<3x384x128xbf16, #tpu.memory_space<vmem>>, vector<1x384x128xbf16>
    %186 = vector.shape_cast %185 : vector<1x384x128xbf16> to vector<384x128xbf16>
    %187 = tpu.concatenate %179, %180, %184 in 1 : vector<64x128xbf16>, vector<64x128xbf16>, vector<64x128xbf16> -> vector<64x384xbf16>
    %cst_77 = arith.constant dense<0.000000e+00> : vector<64x128xf32>
    %188 = tpu.matmul %187, %186, %cst_77 {dimension_numbers = #tpu.dot_dimension_numbers<[1], [0], [0], [1], [0, 0, 1, 1], [], []>} : vector<64x384xbf16>, vector<384x128xbf16>, vector<64x128xf32> -> vector<64x128xf32>
    %c1_i32_78 = arith.constant 1 : i32
    %189 = tpu.dynamic_rotate %171 by %c1_i32_78 dim 0 : vector<64x128xf32>, i32 -> vector<64x128xf32>
    %190 = vector.broadcast %21 : vector<64x1xf32> to vector<64x128xf32>
    %191 = arith.mulf %189, %190 : vector<64x128xf32>
    %192 = arith.truncf %191 : vector<64x128xf32> to vector<64x128xbf16>
    %193 = arith.truncf %171 : vector<64x128xf32> to vector<64x128xbf16>
    %c63_i32_79 = arith.constant 63 : i32
    %194 = tpu.dynamic_rotate %171 by %c63_i32_79 dim 0 : vector<64x128xf32>, i32 -> vector<64x128xf32>
    %195 = vector.broadcast %25 : vector<64x1xf32> to vector<64x128xf32>
    %196 = arith.mulf %194, %195 : vector<64x128xf32>
    %197 = arith.truncf %196 : vector<64x128xf32> to vector<64x128xbf16>
    %c1_80 = arith.constant 1 : index
    %c0_81 = arith.constant 0 : index
    %c0_82 = arith.constant 0 : index
    %198 = vector.load %arg13[%c1_80, %c0_81, %c0_82] : memref<3x384x128xbf16, #tpu.memory_space<vmem>>, vector<1x384x128xbf16>
    %199 = vector.shape_cast %198 : vector<1x384x128xbf16> to vector<384x128xbf16>
    %200 = tpu.concatenate %192, %193, %197 in 1 : vector<64x128xbf16>, vector<64x128xbf16>, vector<64x128xbf16> -> vector<64x384xbf16>
    %cst_83 = arith.constant dense<0.000000e+00> : vector<64x128xf32>
    %201 = tpu.matmul %200, %199, %cst_83 {dimension_numbers = #tpu.dot_dimension_numbers<[1], [0], [0], [1], [0, 0, 1, 1], [], []>} : vector<64x384xbf16>, vector<384x128xbf16>, vector<64x128xf32> -> vector<64x128xf32>
    %202 = arith.addf %188, %201 : vector<64x128xf32>
    %c56_i32_84 = arith.constant 56 : i32
    %203 = tpu.dynamic_rotate %171 by %c56_i32_84 dim 0 : vector<64x128xf32>, i32 -> vector<64x128xf32>
    %204 = vector.broadcast %17 : vector<64x1xf32> to vector<64x128xf32>
    %205 = arith.mulf %203, %204 : vector<64x128xf32>
    %c1_i32_85 = arith.constant 1 : i32
    %206 = tpu.dynamic_rotate %205 by %c1_i32_85 dim 0 : vector<64x128xf32>, i32 -> vector<64x128xf32>
    %207 = vector.broadcast %21 : vector<64x1xf32> to vector<64x128xf32>
    %208 = arith.mulf %206, %207 : vector<64x128xf32>
    %209 = arith.truncf %208 : vector<64x128xf32> to vector<64x128xbf16>
    %210 = arith.truncf %205 : vector<64x128xf32> to vector<64x128xbf16>
    %c63_i32_86 = arith.constant 63 : i32
    %211 = tpu.dynamic_rotate %205 by %c63_i32_86 dim 0 : vector<64x128xf32>, i32 -> vector<64x128xf32>
    %212 = vector.broadcast %25 : vector<64x1xf32> to vector<64x128xf32>
    %213 = arith.mulf %211, %212 : vector<64x128xf32>
    %214 = arith.truncf %213 : vector<64x128xf32> to vector<64x128xbf16>
    %c2_87 = arith.constant 2 : index
    %c0_88 = arith.constant 0 : index
    %c0_89 = arith.constant 0 : index
    %215 = vector.load %arg13[%c2_87, %c0_88, %c0_89] : memref<3x384x128xbf16, #tpu.memory_space<vmem>>, vector<1x384x128xbf16>
    %216 = vector.shape_cast %215 : vector<1x384x128xbf16> to vector<384x128xbf16>
    %217 = tpu.concatenate %209, %210, %214 in 1 : vector<64x128xbf16>, vector<64x128xbf16>, vector<64x128xbf16> -> vector<64x384xbf16>
    %cst_90 = arith.constant dense<0.000000e+00> : vector<64x128xf32>
    %218 = tpu.matmul %217, %216, %cst_90 {dimension_numbers = #tpu.dot_dimension_numbers<[1], [0], [0], [1], [0, 0, 1, 1], [], []>} : vector<64x384xbf16>, vector<384x128xbf16>, vector<64x128xf32> -> vector<64x128xf32>
    %219 = arith.addf %202, %218 : vector<64x128xf32>
    %220 = vector.broadcast %172 : vector<1x128xf32> to vector<64x128xf32>
    %221 = arith.addf %219, %220 : vector<64x128xf32>
    %222 = arith.truncf %0 : vector<64x64xf32> to vector<64x64xbf16>
    %c0_91 = arith.constant 0 : index
    %c0_92 = arith.constant 0 : index
    %223 = vector.load %arg15[%c0_91, %c0_92] : memref<64x128xbf16, #tpu.memory_space<vmem>>, vector<64x128xbf16>
    %cst_93 = arith.constant dense<0.000000e+00> : vector<64x128xf32>
    %224 = tpu.matmul %222, %223, %cst_93 {dimension_numbers = #tpu.dot_dimension_numbers<[1], [0], [0], [1], [0, 0, 1, 1], [], []>} : vector<64x64xbf16>, vector<64x128xbf16>, vector<64x128xf32> -> vector<64x128xf32>
    %c0_94 = arith.constant 0 : index
    %c0_95 = arith.constant 0 : index
    %225 = vector.load %arg16[%c0_94, %c0_95] : memref<1x128xf32, #tpu.memory_space<vmem>>, vector<1x128xf32>
    %226 = vector.broadcast %225 : vector<1x128xf32> to vector<64x128xf32>
    %227 = arith.addf %224, %226 : vector<64x128xf32>
    %228 = arith.addf %227, %221 : vector<64x128xf32>
    %c0_96 = arith.constant 0 : index
    %c0_97 = arith.constant 0 : index
    %229 = vector.load %arg17[%c0_96, %c0_97] : memref<64x128xf32, #tpu.memory_space<vmem>>, vector<64x128xf32>
    tpu.vector_store %arg17[%c0_96, %c0_97], %228 {strides = array<i32>} : memref<64x128xf32, #tpu.memory_space<vmem>>, vector<64x128xf32>,
    return
  }
  func.func @transform_0(%arg0: i32) -> (i32, i32) {
    %c0_i32 = arith.constant 0 : i32
    %c0_i32_0 = arith.constant 0 : i32
    return %arg0, %c0_i32 : i32, i32
  }
  func.func @transform_1(%arg0: i32) -> (i32, i32, i32) {
    %c0_i32 = arith.constant 0 : i32
    %c0_i32_0 = arith.constant 0 : i32
    %c0_i32_1 = arith.constant 0 : i32
    return %arg0, %c0_i32, %c0_i32_0 : i32, i32, i32
  }
  func.func @transform_2(%arg0: i32) -> (i32, i32) {
    %c0_i32 = arith.constant 0 : i32
    %c0_i32_0 = arith.constant 0 : i32
    %c0_i32_1 = arith.constant 0 : i32
    return %c0_i32, %c0_i32_0 : i32, i32
  }
  func.func @transform_3(%arg0: i32) -> (i32, i32) {
    %c0_i32 = arith.constant 0 : i32
    %c0_i32_0 = arith.constant 0 : i32
    %c0_i32_1 = arith.constant 0 : i32
    return %c0_i32, %c0_i32_0 : i32, i32
  }
  func.func @transform_4(%arg0: i32) -> (i32, i32) {
    %c0_i32 = arith.constant 0 : i32
    %c0_i32_0 = arith.constant 0 : i32
    %c0_i32_1 = arith.constant 0 : i32
    return %c0_i32, %c0_i32_0 : i32, i32
  }
  func.func @transform_5(%arg0: i32) -> (i32, i32) {
    %c0_i32 = arith.constant 0 : i32
    %c0_i32_0 = arith.constant 0 : i32
    %c0_i32_1 = arith.constant 0 : i32
    return %c0_i32, %c0_i32_0 : i32, i32
  }
  func.func @transform_6(%arg0: i32) -> (i32, i32, i32) {
    %c0_i32 = arith.constant 0 : i32
    %c0_i32_0 = arith.constant 0 : i32
    %c0_i32_1 = arith.constant 0 : i32
    %c0_i32_2 = arith.constant 0 : i32
    return %c0_i32, %c0_i32_0, %c0_i32_1 : i32, i32, i32
  }
  func.func @transform_7(%arg0: i32) -> (i32, i32) {
    %c0_i32 = arith.constant 0 : i32
    %c0_i32_0 = arith.constant 0 : i32
    %c0_i32_1 = arith.constant 0 : i32
    return %c0_i32, %c0_i32_0 : i32, i32
  }
  func.func @transform_8(%arg0: i32) -> (i32, i32) {
    %c0_i32 = arith.constant 0 : i32
    %c0_i32_0 = arith.constant 0 : i32
    %c0_i32_1 = arith.constant 0 : i32
    return %c0_i32, %c0_i32_0 : i32, i32
  }
  func.func @transform_9(%arg0: i32) -> (i32, i32) {
    %c0_i32 = arith.constant 0 : i32
    %c0_i32_0 = arith.constant 0 : i32
    %c0_i32_1 = arith.constant 0 : i32
    return %c0_i32, %c0_i32_0 : i32, i32
  }
  func.func @transform_10(%arg0: i32) -> (i32, i32) {
    %c0_i32 = arith.constant 0 : i32
    %c0_i32_0 = arith.constant 0 : i32
    %c0_i32_1 = arith.constant 0 : i32
    return %c0_i32, %c0_i32_0 : i32, i32
  }
  func.func @transform_11(%arg0: i32) -> (i32, i32) {
    %c0_i32 = arith.constant 0 : i32
    %c0_i32_0 = arith.constant 0 : i32
    %c0_i32_1 = arith.constant 0 : i32
    return %c0_i32, %c0_i32_0 : i32, i32
  }
  func.func @transform_12(%arg0: i32) -> (i32, i32, i32) {
    %c0_i32 = arith.constant 0 : i32
    %c0_i32_0 = arith.constant 0 : i32
    %c0_i32_1 = arith.constant 0 : i32
    %c0_i32_2 = arith.constant 0 : i32
    return %c0_i32, %c0_i32_0, %c0_i32_1 : i32, i32, i32
  }
  func.func @transform_13(%arg0: i32) -> (i32, i32) {
    %c0_i32 = arith.constant 0 : i32
    %c0_i32_0 = arith.constant 0 : i32
    %c0_i32_1 = arith.constant 0 : i32
    return %c0_i32, %c0_i32_0 : i32, i32
  }
  func.func @transform_14(%arg0: i32) -> (i32, i32) {
    %c0_i32 = arith.constant 0 : i32
    %c0_i32_0 = arith.constant 0 : i32
    %c0_i32_1 = arith.constant 0 : i32
    return %c0_i32, %c0_i32_0 : i32, i32
  }
  func.func @transform_15(%arg0: i32) -> (i32, i32) {
    %c0_i32 = arith.constant 0 : i32
    %c0_i32_0 = arith.constant 0 : i32
    %c0_i32_1 = arith.constant 0 : i32
    return %c0_i32, %c0_i32_0 : i32, i32
  }
  func.func @transform_16(%arg0: i32) -> (i32, i32) {
    %c0_i32 = arith.constant 0 : i32
    %c0_i32_0 = arith.constant 0 : i32
    return %arg0, %c0_i32 : i32, i32
  }
}

</mosaic_0001>

<llo_original>
// kernel: tpu_custom_call.1
$region0: #{tpu_custom_call.1}
  #allocation0 [shape = 'u32[]', space=smem, size = 0x4, offset = 0x4, fixed_abs, tag = 'smem constant byte address 0x4 - core index']
  #allocation1 [shape = 'u32[144,128]{1,0:T(1,128)}', space=vmem, size = 0x12000, scoped, tag = 'internal scratch']
  %s0 = inlined_call_operand.vmem [shape: f32[128,64], index: 0, kind: input, shape index: {}]
  %s1 = inlined_call_operand.vmem [shape: f32[2,1,128], index: 1, kind: input, shape index: {}]
  %s2 = inlined_call_operand.vmem [shape: f32[1,64], index: 2, kind: input, shape index: {}]
  %s3 = inlined_call_operand.vmem [shape: f32[1,64], index: 3, kind: input, shape index: {}]
  %s4 = inlined_call_operand.vmem [shape: f32[64,32], index: 4, kind: input, shape index: {}]
  %s5 = inlined_call_operand.vmem [shape: f32[32,64], index: 5, kind: input, shape index: {}]
  %s6 = inlined_call_operand.vmem [shape: bf16[3,192,128], index: 6, kind: input, shape index: {}]
  %s7 = inlined_call_operand.vmem [shape: f32[1,128], index: 7, kind: input, shape index: {}]
  %s8 = inlined_call_operand.vmem [shape: f32[1,128], index: 8, kind: input, shape index: {}]
  %s9 = inlined_call_operand.vmem [shape: f32[1,128], index: 9, kind: input, shape index: {}]
  %s10 = inlined_call_operand.vmem [shape: f32[128,32], index: 10, kind: input, shape index: {}]
  %s11 = inlined_call_operand.vmem [shape: f32[32,128], index: 11, kind: input, shape index: {}]
  %s12 = inlined_call_operand.hbm [shape: bf16[3,384,128], index: 12, kind: input, shape index: {}]
  %s13 = inlined_call_operand.vmem [shape: f32[1,128], index: 13, kind: input, shape index: {}]
  %s14 = inlined_call_operand.vmem [shape: bf16[64,128], index: 14, kind: input, shape index: {}]
  %s15 = inlined_call_operand.vmem [shape: f32[1,128], index: 15, kind: input, shape index: {}]
  %s16 = inlined_call_operand.hbm [shape: f32[128,128], index: 16, kind: output, shape index: {}]
  %s17 = sld [smem:[#allocation0]]
  $region101: #{tpu_custom_call.1} parent=0
    _
  %s19 = ssub.s32 1, %s17
  %s20 = scalar_select 0, %s19, %s17
  $region1: #{tpu_custom_call.1} parent=0
    #allocation2 [shape = 'u8[294912]{0}', space=vmem, size = 0x48000, scoped, tag = 'input window, operand 12, single buffered']
    #allocation3 [shape = 's32[2]{0}', space=sflag, size = 0x8, scoped, tag = 'scoped memory for tpu_custom_call.1']
    #allocation4 [shape = 's32[2]{0}', space=sflag, size = 0x8, scoped, tag = 'scoped memory for tpu_custom_call.1']
    #allocation5 [shape = 'u8[65536]{0}', space=vmem, size = 0x10000, scoped, tag = 'output window, operand 0']
    %21 = vsyncpa [#allocation3], 0
    %22 = vsyncpa [#allocation4], 0
    %s23 = scalar_lea.sflag [#allocation4], 1
    %24 = vsyncpa %s23, 0
    loop: start=0, step=1, limit=4
    $region2: #{tpu_custom_call.1} parent=1 // loop_pre_header
      _
    $region3: #{tpu_custom_call.1} parent=1 // loop_header
      %s26 = sphi 0, %s30
      %p27 = scmp.ge.s32.totalorder %s26, 4
      %s36 = sphi 0, %s38
      %s39 = sphi 0, %s36
      %s40 = sphi 0, %s39
      %s56 = sphi 0, %s40
      %s62 = sphi 0, %s64
      %s65 = sphi 0, %s62
      %s66 = sphi 0, %s65
      %s82 = sphi 0, %s66
      %s86 = sphi 0, %s86
      %s88 = sphi 0, %s86
      %s89 = sphi 0, %s88
      %s103 = sphi 0, %s89
      %s107 = sphi 0, %s107
      %s109 = sphi 0, %s107
      %s110 = sphi 0, %s109
      %s124 = sphi 0, %s110
      %s128 = sphi 0, %s128
      %s130 = sphi 0, %s128
      %s131 = sphi 0, %s130
      %s145 = sphi 0, %s131
      %s149 = sphi 0, %s149
      %s151 = sphi 0, %s149
      %s152 = sphi 0, %s151
      %s166 = sphi 0, %s152
      %s170 = sphi 0, %s170
      %s172 = sphi 0, %s170
      %s173 = sphi 0, %s172
      %s187 = sphi 0, %s173
      %s191 = sphi 0, %s191
      %s193 = sphi 0, %s191
      %s194 = sphi 0, %s193
      %s208 = sphi 0, %s194
      %s212 = sphi 0, %s212
      %s214 = sphi 0, %s212
      %s215 = sphi 0, %s214
      %s229 = sphi 0, %s215
      %s233 = sphi 0, %s233
      %s235 = sphi 0, %s233
      %s236 = sphi 0, %s235
      %s250 = sphi 0, %s236
      %s254 = sphi 0, %s254
      %s256 = sphi 0, %s254
      %s257 = sphi 0, %s256
      %s271 = sphi 0, %s257
      %s275 = sphi 0, %s275
      %s277 = sphi 0, %s275
      %s278 = sphi 0, %s277
      %s292 = sphi 0, %s278
      %s296 = sphi 0, %s296
      %s298 = sphi 0, %s296
      %s299 = sphi 0, %s298
      %s313 = sphi 0, %s299
      %s317 = sphi 0, %s317
      %s319 = sphi 0, %s317
      %s320 = sphi 0, %s319
      %s334 = sphi 0, %s320
      %s338 = sphi 0, %s338
      %s340 = sphi 0, %s338
      %s341 = sphi 0, %s340
      %s355 = sphi 0, %s341
      %s359 = sphi 0, %s359
      %s361 = sphi 0, %s359
      %s362 = sphi 0, %s361
      %s376 = sphi 0, %s362
      %s382 = sphi 0, %s384
      %s385 = sphi 0, %s382
      %s386 = sphi 0, %s385
      %s402 = sphi 0, %s386
    $region4: #{tpu_custom_call.1} parent=1 // loop_header_branch
      %29 = sbr.rel (%p27) target = $region8
    $region5: #{tpu_custom_call.1} parent=1 // loop_body
      %s31 = ssub.s32 %s26, 1
      %s32 = ssub.s32 %s26, 2
      %s33 = sadd.s32 %s26, 1
      %s34 = ssub.s32 %s26, %s33
      %p35 = scmp.eq.s32.totalorder %s34, 0
      %s37 = sadd.s32 %s36, 1
      %s38 = scalar_select %p35, %s36, %s37
      %p41 = pneg %p35
      %p42 = scmp.eq.s32.totalorder %s26, 1
      %p43 = por %p41, %p42
      %p44 = scmp.ne.s32.totalorder %s36, %s39
      %p45 = scmp.eq.s32.totalorder %s26, 0
      %p46 = por %p44, %p45
      %p47 = scmp.ne.s32.totalorder %s36, %s39
      %p48 = scmp.eq.s32.totalorder %s31, 1
      %p49 = por %p47, %p48
      %p50 = scmp.ne.s32.totalorder %s39, %s40
      %p51 = scmp.eq.s32.totalorder %s31, 0
      %p52 = por %p50, %p51
      %p53 = scmp.ne.s32.totalorder %s39, %s40
      %p54 = scmp.eq.s32.totalorder %s32, 1
      %p55 = por %p53, %p54
      %p57 = scmp.ne.s32.totalorder %s40, %s56
      %p58 = scmp.eq.s32.totalorder %s32, 0
      %p59 = por %p57, %p58
      %s60 = ssub.s32 %s26, %s33
      %p61 = scmp.eq.s32.totalorder %s60, 0
      %s63 = sadd.s32 %s62, 1
      %s64 = scalar_select %p61, %s62, %s63
      %p67 = pneg %p61
      %p68 = scmp.eq.s32.totalorder %s26, 1
      %p69 = por %p67, %p68
      %p70 = scmp.ne.s32.totalorder %s62, %s65
      %p71 = scmp.eq.s32.totalorder %s26, 0
      %p72 = por %p70, %p71
      %p73 = scmp.ne.s32.totalorder %s62, %s65
      %p74 = scmp.eq.s32.totalorder %s31, 1
      %p75 = por %p73, %p74
      %p76 = scmp.ne.s32.totalorder %s65, %s66
      %p77 = scmp.eq.s32.totalorder %s31, 0
      %p78 = por %p76, %p77
      %p79 = scmp.ne.s32.totalorder %s65, %s66
      %p80 = scmp.eq.s32.totalorder %s32, 1
      %p81 = por %p79, %p80
      %p83 = scmp.ne.s32.totalorder %s66, %s82
      %p84 = scmp.eq.s32.totalorder %s32, 0
      %p85 = por %p83, %p84
      %s87 = sadd.s32 %s86, 1
      %p90 = scmp.eq.s32.totalorder %s26, 1
      %p91 = scmp.ne.s32.totalorder %s86, %s88
      %p92 = scmp.eq.s32.totalorder %s26, 0
      %p93 = por %p91, %p92
      %p94 = scmp.ne.s32.totalorder %s86, %s88
      %p95 = scmp.eq.s32.totalorder %s31, 1
      %p96 = por %p94, %p95
      %p97 = scmp.ne.s32.totalorder %s88, %s89
      %p98 = scmp.eq.s32.totalorder %s31, 0
      %p99 = por %p97, %p98
      %p100 = scmp.ne.s32.totalorder %s88, %s89
      %p101 = scmp.eq.s32.totalorder %s32, 1
      %p102 = por %p100, %p101
      %p104 = scmp.ne.s32.totalorder %s89, %s103
      %p105 = scmp.eq.s32.totalorder %s32, 0
      %p106 = por %p104, %p105
      %s108 = sadd.s32 %s107, 1
      %p111 = scmp.eq.s32.totalorder %s26, 1
      %p112 = scmp.ne.s32.totalorder %s107, %s109
      %p113 = scmp.eq.s32.totalorder %s26, 0
      %p114 = por %p112, %p113
      %p115 = scmp.ne.s32.totalorder %s107, %s109
      %p116 = scmp.eq.s32.totalorder %s31, 1
      %p117 = por %p115, %p116
      %p118 = scmp.ne.s32.totalorder %s109, %s110
      %p119 = scmp.eq.s32.totalorder %s31, 0
      %p120 = por %p118, %p119
      %p121 = scmp.ne.s32.totalorder %s109, %s110
      %p122 = scmp.eq.s32.totalorder %s32, 1
      %p123 = por %p121, %p122
      %p125 = scmp.ne.s32.totalorder %s110, %s124
      %p126 = scmp.eq.s32.totalorder %s32, 0
      %p127 = por %p125, %p126
      %s129 = sadd.s32 %s128, 1
      %p132 = scmp.eq.s32.totalorder %s26, 1
      %p133 = scmp.ne.s32.totalorder %s128, %s130
      %p134 = scmp.eq.s32.totalorder %s26, 0
      %p135 = por %p133, %p134
      %p136 = scmp.ne.s32.totalorder %s128, %s130
      %p137 = scmp.eq.s32.totalorder %s31, 1
      %p138 = por %p136, %p137
      %p139 = scmp.ne.s32.totalorder %s130, %s131
      %p140 = scmp.eq.s32.totalorder %s31, 0
      %p141 = por %p139, %p140
      %p142 = scmp.ne.s32.totalorder %s130, %s131
      %p143 = scmp.eq.s32.totalorder %s32, 1
      %p144 = por %p142, %p143
      %p146 = scmp.ne.s32.totalorder %s131, %s145
      %p147 = scmp.eq.s32.totalorder %s32, 0
      %p148 = por %p146, %p147
      %s150 = sadd.s32 %s149, 1
      %p153 = scmp.eq.s32.totalorder %s26, 1
      %p154 = scmp.ne.s32.totalorder %s149, %s151
      %p155 = scmp.eq.s32.totalorder %s26, 0
      %p156 = por %p154, %p155
      %p157 = scmp.ne.s32.totalorder %s149, %s151
      %p158 = scmp.eq.s32.totalorder %s31, 1
      %p159 = por %p157, %p158
      %p160 = scmp.ne.s32.totalorder %s151, %s152
      %p161 = scmp.eq.s32.totalorder %s31, 0
      %p162 = por %p160, %p161
      %p163 = scmp.ne.s32.totalorder %s151, %s152
      %p164 = scmp.eq.s32.totalorder %s32, 1
      %p165 = por %p163, %p164
      %p167 = scmp.ne.s32.totalorder %s152, %s166
      %p168 = scmp.eq.s32.totalorder %s32, 0
      %p169 = por %p167, %p168
      %s171 = sadd.s32 %s170, 1
      %p174 = scmp.eq.s32.totalorder %s26, 1
      %p175 = scmp.ne.s32.totalorder %s170, %s172
      %p176 = scmp.eq.s32.totalorder %s26, 0
      %p177 = por %p175, %p176
      %p178 = scmp.ne.s32.totalorder %s170, %s172
      %p179 = scmp.eq.s32.totalorder %s31, 1
      %p180 = por %p178, %p179
      %p181 = scmp.ne.s32.totalorder %s172, %s173
      %p182 = scmp.eq.s32.totalorder %s31, 0
      %p183 = por %p181, %p182
      %p184 = scmp.ne.s32.totalorder %s172, %s173
      %p185 = scmp.eq.s32.totalorder %s32, 1
      %p186 = por %p184, %p185
      %p188 = scmp.ne.s32.totalorder %s173, %s187
      %p189 = scmp.eq.s32.totalorder %s32, 0
      %p190 = por %p188, %p189
      %s192 = sadd.s32 %s191, 1
      %p195 = scmp.eq.s32.totalorder %s26, 1
      %p196 = scmp.ne.s32.totalorder %s191, %s193
      %p197 = scmp.eq.s32.totalorder %s26, 0
      %p198 = por %p196, %p197
      %p199 = scmp.ne.s32.totalorder %s191, %s193
      %p200 = scmp.eq.s32.totalorder %s31, 1
      %p201 = por %p199, %p200
      %p202 = scmp.ne.s32.totalorder %s193, %s194
      %p203 = scmp.eq.s32.totalorder %s31, 0
      %p204 = por %p202, %p203
      %p205 = scmp.ne.s32.totalorder %s193, %s194
      %p206 = scmp.eq.s32.totalorder %s32, 1
      %p207 = por %p205, %p206
      %p209 = scmp.ne.s32.totalorder %s194, %s208
      %p210 = scmp.eq.s32.totalorder %s32, 0
      %p211 = por %p209, %p210
      %s213 = sadd.s32 %s212, 1
      %p216 = scmp.eq.s32.totalorder %s26, 1
      %p217 = scmp.ne.s32.totalorder %s212, %s214
      %p218 = scmp.eq.s32.totalorder %s26, 0
      %p219 = por %p217, %p218
      %p220 = scmp.ne.s32.totalorder %s212, %s214
      %p221 = scmp.eq.s32.totalorder %s31, 1
      %p222 = por %p220, %p221
      %p223 = scmp.ne.s32.totalorder %s214, %s215
      %p224 = scmp.eq.s32.totalorder %s31, 0
      %p225 = por %p223, %p224
      %p226 = scmp.ne.s32.totalorder %s214, %s215
      %p227 = scmp.eq.s32.totalorder %s32, 1
      %p228 = por %p226, %p227
      %p230 = scmp.ne.s32.totalorder %s215, %s229
      %p231 = scmp.eq.s32.totalorder %s32, 0
      %p232 = por %p230, %p231
      %s234 = sadd.s32 %s233, 1
      %p237 = scmp.eq.s32.totalorder %s26, 1
      %p238 = scmp.ne.s32.totalorder %s233, %s235
      %p239 = scmp.eq.s32.totalorder %s26, 0
      %p240 = por %p238, %p239
      %p241 = scmp.ne.s32.totalorder %s233, %s235
      %p242 = scmp.eq.s32.totalorder %s31, 1
      %p243 = por %p241, %p242
      %p244 = scmp.ne.s32.totalorder %s235, %s236
      %p245 = scmp.eq.s32.totalorder %s31, 0
      %p246 = por %p244, %p245
      %p247 = scmp.ne.s32.totalorder %s235, %s236
      %p248 = scmp.eq.s32.totalorder %s32, 1
      %p249 = por %p247, %p248
      %p251 = scmp.ne.s32.totalorder %s236, %s250
      %p252 = scmp.eq.s32.totalorder %s32, 0
      %p253 = por %p251, %p252
      %s255 = sadd.s32 %s254, 1
      %p258 = scmp.eq.s32.totalorder %s26, 1
      %p259 = scmp.ne.s32.totalorder %s254, %s256
      %p260 = scmp.eq.s32.totalorder %s26, 0
      %p261 = por %p259, %p260
      %p262 = scmp.ne.s32.totalorder %s254, %s256
      %p263 = scmp.eq.s32.totalorder %s31, 1
      %p264 = por %p262, %p263
      %p265 = scmp.ne.s32.totalorder %s256, %s257
      %p266 = scmp.eq.s32.totalorder %s31, 0
      %p267 = por %p265, %p266
      %p268 = scmp.ne.s32.totalorder %s256, %s257
      %p269 = scmp.eq.s32.totalorder %s32, 1
      %p270 = por %p268, %p269
      %p272 = scmp.ne.s32.totalorder %s257, %s271
      %p273 = scmp.eq.s32.totalorder %s32, 0
      %p274 = por %p272, %p273
      %s276 = sadd.s32 %s275, 1
      %p279 = scmp.eq.s32.totalorder %s26, 1
      %p280 = scmp.ne.s32.totalorder %s275, %s277
      %p281 = scmp.eq.s32.totalorder %s26, 0
      %p282 = por %p280, %p281
      %p283 = scmp.ne.s32.totalorder %s275, %s277
      %p284 = scmp.eq.s32.totalorder %s31, 1
      %p285 = por %p283, %p284
      %p286 = scmp.ne.s32.totalorder %s277, %s278
      %p287 = scmp.eq.s32.totalorder %s31, 0
      %p288 = por %p286, %p287
      %p289 = scmp.ne.s32.totalorder %s277, %s278
      %p290 = scmp.eq.s32.totalorder %s32, 1
      %p291 = por %p289, %p290
      %p293 = scmp.ne.s32.totalorder %s278, %s292
      %p294 = scmp.eq.s32.totalorder %s32, 0
      %p295 = por %p293, %p294
      %s297 = sadd.s32 %s296, 1
      %p300 = scmp.eq.s32.totalorder %s26, 1
      %p301 = scmp.ne.s32.totalorder %s296, %s298
      %p302 = scmp.eq.s32.totalorder %s26, 0
      %p303 = por %p301, %p302
      %p304 = scmp.ne.s32.totalorder %s296, %s298
      %p305 = scmp.eq.s32.totalorder %s31, 1
      %p306 = por %p304, %p305
      %p307 = scmp.ne.s32.totalorder %s298, %s299
      %p308 = scmp.eq.s32.totalorder %s31, 0
      %p309 = por %p307, %p308
      %p310 = scmp.ne.s32.totalorder %s298, %s299
      %p311 = scmp.eq.s32.totalorder %s32, 1
      %p312 = por %p310, %p311
      %p314 = scmp.ne.s32.totalorder %s299, %s313
      %p315 = scmp.eq.s32.totalorder %s32, 0
      %p316 = por %p314, %p315
      %s318 = sadd.s32 %s317, 1
      %p321 = scmp.eq.s32.totalorder %s26, 1
      %p322 = scmp.ne.s32.totalorder %s317, %s319
      %p323 = scmp.eq.s32.totalorder %s26, 0
      %p324 = por %p322, %p323
      %p325 = scmp.ne.s32.totalorder %s317, %s319
      %p326 = scmp.eq.s32.totalorder %s31, 1
      %p327 = por %p325, %p326
      %p328 = scmp.ne.s32.totalorder %s319, %s320
      %p329 = scmp.eq.s32.totalorder %s31, 0
      %p330 = por %p328, %p329
      %p331 = scmp.ne.s32.totalorder %s319, %s320
      %p332 = scmp.eq.s32.totalorder %s32, 1
      %p333 = por %p331, %p332
      %p335 = scmp.ne.s32.totalorder %s320, %s334
      %p336 = scmp.eq.s32.totalorder %s32, 0
      %p337 = por %p335, %p336
      %s339 = sadd.s32 %s338, 1
      %p342 = scmp.eq.s32.totalorder %s26, 1
      %p343 = scmp.ne.s32.totalorder %s338, %s340
      %p344 = scmp.eq.s32.totalorder %s26, 0
      %p345 = por %p343, %p344
      %p346 = scmp.ne.s32.totalorder %s338, %s340
      %p347 = scmp.eq.s32.totalorder %s31, 1
      %p348 = por %p346, %p347
      %p349 = scmp.ne.s32.totalorder %s340, %s341
      %p350 = scmp.eq.s32.totalorder %s31, 0
      %p351 = por %p349, %p350
      %p352 = scmp.ne.s32.totalorder %s340, %s341
      %p353 = scmp.eq.s32.totalorder %s32, 1
      %p354 = por %p352, %p353
      %p356 = scmp.ne.s32.totalorder %s341, %s355
      %p357 = scmp.eq.s32.totalorder %s32, 0
      %p358 = por %p356, %p357
      %s360 = sadd.s32 %s359, 1
      %p363 = scmp.eq.s32.totalorder %s26, 1
      %p364 = scmp.ne.s32.totalorder %s359, %s361
      %p365 = scmp.eq.s32.totalorder %s26, 0
      %p366 = por %p364, %p365
      %p367 = scmp.ne.s32.totalorder %s359, %s361
      %p368 = scmp.eq.s32.totalorder %s31, 1
      %p369 = por %p367, %p368
      %p370 = scmp.ne.s32.totalorder %s361, %s362
      %p371 = scmp.eq.s32.totalorder %s31, 0
      %p372 = por %p370, %p371
      %p373 = scmp.ne.s32.totalorder %s361, %s362
      %p374 = scmp.eq.s32.totalorder %s32, 1
      %p375 = por %p373, %p374
      %p377 = scmp.ne.s32.totalorder %s362, %s376
      %p378 = scmp.eq.s32.totalorder %s32, 0
      %p379 = por %p377, %p378
      %s380 = ssub.s32 %s26, %s33
      %p381 = scmp.eq.s32.totalorder %s380, 0
      %s383 = sadd.s32 %s382, 1
      %s384 = scalar_select %p381, %s382, %s383
      %p387 = pneg %p381
      %p388 = scmp.eq.s32.totalorder %s26, 1
      %p389 = por %p387, %p388
      %p390 = scmp.ne.s32.totalorder %s382, %s385
      %p391 = scmp.eq.s32.totalorder %s26, 0
      %p392 = por %p390, %p391
      %p393 = scmp.ne.s32.totalorder %s382, %s385
      %p394 = scmp.eq.s32.totalorder %s31, 1
      %p395 = por %p393, %p394
      %p396 = scmp.ne.s32.totalorder %s385, %s386
      %p397 = scmp.eq.s32.totalorder %s31, 0
      %p398 = por %p396, %p397
      %p399 = scmp.ne.s32.totalorder %s385, %s386
      %p400 = scmp.eq.s32.totalorder %s32, 1
      %p401 = por %p399, %p400
      %p403 = scmp.ne.s32.totalorder %s386, %s402
      %p404 = scmp.eq.s32.totalorder %s32, 0
      %p405 = por %p403, %p404
      %p406 = scmp.le.s32.totalorder 1, %s26
      %p407 = scmp.lt.s32.totalorder %s26, 3
      %p408 = pnand %p406, %p407
      %p409 = pneg %p408
      // Predicated region
      $region9: #{tpu_custom_call.1} parent=5 // pred_check
        _
      $region10: #{tpu_custom_call.1} parent=5 // pred_check_branch
        %411 = sbr.rel (%p408) target = $region12
      $region11: #{tpu_custom_call.1} parent=5 // pred_region
        %s412 = ssub.s32 %s26, 1
        // Predicated region
        $region13: #{tpu_custom_call.1} parent=11 // pred_check
          %p413 = pneg %p99
        $region14: #{tpu_custom_call.1} parent=11 // pred_check_branch
          %415 = sbr.rel (%p413) target = $region16
        $region15: #{tpu_custom_call.1} parent=11 // pred_region
          _
        $region16: #{tpu_custom_call.1} parent=11 // pred_fallthru
          _
        // Predicated region
        $region17: #{tpu_custom_call.1} parent=11 // pred_check
          %p416 = pneg %p120
        $region18: #{tpu_custom_call.1} parent=11 // pred_check_branch
          %418 = sbr.rel (%p416) target = $region20
        $region19: #{tpu_custom_call.1} parent=11 // pred_region
          _
        $region20: #{tpu_custom_call.1} parent=11 // pred_fallthru
          _
        // Predicated region
        $region21: #{tpu_custom_call.1} parent=11 // pred_check
          %p419 = pneg %p141
        $region22: #{tpu_custom_call.1} parent=11 // pred_check_branch
          %421 = sbr.rel (%p419) target = $region24
        $region23: #{tpu_custom_call.1} parent=11 // pred_region
          _
        $region24: #{tpu_custom_call.1} parent=11 // pred_fallthru
          _
        // Predicated region
        $region25: #{tpu_custom_call.1} parent=11 // pred_check
          %p422 = pneg %p162
        $region26: #{tpu_custom_call.1} parent=11 // pred_check_branch
          %424 = sbr.rel (%p422) target = $region28
        $region27: #{tpu_custom_call.1} parent=11 // pred_region
          _
        $region28: #{tpu_custom_call.1} parent=11 // pred_fallthru
          _
        // Predicated region
        $region29: #{tpu_custom_call.1} parent=11 // pred_check
          %p425 = pneg %p183
        $region30: #{tpu_custom_call.1} parent=11 // pred_check_branch
          %427 = sbr.rel (%p425) target = $region32
        $region31: #{tpu_custom_call.1} parent=11 // pred_region
          _
        $region32: #{tpu_custom_call.1} parent=11 // pred_fallthru
          _
        // Predicated region
        $region33: #{tpu_custom_call.1} parent=11 // pred_check
          %p428 = pneg %p204
        $region34: #{tpu_custom_call.1} parent=11 // pred_check_branch
          %430 = sbr.rel (%p428) target = $region36
        $region35: #{tpu_custom_call.1} parent=11 // pred_region
          _
        $region36: #{tpu_custom_call.1} parent=11 // pred_fallthru
          _
        // Predicated region
        $region37: #{tpu_custom_call.1} parent=11 // pred_check
          %p431 = pneg %p225
        $region38: #{tpu_custom_call.1} parent=11 // pred_check_branch
          %433 = sbr.rel (%p431) target = $region40
        $region39: #{tpu_custom_call.1} parent=11 // pred_region
          _
        $region40: #{tpu_custom_call.1} parent=11 // pred_fallthru
          _
        // Predicated region
        $region41: #{tpu_custom_call.1} parent=11 // pred_check
          %p434 = pneg %p246
        $region42: #{tpu_custom_call.1} parent=11 // pred_check_branch
          %436 = sbr.rel (%p434) target = $region44
        $region43: #{tpu_custom_call.1} parent=11 // pred_region
          _
        $region44: #{tpu_custom_call.1} parent=11 // pred_fallthru
          _
        // Predicated region
        $region45: #{tpu_custom_call.1} parent=11 // pred_check
          %p437 = pneg %p267
        $region46: #{tpu_custom_call.1} parent=11 // pred_check_branch
          %439 = sbr.rel (%p437) target = $region48
        $region47: #{tpu_custom_call.1} parent=11 // pred_region
          _
        $region48: #{tpu_custom_call.1} parent=11 // pred_fallthru
          _
        // Predicated region
        $region49: #{tpu_custom_call.1} parent=11 // pred_check
          %p440 = pneg %p288
        $region50: #{tpu_custom_call.1} parent=11 // pred_check_branch
          %442 = sbr.rel (%p440) target = $region52
        $region51: #{tpu_custom_call.1} parent=11 // pred_region
          _
        $region52: #{tpu_custom_call.1} parent=11 // pred_fallthru
          _
        // Predicated region
        $region53: #{tpu_custom_call.1} parent=11 // pred_check
          %p443 = pneg %p309
        $region54: #{tpu_custom_call.1} parent=11 // pred_check_branch
          %445 = sbr.rel (%p443) target = $region56
        $region55: #{tpu_custom_call.1} parent=11 // pred_region
          %s447 = ssub.s32 9216, 9216
          %448 = vsyncadd [#allocation3], %s447
          %s449 = sshll.u32 [#allocation2], 4
          %s450 = int_to_ptr.vmem [resolvable:$true] %s449
          %455 = dma.hbm_to_vmem [thread:$0]  %s12, 9216, %s450, [#allocation3], 64, 64, 4
        $region56: #{tpu_custom_call.1} parent=11 // pred_fallthru
          _
        // Predicated region
        $region57: #{tpu_custom_call.1} parent=11 // pred_check
          %p456 = pneg %p330
        $region58: #{tpu_custom_call.1} parent=11 // pred_check_branch
          %458 = sbr.rel (%p456) target = $region60
        $region59: #{tpu_custom_call.1} parent=11 // pred_region
          _
        $region60: #{tpu_custom_call.1} parent=11 // pred_fallthru
          _
        // Predicated region
        $region61: #{tpu_custom_call.1} parent=11 // pred_check
          %p459 = pneg %p351
        $region62: #{tpu_custom_call.1} parent=11 // pred_check_branch
          %461 = sbr.rel (%p459) target = $region64
        $region63: #{tpu_custom_call.1} parent=11 // pred_region
          _
        $region64: #{tpu_custom_call.1} parent=11 // pred_fallthru
          _
        // Predicated region
        $region65: #{tpu_custom_call.1} parent=11 // pred_check
          %p462 = pneg %p372
        $region66: #{tpu_custom_call.1} parent=11 // pred_check_branch
          %464 = sbr.rel (%p462) target = $region68
        $region67: #{tpu_custom_call.1} parent=11 // pred_region
          _
        $region68: #{tpu_custom_call.1} parent=11 // pred_fallthru
          _
      $region12: #{tpu_custom_call.1} parent=5 // pred_fallthru
        _
      %p465 = scmp.lt.s32.totalorder %s26, 2
      // Predicated region
      $region69: #{tpu_custom_call.1} parent=5 // pred_check
        %p466 = pneg %p465
      $region70: #{tpu_custom_call.1} parent=5 // pred_check_branch
        %468 = sbr.rel (%p466) target = $region72
      $region71: #{tpu_custom_call.1} parent=5 // pred_region
        // Predicated region
        $region73: #{tpu_custom_call.1} parent=71 // pred_check
          %p469 = pneg %p46
        $region74: #{tpu_custom_call.1} parent=71 // pred_check_branch
          %471 = sbr.rel (%p469) target = $region76
        $region75: #{tpu_custom_call.1} parent=71 // pred_region
          %s472 = smul.u32 8, %s26
          %p473 = scmp.lt.s32.totalorder %s472, 15
          %s474 = scalar_select %p473, %s472, 15
          %s475 = smul.addr %s474, 8
          %s476 = scalar_lea.vmem %s0, %s475
          %s477 = smul.u32 8, %s26
        $region76: #{tpu_custom_call.1} parent=71 // pred_fallthru
          _
        // Predicated region
        $region77: #{tpu_custom_call.1} parent=71 // pred_check
          %p478 = pneg %p72
        $region78: #{tpu_custom_call.1} parent=71 // pred_check_branch
          %480 = sbr.rel (%p478) target = $region80
        $region79: #{tpu_custom_call.1} parent=71 // pred_region
          %p481 = scmp.lt.s32.totalorder %s26, 1
          %s482 = scalar_select %p481, %s26, 1
          %s483 = scalar_lea.vmem %s1, %s482
        $region80: #{tpu_custom_call.1} parent=71 // pred_fallthru
          _
      $region72: #{tpu_custom_call.1} parent=5 // pred_fallthru
        _
      %p484 = scmp.le.s32.totalorder 1, %s26
      %p485 = scmp.lt.s32.totalorder %s26, 3
      %p486 = pnand %p484, %p485
      %p487 = pneg %p486
      // Predicated region
      $region81: #{tpu_custom_call.1} parent=5 // pred_check
        _
      $region82: #{tpu_custom_call.1} parent=5 // pred_check_branch
        %489 = sbr.rel (%p486) target = $region84
      $region83: #{tpu_custom_call.1} parent=5 // pred_region
        %s490 = ssub.s32 %s26, 1
        // Predicated region
        $region85: #{tpu_custom_call.1} parent=83 // pred_check
          %p491 = pneg %p309
        $region86: #{tpu_custom_call.1} parent=83 // pred_check_branch
          %493 = sbr.rel (%p491) target = $region88
        $region87: #{tpu_custom_call.1} parent=83 // pred_region
          %494 = dma.done [#allocation3], 9216
        $region88: #{tpu_custom_call.1} parent=83 // pred_fallthru
          _
        %s495 = smul.u32 8, %s31
        %p496 = scmp.lt.s32.totalorder %s495, 15
        %s497 = scalar_select %p496, %s495, 15
        %s498 = smul.addr %s497, 8
        %s499 = scalar_lea.vmem %s0, %s498
        %p500 = pneg %p52
        %p501 = pneg %p49
        %p502 = scmp.lt.s32.totalorder %s31, 1
        %s503 = scalar_select %p502, %s31, 1
        %s504 = scalar_lea.vmem %s1, %s503
        %p505 = pneg %p78
        %p506 = pneg %p75
        %p507 = pneg %p99
        %p508 = pneg %p96
        %p509 = pneg %p120
        %p510 = pneg %p117
        %p511 = pneg %p141
        %p512 = pneg %p138
        %p513 = pneg %p162
        %p514 = pneg %p159
        %p515 = pneg %p183
        %p516 = pneg %p180
        %p517 = pneg %p204
        %p518 = pneg %p201
        %p519 = pneg %p225
        %p520 = pneg %p222
        %p521 = pneg %p246
        %p522 = pneg %p243
        %p523 = pneg %p267
        %p524 = pneg %p264
        %p525 = pneg %p288
        %p526 = pneg %p285
        %p527 = pneg %p309
        %p528 = pneg %p306
        %p529 = pneg %p330
        %p530 = pneg %p327
        %p531 = pneg %p351
        %p532 = pneg %p348
        %p533 = pneg %p372
        %p534 = pneg %p369
        %p535 = pneg %p398
        %p536 = pneg %p395
        %s537 = sand.u32 %s385, 1
        %s538 = scalar_lea.sflag [#allocation4], %s537
        %s539 = sand.u32 %s385, 1
        %s540 = smul.addr %s539, 64
        %s541 = scalar_lea.vmem [#allocation5], %s540
        %s542 = smul.u32 8, %s31
        %p543 = scmp.lt.s32.totalorder %s542, 15
        %s544 = scalar_select %p543, %s542, 15
        %s545 = smul.addr %s544, 8
        %s546 = scalar_lea.vmem %s0, %s545
        %s547 = smul.u32 8, %s31
        %p548 = scmp.lt.s32.totalorder %s31, 1
        %s549 = scalar_select %p548, %s31, 1
        %s550 = scalar_lea.vmem %s1, %s549
        %s551 = smul.u32 8, %s31
        %v553 = vld [vmem:[%s546] sm:$0xff]
        %v554 = vld [vmem:[%s546 + $0x8] sm:$0xff]
        %v555 = vld [vmem:[%s546 + $0x10] sm:$0xff]
        %v556 = vld [vmem:[%s546 + $0x18] sm:$0xff]
        %v557 = vld [vmem:[%s546 + $0x20] sm:$0xff]
        %v558 = vld [vmem:[%s546 + $0x28] sm:$0xff]
        %v559 = vld [vmem:[%s546 + $0x30] sm:$0xff]
        %v560 = vld [vmem:[%s546 + $0x38] sm:$0xff]
        %v561 = vld [vmem:[%s550] sm:$0x1]
        %v562 = vlaneseq
        %v563 = vshrl.u32 %v562, 7
        %v564 = vadd.s32 %v563, 8
        %v565 = vadd.s32 %v563, 16
        %v566 = vadd.s32 %v563, 24
        %v567 = vadd.s32 %v563, 32
        %v568 = vadd.s32 %v563, 40
        %v569 = vadd.s32 %v563, 48
        %v570 = vadd.s32 %v563, 56
        %v571 = vand.u32 %v563, 7
        %v572 = vand.u32 %v564, 7
        %v573 = vand.u32 %v565, 7
        %v574 = vand.u32 %v566, 7
        %v575 = vand.u32 %v567, 7
        %v576 = vand.u32 %v568, 7
        %v577 = vand.u32 %v569, 7
        %v578 = vand.u32 %v570, 7
        %v579 = vand.u32 %v563, 63
        %v580 = vand.u32 %v564, 63
        %v581 = vand.u32 %v565, 63
        %v582 = vand.u32 %v566, 63
        %v583 = vand.u32 %v567, 63
        %v584 = vand.u32 %v568, 63
        %v585 = vand.u32 %v569, 63
        %v586 = vand.u32 %v570, 63
        %v587 = vshra.s32 %v579, 3
        %v588 = vshra.s32 %v580, 3
        %v589 = vshra.s32 %v581, 3
        %v590 = vshra.s32 %v582, 3
        %v591 = vshra.s32 %v583, 3
        %v592 = vshra.s32 %v584, 3
        %v593 = vshra.s32 %v585, 3
        %v594 = vshra.s32 %v586, 3
        %vm595 = vcmp.ge.s32.totalorder %v587, 1
        %vm596 = vcmp.ge.s32.totalorder %v588, 1
        %vm597 = vcmp.ge.s32.totalorder %v589, 1
        %vm598 = vcmp.ge.s32.totalorder %v590, 1
        %vm599 = vcmp.ge.s32.totalorder %v591, 1
        %vm600 = vcmp.ge.s32.totalorder %v592, 1
        %vm601 = vcmp.ge.s32.totalorder %v593, 1
        %vm602 = vcmp.ge.s32.totalorder %v594, 1
        %v603 = vsel %vm595, 1, 0
        %v604 = vsel %vm596, 1, 0
        %v605 = vsel %vm597, 1, 0
        %v606 = vsel %vm598, 1, 0
        %v607 = vsel %vm599, 1, 0
        %v608 = vsel %vm600, 1, 0
        %v609 = vsel %vm601, 1, 0
        %v610 = vsel %vm602, 1, 0
        %v611 = vcvt.s32.f32 %v603
        %v612 = vcvt.s32.f32 %v604
        %v613 = vcvt.s32.f32 %v605
        %v614 = vcvt.s32.f32 %v606
        %v615 = vcvt.s32.f32 %v607
        %v616 = vcvt.s32.f32 %v608
        %v617 = vcvt.s32.f32 %v609
        %v618 = vcvt.s32.f32 %v610
        %vm619 = vcmp.le.s32.totalorder %v587, 6
        %vm620 = vcmp.le.s32.totalorder %v588, 6
        %vm621 = vcmp.le.s32.totalorder %v589, 6
        %vm622 = vcmp.le.s32.totalorder %v590, 6
        %vm623 = vcmp.le.s32.totalorder %v591, 6
        %vm624 = vcmp.le.s32.totalorder %v592, 6
        %vm625 = vcmp.le.s32.totalorder %v593, 6
        %vm626 = vcmp.le.s32.totalorder %v594, 6
        %v627 = vsel %vm619, 1, 0
        %v628 = vsel %vm620, 1, 0
        %v629 = vsel %vm621, 1, 0
        %v630 = vsel %vm622, 1, 0
        %v631 = vsel %vm623, 1, 0
        %v632 = vsel %vm624, 1, 0
        %v633 = vsel %vm625, 1, 0
        %v634 = vsel %vm626, 1, 0
        %v635 = vcvt.s32.f32 %v627
        %v636 = vcvt.s32.f32 %v628
        %v637 = vcvt.s32.f32 %v629
        %v638 = vcvt.s32.f32 %v630
        %v639 = vcvt.s32.f32 %v631
        %v640 = vcvt.s32.f32 %v632
        %v641 = vcvt.s32.f32 %v633
        %v642 = vcvt.s32.f32 %v634
        %vm643 = vcmp.ge.s32.totalorder %v571, 1
        %vm644 = vcmp.ge.s32.totalorder %v572, 1
        %vm645 = vcmp.ge.s32.totalorder %v573, 1
        %vm646 = vcmp.ge.s32.totalorder %v574, 1
        %vm647 = vcmp.ge.s32.totalorder %v575, 1
        %vm648 = vcmp.ge.s32.totalorder %v576, 1
        %vm649 = vcmp.ge.s32.totalorder %v577, 1
        %vm650 = vcmp.ge.s32.totalorder %v578, 1
        %v651 = vsel %vm643, 1, 0
        %v652 = vsel %vm644, 1, 0
        %v653 = vsel %vm645, 1, 0
        %v654 = vsel %vm646, 1, 0
        %v655 = vsel %vm647, 1, 0
        %v656 = vsel %vm648, 1, 0
        %v657 = vsel %vm649, 1, 0
        %v658 = vsel %vm650, 1, 0
        %v659 = vcvt.s32.f32 %v651
        %v660 = vcvt.s32.f32 %v652
        %v661 = vcvt.s32.f32 %v653
        %v662 = vcvt.s32.f32 %v654
        %v663 = vcvt.s32.f32 %v655
        %v664 = vcvt.s32.f32 %v656
        %v665 = vcvt.s32.f32 %v657
        %v666 = vcvt.s32.f32 %v658
        %vm667 = vcmp.le.s32.totalorder %v571, 6
        %vm668 = vcmp.le.s32.totalorder %v572, 6
        %vm669 = vcmp.le.s32.totalorder %v573, 6
        %vm670 = vcmp.le.s32.totalorder %v574, 6
        %vm671 = vcmp.le.s32.totalorder %v575, 6
        %vm672 = vcmp.le.s32.totalorder %v576, 6
        %vm673 = vcmp.le.s32.totalorder %v577, 6
        %vm674 = vcmp.le.s32.totalorder %v578, 6
        %v675 = vsel %vm667, 1, 0
        %v676 = vsel %vm668, 1, 0
        %v677 = vsel %vm669, 1, 0
        %v678 = vsel %vm670, 1, 0
        %v679 = vsel %vm671, 1, 0
        %v680 = vsel %vm672, 1, 0
        %v681 = vsel %vm673, 1, 0
        %v682 = vsel %vm674, 1, 0
        %v683 = vcvt.s32.f32 %v675
        %v684 = vcvt.s32.f32 %v676
        %v685 = vcvt.s32.f32 %v677
        %v686 = vcvt.s32.f32 %v678
        %v687 = vcvt.s32.f32 %v679
        %v688 = vcvt.s32.f32 %v680
        %v689 = vcvt.s32.f32 %v681
        %v690 = vcvt.s32.f32 %v682
        %v691 = vld [vmem:[%s4] sm:$0xff]
        %v692 = vld [vmem:[%s4 + $0x8] sm:$0xff]
        %v693 = vld [vmem:[%s4 + $0x10] sm:$0xff]
        %v694 = vld [vmem:[%s4 + $0x18] sm:$0xff]
        %v695 = vld [vmem:[%s4 + $0x20] sm:$0xff]
        %v696 = vld [vmem:[%s4 + $0x28] sm:$0xff]
        %v697 = vld [vmem:[%s4 + $0x30] sm:$0xff]
        %v698 = vld [vmem:[%s4 + $0x38] sm:$0xff]
        %v699 = vld [vmem:[%s5] sm:$0xff]
        %v700 = vld [vmem:[%s5 + $0x8] sm:$0xff]
        %v701 = vld [vmem:[%s5 + $0x10] sm:$0xff]
        %v702 = vld [vmem:[%s5 + $0x18] sm:$0xff]
        %v703 = vld [vmem:[%s2] sm:$0x1]
        %v704 = vld [vmem:[%s3] sm:$0x1]
        %vm705 = vcmask 523264
        %v706 = vsel %vm705, %v553, 0.0
        %v707 = vsel %vm705, %v554, 0.0
        %v708 = vadd.f32 %v706, %v707
        %v709 = vsel %vm705, %v555, 0.0
        %v710 = vadd.f32 %v708, %v709
        %v711 = vsel %vm705, %v556, 0.0
        %v712 = vadd.f32 %v710, %v711
        %v713 = vsel %vm705, %v557, 0.0
        %v714 = vadd.f32 %v712, %v713
        %v715 = vsel %vm705, %v558, 0.0
        %v716 = vadd.f32 %v714, %v715
        %v717 = vsel %vm705, %v559, 0.0
        %v718 = vadd.f32 %v716, %v717
        %v719 = vsel %vm705, %v560, 0.0
        %v720 = vadd.f32 %v718, %v719
        %v721 = vrot.slane %v720, 4
        %v722 = vadd.f32 %v720, %v721
        %v723 = vrot.slane %v722, 2
        %v724 = vadd.f32 %v722, %v723
        %v725 = vrot.slane %v724, 1
        %v726 = vadd.f32 %v724, %v725
        %v727 = vmul.f32 %v553, %v553
        %v728 = vmul.f32 %v554, %v554
        %v729 = vmul.f32 %v555, %v555
        %v730 = vmul.f32 %v556, %v556
        %v731 = vmul.f32 %v557, %v557
        %v732 = vmul.f32 %v558, %v558
        %v733 = vmul.f32 %v559, %v559
        %v734 = vmul.f32 %v560, %v560
        %v735 = vsel %vm705, %v727, 0.0
        %v736 = vsel %vm705, %v728, 0.0
        %v737 = vadd.f32 %v735, %v736
        %v738 = vsel %vm705, %v729, 0.0
        %v739 = vadd.f32 %v737, %v738
        %v740 = vsel %vm705, %v730, 0.0
        %v741 = vadd.f32 %v739, %v740
        %v742 = vsel %vm705, %v731, 0.0
        %v743 = vadd.f32 %v741, %v742
        %v744 = vsel %vm705, %v732, 0.0
        %v745 = vadd.f32 %v743, %v744
        %v746 = vsel %vm705, %v733, 0.0
        %v747 = vadd.f32 %v745, %v746
        %v748 = vsel %vm705, %v734, 0.0
        %v749 = vadd.f32 %v747, %v748
        %v750 = vrot.slane %v749, 4
        %v751 = vadd.f32 %v749, %v750
        %v752 = vrot.slane %v751, 2
        %v753 = vadd.f32 %v751, %v752
        %v754 = vrot.slane %v753, 1
        %v755 = vadd.f32 %v753, %v754
        %v757 = vsel %vm705, %v726, 0
        %759 = vmatprep.subr.mxu0 0.0
        %760 = vmatpush1.msra.mxu0 %v691
        %761 = vmatprep.subr.mxu0 0.0
        %762 = vmatpush1.msra.mxu0 %v692
        %763 = vmatprep.subr.mxu0 0.0
        %764 = vmatpush1.msra.mxu0 %v693
        %765 = vmatprep.subr.mxu0 0.0
        %766 = vmatpush1.msra.mxu0 %v694
        %767 = vmatprep.subr.mxu0 0.0
        %768 = vmatpush1.msra.mxu0 %v695
        %769 = vmatprep.subr.mxu0 0.0
        %770 = vmatpush1.msra.mxu0 %v696
        %771 = vmatprep.subr.mxu0 0.0
        %772 = vmatpush1.msra.mxu0 %v697
        %773 = vmatprep.subr.mxu0 0.0
        %774 = vmatpush1.msra.mxu0 %v698
        %775 = vmatprep.subr.mxu0 0.0
        %776 = vmatpush1.msra.mxu0 0.0
        %777 = vmatprep.subr.mxu0 0.0
        %778 = vmatpush1.msra.mxu0 0.0
        %779 = vmatprep.subr.mxu0 0.0
        %780 = vmatpush1.msra.mxu0 0.0
        %781 = vmatprep.subr.mxu0 0.0
        %782 = vmatpush1.msra.mxu0 0.0
        %783 = vmatprep.subr.mxu0 0.0
        %784 = vmatpush1.msra.mxu0 0.0
        %785 = vmatprep.subr.mxu0 0.0
        %786 = vmatpush1.msra.mxu0 0.0
        %787 = vmatprep.subr.mxu0 0.0
        %788 = vmatpush1.msra.mxu0 0.0
        %789 = vmatprep.subr.mxu0 0.0
        %790 = vmatpush1.msra.mxu0 0.0
        %791 = vmatprep.subr.mxu0 0.0
        %792 = vmatpush1.msra.mxu0 0.0
        %793 = vmatprep.subr.mxu0 0.0
        %794 = vmatpush1.msra.mxu0 0.0
        %795 = vmatprep.subr.mxu0 0.0
        %796 = vmatpush1.msra.mxu0 0.0
        %797 = vmatprep.subr.mxu0 0.0
        %798 = vmatpush1.msra.mxu0 0.0
        %799 = vmatprep.subr.mxu0 0.0
        %800 = vmatpush1.msra.mxu0 0.0
        %801 = vmatprep.subr.mxu0 0.0
        %802 = vmatpush1.msra.mxu0 0.0
        %803 = vmatprep.subr.mxu0 0.0
        %804 = vmatpush1.msra.mxu0 0.0
        %805 = vmatprep.subr.mxu0 0.0
        %806 = vmatpush1.msra.mxu0 0.0
        %807 = vmatprep.subr.mxu0 0.0
        %808 = vmatpush1.msra.mxu0 0.0
        %809 = vmatprep.subr.mxu0 0.0
        %810 = vmatpush1.msra.mxu0 0.0
        %811 = vmatprep.subr.mxu0 0.0
        %812 = vmatpush1.msra.mxu0 0.0
        %813 = vmatprep.subr.mxu0 0.0
        %814 = vmatpush1.msra.mxu0 0.0
        %815 = vmatprep.subr.mxu0 0.0
        %816 = vmatpush1.msra.mxu0 0.0
        %817 = vmatprep.subr.mxu0 0.0
        %818 = vmatpush1.msra.mxu0 0.0
        %819 = vmatprep.subr.mxu0 0.0
        %820 = vmatpush1.msra.mxu0 0.0
        %821 = vmatprep.subr.mxu0 0.0
        %822 = vmatpush1.msra.mxu0 0.0
        %823 = vmatprep.mubr.f32.mxu0 0.0
        %824 = vmatmul.mubr.f32.gmra.mrb[0].mxu0 %v757
        %v825 = vpop.f32.mrb[0].mxu0
        %v826 = vadd.f32 0.0, %v825
        %v827 = vpop.f32.mrb[0].mxu0
        %828 = vdwg.mxu0
        %v829 = vmul.f32 %v826, 0.0078125
        %v831 = vsel %vm705, %v755, 0
        %833 = vmatprep.subr.mxu0 0.0
        %834 = vmatpush1.msra.mxu0 %v691
        %835 = vmatprep.subr.mxu0 0.0
        %836 = vmatpush1.msra.mxu0 %v692
        %837 = vmatprep.subr.mxu0 0.0
        %838 = vmatpush1.msra.mxu0 %v693
        %839 = vmatprep.subr.mxu0 0.0
        %840 = vmatpush1.msra.mxu0 %v694
        %841 = vmatprep.subr.mxu0 0.0
        %842 = vmatpush1.msra.mxu0 %v695
        %843 = vmatprep.subr.mxu0 0.0
        %844 = vmatpush1.msra.mxu0 %v696
        %845 = vmatprep.subr.mxu0 0.0
        %846 = vmatpush1.msra.mxu0 %v697
        %847 = vmatprep.subr.mxu0 0.0
        %848 = vmatpush1.msra.mxu0 %v698
        %849 = vmatprep.subr.mxu0 0.0
        %850 = vmatpush1.msra.mxu0 0.0
        %851 = vmatprep.subr.mxu0 0.0
        %852 = vmatpush1.msra.mxu0 0.0
        %853 = vmatprep.subr.mxu0 0.0
        %854 = vmatpush1.msra.mxu0 0.0
        %855 = vmatprep.subr.mxu0 0.0
        %856 = vmatpush1.msra.mxu0 0.0
        %857 = vmatprep.subr.mxu0 0.0
        %858 = vmatpush1.msra.mxu0 0.0
        %859 = vmatprep.subr.mxu0 0.0
        %860 = vmatpush1.msra.mxu0 0.0
        %861 = vmatprep.subr.mxu0 0.0
        %862 = vmatpush1.msra.mxu0 0.0
        %863 = vmatprep.subr.mxu0 0.0
        %864 = vmatpush1.msra.mxu0 0.0
        %865 = vmatprep.subr.mxu0 0.0
        %866 = vmatpush1.msra.mxu0 0.0
        %867 = vmatprep.subr.mxu0 0.0
        %868 = vmatpush1.msra.mxu0 0.0
        %869 = vmatprep.subr.mxu0 0.0
        %870 = vmatpush1.msra.mxu0 0.0
        %871 = vmatprep.subr.mxu0 0.0
        %872 = vmatpush1.msra.mxu0 0.0
        %873 = vmatprep.subr.mxu0 0.0
        %874 = vmatpush1.msra.mxu0 0.0
        %875 = vmatprep.subr.mxu0 0.0
        %876 = vmatpush1.msra.mxu0 0.0
        %877 = vmatprep.subr.mxu0 0.0
        %878 = vmatpush1.msra.mxu0 0.0
        %879 = vmatprep.subr.mxu0 0.0
        %880 = vmatpush1.msra.mxu0 0.0
        %881 = vmatprep.subr.mxu0 0.0
        %882 = vmatpush1.msra.mxu0 0.0
        %883 = vmatprep.subr.mxu0 0.0
        %884 = vmatpush1.msra.mxu0 0.0
        %885 = vmatprep.subr.mxu0 0.0
        %886 = vmatpush1.msra.mxu0 0.0
        %887 = vmatprep.subr.mxu0 0.0
        %888 = vmatpush1.msra.mxu0 0.0
        %889 = vmatprep.subr.mxu0 0.0
        %890 = vmatpush1.msra.mxu0 0.0
        %891 = vmatprep.subr.mxu0 0.0
        %892 = vmatpush1.msra.mxu0 0.0
        %893 = vmatprep.subr.mxu0 0.0
        %894 = vmatpush1.msra.mxu0 0.0
        %895 = vmatprep.subr.mxu0 0.0
        %896 = vmatpush1.msra.mxu0 0.0
        %897 = vmatprep.mubr.f32.mxu0 0.0
        %898 = vmatmul.mubr.f32.gmra.mrb[0].mxu0 %v831
        %v899 = vpop.f32.mrb[0].mxu0
        %v900 = vadd.f32 0.0, %v899
        %v901 = vpop.f32.mrb[0].mxu0
        %902 = vdwg.mxu0
        %v903 = vmul.f32 %v900, 0.0078125
        %v904 = vmul.f32 %v829, %v829
        %v905 = vsub.f32 %v903, %v904
        %v906 = vmax.f32 %v905, 0.0
        %vm907 = vcmask 261120
        %v909 = vsel %vm907, %v829, 0
        %911 = vmatprep.subr.mxu0 0.0
        %912 = vmatpush1.msra.mxu0 %v699
        %913 = vmatprep.subr.mxu0 0.0
        %914 = vmatpush1.msra.mxu0 %v700
        %915 = vmatprep.subr.mxu0 0.0
        %916 = vmatpush1.msra.mxu0 %v701
        %917 = vmatprep.subr.mxu0 0.0
        %918 = vmatpush1.msra.mxu0 %v702
        %919 = vmatprep.subr.mxu0 0.0
        %920 = vmatpush1.msra.mxu0 0.0
        %921 = vmatprep.subr.mxu0 0.0
        %922 = vmatpush1.msra.mxu0 0.0
        %923 = vmatprep.subr.mxu0 0.0
        %924 = vmatpush1.msra.mxu0 0.0
        %925 = vmatprep.subr.mxu0 0.0
        %926 = vmatpush1.msra.mxu0 0.0
        %927 = vmatprep.subr.mxu0 0.0
        %928 = vmatpush1.msra.mxu0 0.0
        %929 = vmatprep.subr.mxu0 0.0
        %930 = vmatpush1.msra.mxu0 0.0
        %931 = vmatprep.subr.mxu0 0.0
        %932 = vmatpush1.msra.mxu0 0.0
        %933 = vmatprep.subr.mxu0 0.0
        %934 = vmatpush1.msra.mxu0 0.0
        %935 = vmatprep.subr.mxu0 0.0
        %936 = vmatpush1.msra.mxu0 0.0
        %937 = vmatprep.subr.mxu0 0.0
        %938 = vmatpush1.msra.mxu0 0.0
        %939 = vmatprep.subr.mxu0 0.0
        %940 = vmatpush1.msra.mxu0 0.0
        %941 = vmatprep.subr.mxu0 0.0
        %942 = vmatpush1.msra.mxu0 0.0
        %943 = vmatprep.subr.mxu0 0.0
        %944 = vmatpush1.msra.mxu0 0.0
        %945 = vmatprep.subr.mxu0 0.0
        %946 = vmatpush1.msra.mxu0 0.0
        %947 = vmatprep.subr.mxu0 0.0
        %948 = vmatpush1.msra.mxu0 0.0
        %949 = vmatprep.subr.mxu0 0.0
        %950 = vmatpush1.msra.mxu0 0.0
        %951 = vmatprep.subr.mxu0 0.0
        %952 = vmatpush1.msra.mxu0 0.0
        %953 = vmatprep.subr.mxu0 0.0
        %954 = vmatpush1.msra.mxu0 0.0
        %955 = vmatprep.subr.mxu0 0.0
        %956 = vmatpush1.msra.mxu0 0.0
        %957 = vmatprep.subr.mxu0 0.0
        %958 = vmatpush1.msra.mxu0 0.0
        %959 = vmatprep.subr.mxu0 0.0
        %960 = vmatpush1.msra.mxu0 0.0
        %961 = vmatprep.subr.mxu0 0.0
        %962 = vmatpush1.msra.mxu0 0.0
        %963 = vmatprep.subr.mxu0 0.0
        %964 = vmatpush1.msra.mxu0 0.0
        %965 = vmatprep.subr.mxu0 0.0
        %966 = vmatpush1.msra.mxu0 0.0
        %967 = vmatprep.subr.mxu0 0.0
        %968 = vmatpush1.msra.mxu0 0.0
        %969 = vmatprep.subr.mxu0 0.0
        %970 = vmatpush1.msra.mxu0 0.0
        %971 = vmatprep.subr.mxu0 0.0
        %972 = vmatpush1.msra.mxu0 0.0
        %973 = vmatprep.subr.mxu0 0.0
        %974 = vmatpush1.msra.mxu0 0.0
        %975 = vmatprep.mubr.f32.mxu0 0.0
        %976 = vmatmul.mubr.f32.gmra.mrb[0].mxu0 %v909
        %v977 = vpop.f32.mrb[0].mxu0
        %v978 = vadd.f32 0.0, %v977
        %v979 = vpop.f32.mrb[0].mxu0
        %980 = vdwg.mxu0
        %v982 = vsel %vm907, %v906, 0
        %984 = vmatprep.subr.mxu0 0.0
        %985 = vmatpush1.msra.mxu0 %v699
        %986 = vmatprep.subr.mxu0 0.0
        %987 = vmatpush1.msra.mxu0 %v700
        %988 = vmatprep.subr.mxu0 0.0
        %989 = vmatpush1.msra.mxu0 %v701
        %990 = vmatprep.subr.mxu0 0.0
        %991 = vmatpush1.msra.mxu0 %v702
        %992 = vmatprep.subr.mxu0 0.0
        %993 = vmatpush1.msra.mxu0 0.0
        %994 = vmatprep.subr.mxu0 0.0
        %995 = vmatpush1.msra.mxu0 0.0
        %996 = vmatprep.subr.mxu0 0.0
        %997 = vmatpush1.msra.mxu0 0.0
        %998 = vmatprep.subr.mxu0 0.0
        %999 = vmatpush1.msra.mxu0 0.0
        %1000 = vmatprep.subr.mxu0 0.0
        %1001 = vmatpush1.msra.mxu0 0.0
        %1002 = vmatprep.subr.mxu0 0.0
        %1003 = vmatpush1.msra.mxu0 0.0
        %1004 = vmatprep.subr.mxu0 0.0
        %1005 = vmatpush1.msra.mxu0 0.0
        %1006 = vmatprep.subr.mxu0 0.0
        %1007 = vmatpush1.msra.mxu0 0.0
        %1008 = vmatprep.subr.mxu0 0.0
        %1009 = vmatpush1.msra.mxu0 0.0
        %1010 = vmatprep.subr.mxu0 0.0
        %1011 = vmatpush1.msra.mxu0 0.0
        %1012 = vmatprep.subr.mxu0 0.0
        %1013 = vmatpush1.msra.mxu0 0.0
        %1014 = vmatprep.subr.mxu0 0.0
        %1015 = vmatpush1.msra.mxu0 0.0
        %1016 = vmatprep.subr.mxu0 0.0
        %1017 = vmatpush1.msra.mxu0 0.0
        %1018 = vmatprep.subr.mxu0 0.0
        %1019 = vmatpush1.msra.mxu0 0.0
        %1020 = vmatprep.subr.mxu0 0.0
        %1021 = vmatpush1.msra.mxu0 0.0
        %1022 = vmatprep.subr.mxu0 0.0
        %1023 = vmatpush1.msra.mxu0 0.0
        %1024 = vmatprep.subr.mxu0 0.0
        %1025 = vmatpush1.msra.mxu0 0.0
        %1026 = vmatprep.subr.mxu0 0.0
        %1027 = vmatpush1.msra.mxu0 0.0
        %1028 = vmatprep.subr.mxu0 0.0
        %1029 = vmatpush1.msra.mxu0 0.0
        %1030 = vmatprep.subr.mxu0 0.0
        %1031 = vmatpush1.msra.mxu0 0.0
        %1032 = vmatprep.subr.mxu0 0.0
        %1033 = vmatpush1.msra.mxu0 0.0
        %1034 = vmatprep.subr.mxu0 0.0
        %1035 = vmatpush1.msra.mxu0 0.0
        %1036 = vmatprep.subr.mxu0 0.0
        %1037 = vmatpush1.msra.mxu0 0.0
        %1038 = vmatprep.subr.mxu0 0.0
        %1039 = vmatpush1.msra.mxu0 0.0
        %1040 = vmatprep.subr.mxu0 0.0
        %1041 = vmatpush1.msra.mxu0 0.0
        %1042 = vmatprep.subr.mxu0 0.0
        %1043 = vmatpush1.msra.mxu0 0.0
        %1044 = vmatprep.subr.mxu0 0.0
        %1045 = vmatpush1.msra.mxu0 0.0
        %1046 = vmatprep.subr.mxu0 0.0
        %1047 = vmatpush1.msra.mxu0 0.0
        %1048 = vmatprep.mubr.f32.mxu0 0.0
        %1049 = vmatmul.mubr.f32.gmra.mrb[0].mxu0 %v982
        %v1050 = vpop.f32.mrb[0].mxu0
        %v1051 = vadd.f32 1e-06, %v1050
        %v1052 = vpop.f32.mrb[0].mxu0
        %1053 = vdwg.mxu0
        %v1054 = vrsqrt.pop %v1051
        %v1055 = vmul.f32 %v1054, %v703
        %v1056 = vmul.f32 %v978, %v1055
        %v1057 = vsub.f32 %v704, %v1056
        %v1058 = vlaneseq
        %v1059 = vshrl.u32 %v1058, 7
        %v1060 = vsub.s32 0, %v1059
        %v1061 = vrot.slane %v1055, %v1060
        %v1062 = vmul.f32 %v553, %v1061
        %v1063 = vmul.f32 %v554, %v1061
        %v1064 = vmul.f32 %v555, %v1061
        %v1065 = vmul.f32 %v556, %v1061
        %v1066 = vmul.f32 %v557, %v1061
        %v1067 = vmul.f32 %v558, %v1061
        %v1068 = vmul.f32 %v559, %v1061
        %v1069 = vmul.f32 %v560, %v1061
        %v1071 = vlaneseq
        %v1072 = vshrl.u32 %v1071, 7
        %v1073 = vsub.s32 0, %v1072
        %v1074 = vrot.slane %v1057, %v1073
        %v1076 = vadd.f32 %v1062, %v1074
        %v1077 = vadd.f32 %v1063, %v1074
        %v1078 = vadd.f32 %v1064, %v1074
        %v1079 = vadd.f32 %v1065, %v1074
        %v1080 = vadd.f32 %v1066, %v1074
        %v1081 = vadd.f32 %v1067, %v1074
        %v1082 = vadd.f32 %v1068, %v1074
        %v1083 = vadd.f32 %v1069, %v1074
        %v1084 = vsub.f32 0.0, %v1076
        %v1085 = vsub.f32 0.0, %v1077
        %v1086 = vsub.f32 0.0, %v1078
        %v1087 = vsub.f32 0.0, %v1079
        %v1088 = vsub.f32 0.0, %v1080
        %v1089 = vsub.f32 0.0, %v1081
        %v1090 = vsub.f32 0.0, %v1082
        %v1091 = vsub.f32 0.0, %v1083
        %v1092 = vmul.f32 %v1084, 1.442695
        %v1093 = vpow.pop %v1092
        %v1094 = vmul.f32 %v1085, 1.442695
        %v1095 = vpow.pop %v1094
        %v1096 = vmul.f32 %v1086, 1.442695
        %v1097 = vpow.pop %v1096
        %v1098 = vmul.f32 %v1087, 1.442695
        %v1099 = vpow.pop %v1098
        %v1100 = vmul.f32 %v1088, 1.442695
        %v1101 = vpow.pop %v1100
        %v1102 = vmul.f32 %v1089, 1.442695
        %v1103 = vpow.pop %v1102
        %v1104 = vmul.f32 %v1090, 1.442695
        %v1105 = vpow.pop %v1104
        %v1106 = vmul.f32 %v1091, 1.442695
        %v1107 = vpow.pop %v1106
        %v1108 = vadd.f32 %v1093, 1.0
        %v1109 = vadd.f32 %v1095, 1.0
        %v1110 = vadd.f32 %v1097, 1.0
        %v1111 = vadd.f32 %v1099, 1.0
        %v1112 = vadd.f32 %v1101, 1.0
        %v1113 = vadd.f32 %v1103, 1.0
        %v1114 = vadd.f32 %v1105, 1.0
        %v1115 = vadd.f32 %v1107, 1.0
        %v1116 = vrcp.pop %v1108
        %v1117 = vrcp.pop %v1109
        %v1118 = vrcp.pop %v1110
        %v1119 = vrcp.pop %v1111
        %v1120 = vrcp.pop %v1112
        %v1121 = vrcp.pop %v1113
        %v1122 = vrcp.pop %v1114
        %v1123 = vrcp.pop %v1115
        %v1124 = vmul.f32 %v1076, %v1116
        %v1125 = vmul.f32 %v1077, %v1117
        %v1126 = vmul.f32 %v1078, %v1118
        %v1127 = vmul.f32 %v1079, %v1119
        %v1128 = vmul.f32 %v1080, %v1120
        %v1129 = vmul.f32 %v1081, %v1121
        %v1130 = vmul.f32 %v1082, %v1122
        %v1131 = vmul.f32 %v1083, %v1123
        %v1132 = vld [vmem:[%s7] sm:$0x1]
        %v1133 = vmul.f32 %v1131, %v611
        %v1134 = vmul.f32 %v1124, %v612
        %v1135 = vmul.f32 %v1125, %v613
        %v1136 = vmul.f32 %v1126, %v614
        %v1137 = vmul.f32 %v1127, %v615
        %v1138 = vmul.f32 %v1128, %v616
        %v1139 = vmul.f32 %v1129, %v617
        %v1140 = vmul.f32 %v1130, %v618
        %v1141 = vrot.slane %v1133, 7
        %v1142 = vrot.slane %v1134, 7
        %v1143 = vrot.slane %v1135, 7
        %v1144 = vrot.slane %v1136, 7
        %v1145 = vrot.slane %v1137, 7
        %v1146 = vrot.slane %v1138, 7
        %v1147 = vrot.slane %v1139, 7
        %v1148 = vrot.slane %v1140, 7
        %vm1149 = vcmp.lt.s32.totalorder %v563, 1
        %v1150 = vsel %vm1149, %v1147, %v1148
        %v1151 = vsel %vm1149, %v1146, %v1147
        %v1152 = vsel %vm1149, %v1145, %v1146
        %v1153 = vsel %vm1149, %v1144, %v1145
        %v1154 = vsel %vm1149, %v1143, %v1144
        %v1155 = vsel %vm1149, %v1142, %v1143
        %v1156 = vsel %vm1149, %v1141, %v1142
        %v1157 = vsel %vm1149, %v1148, %v1141
        %v1158 = vmul.f32 %v1157, %v659
        %v1159 = vmul.f32 %v1156, %v660
        %v1160 = vmul.f32 %v1155, %v661
        %v1161 = vmul.f32 %v1154, %v662
        %v1162 = vmul.f32 %v1153, %v663
        %v1163 = vmul.f32 %v1152, %v664
        %v1164 = vmul.f32 %v1151, %v665
        %v1165 = vmul.f32 %v1150, %v666
        %v1166 = vpack.c.bf16 %v1159, %v1158
        %v1167 = vpack.c.bf16 %v1161, %v1160
        %v1168 = vpack.c.bf16 %v1163, %v1162
        %v1169 = vpack.c.bf16 %v1165, %v1164
        %v1170 = vpack.c.bf16 %v1134, %v1133
        %v1171 = vpack.c.bf16 %v1136, %v1135
        %v1172 = vpack.c.bf16 %v1138, %v1137
        %v1173 = vpack.c.bf16 %v1140, %v1139
        %v1174 = vrot.slane %v1133, 1
        %v1175 = vrot.slane %v1134, 1
        %v1176 = vrot.slane %v1135, 1
        %v1177 = vrot.slane %v1136, 1
        %v1178 = vrot.slane %v1137, 1
        %v1179 = vrot.slane %v1138, 1
        %v1180 = vrot.slane %v1139, 1
        %v1181 = vrot.slane %v1140, 1
        %vm1182 = vcmp.lt.s32.totalorder %v563, 7
        %v1183 = vsel %vm1182, %v1180, %v1181
        %v1184 = vsel %vm1182, %v1179, %v1180
        %v1185 = vsel %vm1182, %v1178, %v1179
        %v1186 = vsel %vm1182, %v1177, %v1178
        %v1187 = vsel %vm1182, %v1176, %v1177
        %v1188 = vsel %vm1182, %v1175, %v1176
        %v1189 = vsel %vm1182, %v1174, %v1175
        %v1190 = vsel %vm1182, %v1181, %v1174
        %v1191 = vmul.f32 %v1189, %v683
        %v1192 = vmul.f32 %v1188, %v684
        %v1193 = vmul.f32 %v1187, %v685
        %v1194 = vmul.f32 %v1186, %v686
        %v1195 = vmul.f32 %v1185, %v687
        %v1196 = vmul.f32 %v1184, %v688
        %v1197 = vmul.f32 %v1183, %v689
        %v1198 = vmul.f32 %v1190, %v690
        %v1199 = vpack.c.bf16 %v1192, %v1191
        %v1200 = vpack.c.bf16 %v1194, %v1193
        %v1201 = vpack.c.bf16 %v1196, %v1195
        %v1202 = vpack.c.bf16 %v1198, %v1197
        %v1203 = vld [vmem:[%s6] sm:$0xf]
        %v1204 = vld [vmem:[%s6 + $0x4] sm:$0xf]
        %v1205 = vld [vmem:[%s6 + $0x8] sm:$0xf]
        %v1206 = vld [vmem:[%s6 + $0xc] sm:$0xf]
        %v1207 = vld [vmem:[%s6 + $0x10] sm:$0xf]
        %v1208 = vld [vmem:[%s6 + $0x14] sm:$0xf]
        %v1209 = vld [vmem:[%s6 + $0x18] sm:$0xf]
        %v1210 = vld [vmem:[%s6 + $0x1c] sm:$0xf]
        %v1211 = vld [vmem:[%s6 + $0x20] sm:$0xf]
        %v1212 = vld [vmem:[%s6 + $0x24] sm:$0xf]
        %v1213 = vld [vmem:[%s6 + $0x28] sm:$0xf]
        %v1214 = vld [vmem:[%s6 + $0x2c] sm:$0xf]
        %v1215 = vld [vmem:[%s6 + $0x30] sm:$0xf]
        %v1216 = vld [vmem:[%s6 + $0x34] sm:$0xf]
        %v1217 = vld [vmem:[%s6 + $0x38] sm:$0xf]
        %v1218 = vld [vmem:[%s6 + $0x3c] sm:$0xf]
        %v1219 = vld [vmem:[%s6 + $0x40] sm:$0xf]
        %v1220 = vld [vmem:[%s6 + $0x44] sm:$0xf]
        %v1221 = vld [vmem:[%s6 + $0x48] sm:$0xf]
        %v1222 = vld [vmem:[%s6 + $0x4c] sm:$0xf]
        %v1223 = vld [vmem:[%s6 + $0x50] sm:$0xf]
        %v1224 = vld [vmem:[%s6 + $0x54] sm:$0xf]
        %v1225 = vld [vmem:[%s6 + $0x58] sm:$0xf]
        %v1226 = vld [vmem:[%s6 + $0x5c] sm:$0xf]
        %v1235 = vunpack.c.l.b16 %v1211
        %v1236 = vunpack.c.l.b16 %v1212
        %v1237 = vunpack.c.l.b16 %v1213
        %v1238 = vunpack.c.l.b16 %v1214
        %v1239 = vunpack.c.l.b16 %v1215
        %v1240 = vunpack.c.l.b16 %v1216
        %v1241 = vunpack.c.l.b16 %v1217
        %v1242 = vunpack.c.l.b16 %v1218
        %v1243 = vpack.c.b16 %v1236, %v1235
        %v1244 = vpack.c.b16 %v1238, %v1237
        %v1245 = vpack.c.b16 %v1240, %v1239
        %v1246 = vpack.c.b16 %v1242, %v1241
        %v1252 = vsel %vm705, %v1170, 0
        %v1255 = vsel %vm705, %v1171, 0
        %v1258 = vsel %vm705, %v1172, 0
        %v1261 = vsel %vm705, %v1173, 0
        %1263 = vmatprep.subr.bf16.mxu0 0
        %1264 = vmatpush1.bf16.msra.mxu0 %v1243
        %1265 = vmatprep.subr.bf16.mxu0 0
        %1266 = vmatpush1.bf16.msra.mxu0 %v1244
        %1267 = vmatprep.subr.bf16.mxu0 0
        %1268 = vmatpush1.bf16.msra.mxu0 %v1245
        %1269 = vmatprep.subr.bf16.mxu0 0
        %1270 = vmatpush1.bf16.msra.mxu0 %v1246
        %1271 = vmatprep.subr.bf16.mxu0 0
        %1272 = vmatpush1.bf16.msra.mxu0 0
        %1273 = vmatprep.subr.bf16.mxu0 0
        %1274 = vmatpush1.bf16.msra.mxu0 0
        %1275 = vmatprep.subr.bf16.mxu0 0
        %1276 = vmatpush1.bf16.msra.mxu0 0
        %1277 = vmatprep.subr.bf16.mxu0 0
        %1278 = vmatpush1.bf16.msra.mxu0 0
        %1279 = vmatprep.subr.bf16.mxu0 0
        %1280 = vmatpush1.bf16.msra.mxu0 0
        %1281 = vmatprep.subr.bf16.mxu0 0
        %1282 = vmatpush1.bf16.msra.mxu0 0
        %1283 = vmatprep.subr.bf16.mxu0 0
        %1284 = vmatpush1.bf16.msra.mxu0 0
        %1285 = vmatprep.subr.bf16.mxu0 0
        %1286 = vmatpush1.bf16.msra.mxu0 0
        %1287 = vmatprep.subr.bf16.mxu0 0
        %1288 = vmatpush1.bf16.msra.mxu0 0
        %1289 = vmatprep.subr.bf16.mxu0 0
        %1290 = vmatpush1.bf16.msra.mxu0 0
        %1291 = vmatprep.subr.bf16.mxu0 0
        %1292 = vmatpush1.bf16.msra.mxu0 0
        %1293 = vmatprep.subr.bf16.mxu0 0
        %1294 = vmatpush1.bf16.msra.mxu0 0
        %1295 = vmatprep.mubr.bf16.mxu0 0
        %1296 = vmatmul.mubr.bf16.gmra.mrb[0].mxu0 %v1252
        %v1297 = vpop.f32.mrb[0].mxu0
        %v1298 = vadd.f32 0.0, %v1297
        %v1299 = vpop.f32.mrb[0].mxu0
        %v1300 = vpop.f32.mrb[0].mxu0
        %v1301 = vadd.f32 0.0, %v1300
        %v1302 = vpop.f32.mrb[0].mxu0
        %1303 = vmatprep.mubr.bf16.mxu0 0
        %1304 = vmatmul.mubr.bf16.gmra.mrb[0].mxu0 %v1255
        %v1305 = vpop.f32.mrb[0].mxu0
        %v1306 = vadd.f32 0.0, %v1305
        %v1307 = vpop.f32.mrb[0].mxu0
        %v1308 = vpop.f32.mrb[0].mxu0
        %v1309 = vadd.f32 0.0, %v1308
        %v1310 = vpop.f32.mrb[0].mxu0
        %1311 = vmatprep.mubr.bf16.mxu0 0
        %1312 = vmatmul.mubr.bf16.gmra.mrb[0].mxu0 %v1258
        %v1313 = vpop.f32.mrb[0].mxu0
        %v1314 = vadd.f32 0.0, %v1313
        %v1315 = vpop.f32.mrb[0].mxu0
        %v1316 = vpop.f32.mrb[0].mxu0
        %v1317 = vadd.f32 0.0, %v1316
        %v1318 = vpop.f32.mrb[0].mxu0
        %1319 = vmatprep.mubr.bf16.mxu0 0
        %1320 = vmatmul.mubr.bf16.gmra.mrb[0].mxu0 %v1261
        %v1321 = vpop.f32.mrb[0].mxu0
        %v1322 = vadd.f32 0.0, %v1321
        %v1323 = vpop.f32.mrb[0].mxu0
        %v1324 = vpop.f32.mrb[0].mxu0
        %v1325 = vadd.f32 0.0, %v1324
        %v1326 = vpop.f32.mrb[0].mxu0
        %1327 = vdwg.mxu0
        %v1336 = vunpack.c.l.b16 %v1203
        %v1337 = vunpack.c.l.b16 %v1204
        %v1338 = vunpack.c.l.b16 %v1205
        %v1339 = vunpack.c.l.b16 %v1206
        %v1340 = vunpack.c.l.b16 %v1207
        %v1341 = vunpack.c.l.b16 %v1208
        %v1342 = vunpack.c.l.b16 %v1209
        %v1343 = vunpack.c.l.b16 %v1210
        %v1344 = vpack.c.b16 %v1337, %v1336
        %v1345 = vpack.c.b16 %v1339, %v1338
        %v1346 = vpack.c.b16 %v1341, %v1340
        %v1347 = vpack.c.b16 %v1343, %v1342
        %v1353 = vsel %vm705, %v1166, 0
        %v1356 = vsel %vm705, %v1167, 0
        %v1359 = vsel %vm705, %v1168, 0
        %v1362 = vsel %vm705, %v1169, 0
        %1364 = vmatprep.subr.bf16.mxu0 0
        %1365 = vmatpush1.bf16.msra.mxu0 %v1344
        %1366 = vmatprep.subr.bf16.mxu0 0
        %1367 = vmatpush1.bf16.msra.mxu0 %v1345
        %1368 = vmatprep.subr.bf16.mxu0 0
        %1369 = vmatpush1.bf16.msra.mxu0 %v1346
        %1370 = vmatprep.subr.bf16.mxu0 0
        %1371 = vmatpush1.bf16.msra.mxu0 %v1347
        %1372 = vmatprep.subr.bf16.mxu0 0
        %1373 = vmatpush1.bf16.msra.mxu0 0
        %1374 = vmatprep.subr.bf16.mxu0 0
        %1375 = vmatpush1.bf16.msra.mxu0 0
        %1376 = vmatprep.subr.bf16.mxu0 0
        %1377 = vmatpush1.bf16.msra.mxu0 0
        %1378 = vmatprep.subr.bf16.mxu0 0
        %1379 = vmatpush1.bf16.msra.mxu0 0
        %1380 = vmatprep.subr.bf16.mxu0 0
        %1381 = vmatpush1.bf16.msra.mxu0 0
        %1382 = vmatprep.subr.bf16.mxu0 0
        %1383 = vmatpush1.bf16.msra.mxu0 0
        %1384 = vmatprep.subr.bf16.mxu0 0
        %1385 = vmatpush1.bf16.msra.mxu0 0
        %1386 = vmatprep.subr.bf16.mxu0 0
        %1387 = vmatpush1.bf16.msra.mxu0 0
        %1388 = vmatprep.subr.bf16.mxu0 0
        %1389 = vmatpush1.bf16.msra.mxu0 0
        %1390 = vmatprep.subr.bf16.mxu0 0
        %1391 = vmatpush1.bf16.msra.mxu0 0
        %1392 = vmatprep.subr.bf16.mxu0 0
        %1393 = vmatpush1.bf16.msra.mxu0 0
        %1394 = vmatprep.subr.bf16.mxu0 0
        %1395 = vmatpush1.bf16.msra.mxu0 0
        %1396 = vmatprep.mubr.bf16.mxu0 0
        %1397 = vmatmul.mubr.bf16.gmra.mrb[0].mxu0 %v1353
        %v1398 = vpop.f32.mrb[0].mxu0
        %v1399 = vadd.f32 %v1298, %v1398
        %v1400 = vpop.f32.mrb[0].mxu0
        %v1401 = vpop.f32.mrb[0].mxu0
        %v1402 = vadd.f32 %v1301, %v1401
        %v1403 = vpop.f32.mrb[0].mxu0
        %1404 = vmatprep.mubr.bf16.mxu0 0
        %1405 = vmatmul.mubr.bf16.gmra.mrb[0].mxu0 %v1356
        %v1406 = vpop.f32.mrb[0].mxu0
        %v1407 = vadd.f32 %v1306, %v1406
        %v1408 = vpop.f32.mrb[0].mxu0
        %v1409 = vpop.f32.mrb[0].mxu0
        %v1410 = vadd.f32 %v1309, %v1409
        %v1411 = vpop.f32.mrb[0].mxu0
        %1412 = vmatprep.mubr.bf16.mxu0 0
        %1413 = vmatmul.mubr.bf16.gmra.mrb[0].mxu0 %v1359
        %v1414 = vpop.f32.mrb[0].mxu0
        %v1415 = vadd.f32 %v1314, %v1414
        %v1416 = vpop.f32.mrb[0].mxu0
        %v1417 = vpop.f32.mrb[0].mxu0
        %v1418 = vadd.f32 %v1317, %v1417
        %v1419 = vpop.f32.mrb[0].mxu0
        %1420 = vmatprep.mubr.bf16.mxu0 0
        %1421 = vmatmul.mubr.bf16.gmra.mrb[0].mxu0 %v1362
        %v1422 = vpop.f32.mrb[0].mxu0
        %v1423 = vadd.f32 %v1322, %v1422
        %v1424 = vpop.f32.mrb[0].mxu0
        %v1425 = vpop.f32.mrb[0].mxu0
        %v1426 = vadd.f32 %v1325, %v1425
        %v1427 = vpop.f32.mrb[0].mxu0
        %1428 = vdwg.mxu0
        %v1437 = vunpack.c.l.b16 %v1219
        %v1438 = vunpack.c.l.b16 %v1220
        %v1439 = vunpack.c.l.b16 %v1221
        %v1440 = vunpack.c.l.b16 %v1222
        %v1441 = vunpack.c.l.b16 %v1223
        %v1442 = vunpack.c.l.b16 %v1224
        %v1443 = vunpack.c.l.b16 %v1225
        %v1444 = vunpack.c.l.b16 %v1226
        %v1445 = vpack.c.b16 %v1438, %v1437
        %v1446 = vpack.c.b16 %v1440, %v1439
        %v1447 = vpack.c.b16 %v1442, %v1441
        %v1448 = vpack.c.b16 %v1444, %v1443
        %v1454 = vsel %vm705, %v1199, 0
        %v1457 = vsel %vm705, %v1200, 0
        %v1460 = vsel %vm705, %v1201, 0
        %v1463 = vsel %vm705, %v1202, 0
        %1465 = vmatprep.subr.bf16.mxu0 0
        %1466 = vmatpush1.bf16.msra.mxu0 %v1445
        %1467 = vmatprep.subr.bf16.mxu0 0
        %1468 = vmatpush1.bf16.msra.mxu0 %v1446
        %1469 = vmatprep.subr.bf16.mxu0 0
        %1470 = vmatpush1.bf16.msra.mxu0 %v1447
        %1471 = vmatprep.subr.bf16.mxu0 0
        %1472 = vmatpush1.bf16.msra.mxu0 %v1448
        %1473 = vmatprep.subr.bf16.mxu0 0
        %1474 = vmatpush1.bf16.msra.mxu0 0
        %1475 = vmatprep.subr.bf16.mxu0 0
        %1476 = vmatpush1.bf16.msra.mxu0 0
        %1477 = vmatprep.subr.bf16.mxu0 0
        %1478 = vmatpush1.bf16.msra.mxu0 0
        %1479 = vmatprep.subr.bf16.mxu0 0
        %1480 = vmatpush1.bf16.msra.mxu0 0
        %1481 = vmatprep.subr.bf16.mxu0 0
        %1482 = vmatpush1.bf16.msra.mxu0 0
        %1483 = vmatprep.subr.bf16.mxu0 0
        %1484 = vmatpush1.bf16.msra.mxu0 0
        %1485 = vmatprep.subr.bf16.mxu0 0
        %1486 = vmatpush1.bf16.msra.mxu0 0
        %1487 = vmatprep.subr.bf16.mxu0 0
        %1488 = vmatpush1.bf16.msra.mxu0 0
        %1489 = vmatprep.subr.bf16.mxu0 0
        %1490 = vmatpush1.bf16.msra.mxu0 0
        %1491 = vmatprep.subr.bf16.mxu0 0
        %1492 = vmatpush1.bf16.msra.mxu0 0
        %1493 = vmatprep.subr.bf16.mxu0 0
        %1494 = vmatpush1.bf16.msra.mxu0 0
        %1495 = vmatprep.subr.bf16.mxu0 0
        %1496 = vmatpush1.bf16.msra.mxu0 0
        %1497 = vmatprep.mubr.bf16.mxu0 0
        %1498 = vmatmul.mubr.bf16.gmra.mrb[0].mxu0 %v1454
        %v1499 = vpop.f32.mrb[0].mxu0
        %v1500 = vadd.f32 0.0, %v1499
        %v1501 = vpop.f32.mrb[0].mxu0
        %v1502 = vpop.f32.mrb[0].mxu0
        %v1503 = vadd.f32 0.0, %v1502
        %v1504 = vpop.f32.mrb[0].mxu0
        %1505 = vmatprep.mubr.bf16.mxu0 0
        %1506 = vmatmul.mubr.bf16.gmra.mrb[0].mxu0 %v1457
        %v1507 = vpop.f32.mrb[0].mxu0
        %v1508 = vadd.f32 0.0, %v1507
        %v1509 = vpop.f32.mrb[0].mxu0
        %v1510 = vpop.f32.mrb[0].mxu0
        %v1511 = vadd.f32 0.0, %v1510
        %v1512 = vpop.f32.mrb[0].mxu0
        %1513 = vmatprep.mubr.bf16.mxu0 0
        %1514 = vmatmul.mubr.bf16.gmra.mrb[0].mxu0 %v1460
        %v1515 = vpop.f32.mrb[0].mxu0
        %v1516 = vadd.f32 0.0, %v1515
        %v1517 = vpop.f32.mrb[0].mxu0
        %v1518 = vpop.f32.mrb[0].mxu0
        %v1519 = vadd.f32 0.0, %v1518
        %v1520 = vpop.f32.mrb[0].mxu0
        %1521 = vmatprep.mubr.bf16.mxu0 0
        %1522 = vmatmul.mubr.bf16.gmra.mrb[0].mxu0 %v1463
        %v1523 = vpop.f32.mrb[0].mxu0
        %v1524 = vadd.f32 0.0, %v1523
        %v1525 = vpop.f32.mrb[0].mxu0
        %v1526 = vpop.f32.mrb[0].mxu0
        %v1527 = vadd.f32 0.0, %v1526
        %v1528 = vpop.f32.mrb[0].mxu0
        %1529 = vdwg.mxu0
        %v1530 = vadd.f32 %v1399, %v1500
        %v1531 = vadd.f32 %v1402, %v1503
        %v1532 = vadd.f32 %v1407, %v1508
        %v1533 = vadd.f32 %v1410, %v1511
        %v1534 = vadd.f32 %v1415, %v1516
        %v1535 = vadd.f32 %v1418, %v1519
        %v1536 = vadd.f32 %v1423, %v1524
        %v1537 = vadd.f32 %v1426, %v1527
        %v1538 = vrot.slane %v1124, 7
        %v1539 = vrot.slane %v1125, 7
        %v1540 = vrot.slane %v1126, 7
        %v1541 = vrot.slane %v1127, 7
        %v1542 = vrot.slane %v1128, 7
        %v1543 = vrot.slane %v1129, 7
        %v1544 = vrot.slane %v1130, 7
        %v1545 = vrot.slane %v1131, 7
        %v1546 = vsel %vm1149, %v1544, %v1545
        %v1547 = vsel %vm1149, %v1543, %v1544
        %v1548 = vsel %vm1149, %v1542, %v1543
        %v1549 = vsel %vm1149, %v1541, %v1542
        %v1550 = vsel %vm1149, %v1540, %v1541
        %v1551 = vsel %vm1149, %v1539, %v1540
        %v1552 = vsel %vm1149, %v1538, %v1539
        %v1553 = vsel %vm1149, %v1545, %v1538
        %v1554 = vmul.f32 %v1553, %v659
        %v1555 = vmul.f32 %v1552, %v660
        %v1556 = vmul.f32 %v1551, %v661
        %v1557 = vmul.f32 %v1550, %v662
        %v1558 = vmul.f32 %v1549, %v663
        %v1559 = vmul.f32 %v1548, %v664
        %v1560 = vmul.f32 %v1547, %v665
        %v1561 = vmul.f32 %v1546, %v666
        %v1562 = vpack.c.bf16 %v1555, %v1554
        %v1563 = vpack.c.bf16 %v1557, %v1556
        %v1564 = vpack.c.bf16 %v1559, %v1558
        %v1565 = vpack.c.bf16 %v1561, %v1560
        %v1566 = vpack.c.bf16 %v1125, %v1124
        %v1567 = vpack.c.bf16 %v1127, %v1126
        %v1568 = vpack.c.bf16 %v1129, %v1128
        %v1569 = vpack.c.bf16 %v1131, %v1130
        %v1570 = vrot.slane %v1124, 1
        %v1571 = vrot.slane %v1125, 1
        %v1572 = vrot.slane %v1126, 1
        %v1573 = vrot.slane %v1127, 1
        %v1574 = vrot.slane %v1128, 1
        %v1575 = vrot.slane %v1129, 1
        %v1576 = vrot.slane %v1130, 1
        %v1577 = vrot.slane %v1131, 1
        %v1578 = vsel %vm1182, %v1576, %v1577
        %v1579 = vsel %vm1182, %v1575, %v1576
        %v1580 = vsel %vm1182, %v1574, %v1575
        %v1581 = vsel %vm1182, %v1573, %v1574
        %v1582 = vsel %vm1182, %v1572, %v1573
        %v1583 = vsel %vm1182, %v1571, %v1572
        %v1584 = vsel %vm1182, %v1570, %v1571
        %v1585 = vsel %vm1182, %v1577, %v1570
        %v1586 = vmul.f32 %v1584, %v683
        %v1587 = vmul.f32 %v1583, %v684
        %v1588 = vmul.f32 %v1582, %v685
        %v1589 = vmul.f32 %v1581, %v686
        %v1590 = vmul.f32 %v1580, %v687
        %v1591 = vmul.f32 %v1579, %v688
        %v1592 = vmul.f32 %v1578, %v689
        %v1593 = vmul.f32 %v1585, %v690
        %v1594 = vpack.c.bf16 %v1587, %v1586
        %v1595 = vpack.c.bf16 %v1589, %v1588
        %v1596 = vpack.c.bf16 %v1591, %v1590
        %v1597 = vpack.c.bf16 %v1593, %v1592
        %s1598 = scalar_lea.vmem %s6, 96
        %v1599 = vld [vmem:[%s1598] sm:$0xf]
        %v1600 = vld [vmem:[%s1598 + $0x4] sm:$0xf]
        %v1601 = vld [vmem:[%s1598 + $0x8] sm:$0xf]
        %v1602 = vld [vmem:[%s1598 + $0xc] sm:$0xf]
        %v1603 = vld [vmem:[%s1598 + $0x10] sm:$0xf]
        %v1604 = vld [vmem:[%s1598 + $0x14] sm:$0xf]
        %v1605 = vld [vmem:[%s1598 + $0x18] sm:$0xf]
        %v1606 = vld [vmem:[%s1598 + $0x1c] sm:$0xf]
        %v1607 = vld [vmem:[%s1598 + $0x20] sm:$0xf]
        %v1608 = vld [vmem:[%s1598 + $0x24] sm:$0xf]
        %v1609 = vld [vmem:[%s1598 + $0x28] sm:$0xf]
        %v1610 = vld [vmem:[%s1598 + $0x2c] sm:$0xf]
        %v1611 = vld [vmem:[%s1598 + $0x30] sm:$0xf]
        %v1612 = vld [vmem:[%s1598 + $0x34] sm:$0xf]
        %v1613 = vld [vmem:[%s1598 + $0x38] sm:$0xf]
        %v1614 = vld [vmem:[%s1598 + $0x3c] sm:$0xf]
        %v1615 = vld [vmem:[%s1598 + $0x40] sm:$0xf]
        %v1616 = vld [vmem:[%s1598 + $0x44] sm:$0xf]
        %v1617 = vld [vmem:[%s1598 + $0x48] sm:$0xf]
        %v1618 = vld [vmem:[%s1598 + $0x4c] sm:$0xf]
        %v1619 = vld [vmem:[%s1598 + $0x50] sm:$0xf]
        %v1620 = vld [vmem:[%s1598 + $0x54] sm:$0xf]
        %v1621 = vld [vmem:[%s1598 + $0x58] sm:$0xf]
        %v1622 = vld [vmem:[%s1598 + $0x5c] sm:$0xf]
        %v1631 = vunpack.c.l.b16 %v1599
        %v1632 = vunpack.c.l.b16 %v1600
        %v1633 = vunpack.c.l.b16 %v1601
        %v1634 = vunpack.c.l.b16 %v1602
        %v1635 = vunpack.c.l.b16 %v1603
        %v1636 = vunpack.c.l.b16 %v1604
        %v1637 = vunpack.c.l.b16 %v1605
        %v1638 = vunpack.c.l.b16 %v1606
        %v1639 = vpack.c.b16 %v1632, %v1631
        %v1640 = vpack.c.b16 %v1634, %v1633
        %v1641 = vpack.c.b16 %v1636, %v1635
        %v1642 = vpack.c.b16 %v1638, %v1637
        %v1648 = vsel %vm705, %v1562, 0
        %v1651 = vsel %vm705, %v1563, 0
        %v1654 = vsel %vm705, %v1564, 0
        %v1657 = vsel %vm705, %v1565, 0
        %1659 = vmatprep.subr.bf16.mxu0 0
        %1660 = vmatpush1.bf16.msra.mxu0 %v1639
        %1661 = vmatprep.subr.bf16.mxu0 0
        %1662 = vmatpush1.bf16.msra.mxu0 %v1640
        %1663 = vmatprep.subr.bf16.mxu0 0
        %1664 = vmatpush1.bf16.msra.mxu0 %v1641
        %1665 = vmatprep.subr.bf16.mxu0 0
        %1666 = vmatpush1.bf16.msra.mxu0 %v1642
        %1667 = vmatprep.subr.bf16.mxu0 0
        %1668 = vmatpush1.bf16.msra.mxu0 0
        %1669 = vmatprep.subr.bf16.mxu0 0
        %1670 = vmatpush1.bf16.msra.mxu0 0
        %1671 = vmatprep.subr.bf16.mxu0 0
        %1672 = vmatpush1.bf16.msra.mxu0 0
        %1673 = vmatprep.subr.bf16.mxu0 0
        %1674 = vmatpush1.bf16.msra.mxu0 0
        %1675 = vmatprep.subr.bf16.mxu0 0
        %1676 = vmatpush1.bf16.msra.mxu0 0
        %1677 = vmatprep.subr.bf16.mxu0 0
        %1678 = vmatpush1.bf16.msra.mxu0 0
        %1679 = vmatprep.subr.bf16.mxu0 0
        %1680 = vmatpush1.bf16.msra.mxu0 0
        %1681 = vmatprep.subr.bf16.mxu0 0
        %1682 = vmatpush1.bf16.msra.mxu0 0
        %1683 = vmatprep.subr.bf16.mxu0 0
        %1684 = vmatpush1.bf16.msra.mxu0 0
        %1685 = vmatprep.subr.bf16.mxu0 0
        %1686 = vmatpush1.bf16.msra.mxu0 0
        %1687 = vmatprep.subr.bf16.mxu0 0
        %1688 = vmatpush1.bf16.msra.mxu0 0
        %1689 = vmatprep.subr.bf16.mxu0 0
        %1690 = vmatpush1.bf16.msra.mxu0 0
        %1691 = vmatprep.mubr.bf16.mxu0 0
        %1692 = vmatmul.mubr.bf16.gmra.mrb[0].mxu0 %v1648
        %v1693 = vpop.f32.mrb[0].mxu0
        %v1694 = vadd.f32 0.0, %v1693
        %v1695 = vpop.f32.mrb[0].mxu0
        %v1696 = vpop.f32.mrb[0].mxu0
        %v1697 = vadd.f32 0.0, %v1696
        %v1698 = vpop.f32.mrb[0].mxu0
        %1699 = vmatprep.mubr.bf16.mxu0 0
        %1700 = vmatmul.mubr.bf16.gmra.mrb[0].mxu0 %v1651
        %v1701 = vpop.f32.mrb[0].mxu0
        %v1702 = vadd.f32 0.0, %v1701
        %v1703 = vpop.f32.mrb[0].mxu0
        %v1704 = vpop.f32.mrb[0].mxu0
        %v1705 = vadd.f32 0.0, %v1704
        %v1706 = vpop.f32.mrb[0].mxu0
        %1707 = vmatprep.mubr.bf16.mxu0 0
        %1708 = vmatmul.mubr.bf16.gmra.mrb[0].mxu0 %v1654
        %v1709 = vpop.f32.mrb[0].mxu0
        %v1710 = vadd.f32 0.0, %v1709
        %v1711 = vpop.f32.mrb[0].mxu0
        %v1712 = vpop.f32.mrb[0].mxu0
        %v1713 = vadd.f32 0.0, %v1712
        %v1714 = vpop.f32.mrb[0].mxu0
        %1715 = vmatprep.mubr.bf16.mxu0 0
        %1716 = vmatmul.mubr.bf16.gmra.mrb[0].mxu0 %v1657
        %v1717 = vpop.f32.mrb[0].mxu0
        %v1718 = vadd.f32 0.0, %v1717
        %v1719 = vpop.f32.mrb[0].mxu0
        %v1720 = vpop.f32.mrb[0].mxu0
        %v1721 = vadd.f32 0.0, %v1720
        %v1722 = vpop.f32.mrb[0].mxu0
        %1723 = vdwg.mxu0
        %v1724 = vadd.f32 %v1530, %v1694
        %v1725 = vadd.f32 %v1531, %v1697
        %v1726 = vadd.f32 %v1532, %v1702
        %v1727 = vadd.f32 %v1533, %v1705
        %v1728 = vadd.f32 %v1534, %v1710
        %v1729 = vadd.f32 %v1535, %v1713
        %v1730 = vadd.f32 %v1536, %v1718
        %v1731 = vadd.f32 %v1537, %v1721
        %v1740 = vunpack.c.l.b16 %v1607
        %v1741 = vunpack.c.l.b16 %v1608
        %v1742 = vunpack.c.l.b16 %v1609
        %v1743 = vunpack.c.l.b16 %v1610
        %v1744 = vunpack.c.l.b16 %v1611
        %v1745 = vunpack.c.l.b16 %v1612
        %v1746 = vunpack.c.l.b16 %v1613
        %v1747 = vunpack.c.l.b16 %v1614
        %v1748 = vpack.c.b16 %v1741, %v1740
        %v1749 = vpack.c.b16 %v1743, %v1742
        %v1750 = vpack.c.b16 %v1745, %v1744
        %v1751 = vpack.c.b16 %v1747, %v1746
        %v1757 = vsel %vm705, %v1566, 0
        %v1760 = vsel %vm705, %v1567, 0
        %v1763 = vsel %vm705, %v1568, 0
        %v1766 = vsel %vm705, %v1569, 0
        %1768 = vmatprep.subr.bf16.mxu0 0
        %1769 = vmatpush1.bf16.msra.mxu0 %v1748
        %1770 = vmatprep.subr.bf16.mxu0 0
        %1771 = vmatpush1.bf16.msra.mxu0 %v1749
        %1772 = vmatprep.subr.bf16.mxu0 0
        %1773 = vmatpush1.bf16.msra.mxu0 %v1750
        %1774 = vmatprep.subr.bf16.mxu0 0
        %1775 = vmatpush1.bf16.msra.mxu0 %v1751
        %1776 = vmatprep.subr.bf16.mxu0 0
        %1777 = vmatpush1.bf16.msra.mxu0 0
        %1778 = vmatprep.subr.bf16.mxu0 0
        %1779 = vmatpush1.bf16.msra.mxu0 0
        %1780 = vmatprep.subr.bf16.mxu0 0
        %1781 = vmatpush1.bf16.msra.mxu0 0
        %1782 = vmatprep.subr.bf16.mxu0 0
        %1783 = vmatpush1.bf16.msra.mxu0 0
        %1784 = vmatprep.subr.bf16.mxu0 0
        %1785 = vmatpush1.bf16.msra.mxu0 0
        %1786 = vmatprep.subr.bf16.mxu0 0
        %1787 = vmatpush1.bf16.msra.mxu0 0
        %1788 = vmatprep.subr.bf16.mxu0 0
        %1789 = vmatpush1.bf16.msra.mxu0 0
        %1790 = vmatprep.subr.bf16.mxu0 0
        %1791 = vmatpush1.bf16.msra.mxu0 0
        %1792 = vmatprep.subr.bf16.mxu0 0
        %1793 = vmatpush1.bf16.msra.mxu0 0
        %1794 = vmatprep.subr.bf16.mxu0 0
        %1795 = vmatpush1.bf16.msra.mxu0 0
        %1796 = vmatprep.subr.bf16.mxu0 0
        %1797 = vmatpush1.bf16.msra.mxu0 0
        %1798 = vmatprep.subr.bf16.mxu0 0
        %1799 = vmatpush1.bf16.msra.mxu0 0
        %1800 = vmatprep.mubr.bf16.mxu0 0
        %1801 = vmatmul.mubr.bf16.gmra.mrb[0].mxu0 %v1757
        %v1802 = vpop.f32.mrb[0].mxu0
        %v1803 = vadd.f32 0.0, %v1802
        %v1804 = vpop.f32.mrb[0].mxu0
        %v1805 = vpop.f32.mrb[0].mxu0
        %v1806 = vadd.f32 0.0, %v1805
        %v1807 = vpop.f32.mrb[0].mxu0
        %1808 = vmatprep.mubr.bf16.mxu0 0
        %1809 = vmatmul.mubr.bf16.gmra.mrb[0].mxu0 %v1760
        %v1810 = vpop.f32.mrb[0].mxu0
        %v1811 = vadd.f32 0.0, %v1810
        %v1812 = vpop.f32.mrb[0].mxu0
        %v1813 = vpop.f32.mrb[0].mxu0
        %v1814 = vadd.f32 0.0, %v1813
        %v1815 = vpop.f32.mrb[0].mxu0
        %1816 = vmatprep.mubr.bf16.mxu0 0
        %1817 = vmatmul.mubr.bf16.gmra.mrb[0].mxu0 %v1763
        %v1818 = vpop.f32.mrb[0].mxu0
        %v1819 = vadd.f32 0.0, %v1818
        %v1820 = vpop.f32.mrb[0].mxu0
        %v1821 = vpop.f32.mrb[0].mxu0
        %v1822 = vadd.f32 0.0, %v1821
        %v1823 = vpop.f32.mrb[0].mxu0
        %1824 = vmatprep.mubr.bf16.mxu0 0
        %1825 = vmatmul.mubr.bf16.gmra.mrb[0].mxu0 %v1766
        %v1826 = vpop.f32.mrb[0].mxu0
        %v1827 = vadd.f32 0.0, %v1826
        %v1828 = vpop.f32.mrb[0].mxu0
        %v1829 = vpop.f32.mrb[0].mxu0
        %v1830 = vadd.f32 0.0, %v1829
        %v1831 = vpop.f32.mrb[0].mxu0
        %1832 = vdwg.mxu0
        %v1833 = vadd.f32 %v1724, %v1803
        %v1834 = vadd.f32 %v1725, %v1806
        %v1835 = vadd.f32 %v1726, %v1811
        %v1836 = vadd.f32 %v1727, %v1814
        %v1837 = vadd.f32 %v1728, %v1819
        %v1838 = vadd.f32 %v1729, %v1822
        %v1839 = vadd.f32 %v1730, %v1827
        %v1840 = vadd.f32 %v1731, %v1830
        %v1849 = vunpack.c.l.b16 %v1615
        %v1850 = vunpack.c.l.b16 %v1616
        %v1851 = vunpack.c.l.b16 %v1617
        %v1852 = vunpack.c.l.b16 %v1618
        %v1853 = vunpack.c.l.b16 %v1619
        %v1854 = vunpack.c.l.b16 %v1620
        %v1855 = vunpack.c.l.b16 %v1621
        %v1856 = vunpack.c.l.b16 %v1622
        %v1857 = vpack.c.b16 %v1850, %v1849
        %v1858 = vpack.c.b16 %v1852, %v1851
        %v1859 = vpack.c.b16 %v1854, %v1853
        %v1860 = vpack.c.b16 %v1856, %v1855
        %v1866 = vsel %vm705, %v1594, 0
        %v1869 = vsel %vm705, %v1595, 0
        %v1872 = vsel %vm705, %v1596, 0
        %v1875 = vsel %vm705, %v1597, 0
        %1877 = vmatprep.subr.bf16.mxu0 0
        %1878 = vmatpush1.bf16.msra.mxu0 %v1857
        %1879 = vmatprep.subr.bf16.mxu0 0
        %1880 = vmatpush1.bf16.msra.mxu0 %v1858
        %1881 = vmatprep.subr.bf16.mxu0 0
        %1882 = vmatpush1.bf16.msra.mxu0 %v1859
        %1883 = vmatprep.subr.bf16.mxu0 0
        %1884 = vmatpush1.bf16.msra.mxu0 %v1860
        %1885 = vmatprep.subr.bf16.mxu0 0
        %1886 = vmatpush1.bf16.msra.mxu0 0
        %1887 = vmatprep.subr.bf16.mxu0 0
        %1888 = vmatpush1.bf16.msra.mxu0 0
        %1889 = vmatprep.subr.bf16.mxu0 0
        %1890 = vmatpush1.bf16.msra.mxu0 0
        %1891 = vmatprep.subr.bf16.mxu0 0
        %1892 = vmatpush1.bf16.msra.mxu0 0
        %1893 = vmatprep.subr.bf16.mxu0 0
        %1894 = vmatpush1.bf16.msra.mxu0 0
        %1895 = vmatprep.subr.bf16.mxu0 0
        %1896 = vmatpush1.bf16.msra.mxu0 0
        %1897 = vmatprep.subr.bf16.mxu0 0
        %1898 = vmatpush1.bf16.msra.mxu0 0
        %1899 = vmatprep.subr.bf16.mxu0 0
        %1900 = vmatpush1.bf16.msra.mxu0 0
        %1901 = vmatprep.subr.bf16.mxu0 0
        %1902 = vmatpush1.bf16.msra.mxu0 0
        %1903 = vmatprep.subr.bf16.mxu0 0
        %1904 = vmatpush1.bf16.msra.mxu0 0
        %1905 = vmatprep.subr.bf16.mxu0 0
        %1906 = vmatpush1.bf16.msra.mxu0 0
        %1907 = vmatprep.subr.bf16.mxu0 0
        %1908 = vmatpush1.bf16.msra.mxu0 0
        %1909 = vmatprep.mubr.bf16.mxu0 0
        %1910 = vmatmul.mubr.bf16.gmra.mrb[0].mxu0 %v1866
        %v1911 = vpop.f32.mrb[0].mxu0
        %v1912 = vadd.f32 0.0, %v1911
        %v1913 = vpop.f32.mrb[0].mxu0
        %v1914 = vpop.f32.mrb[0].mxu0
        %v1915 = vadd.f32 0.0, %v1914
        %v1916 = vpop.f32.mrb[0].mxu0
        %1917 = vmatprep.mubr.bf16.mxu0 0
        %1918 = vmatmul.mubr.bf16.gmra.mrb[0].mxu0 %v1869
        %v1919 = vpop.f32.mrb[0].mxu0
        %v1920 = vadd.f32 0.0, %v1919
        %v1921 = vpop.f32.mrb[0].mxu0
        %v1922 = vpop.f32.mrb[0].mxu0
        %v1923 = vadd.f32 0.0, %v1922
        %v1924 = vpop.f32.mrb[0].mxu0
        %1925 = vmatprep.mubr.bf16.mxu0 0
        %1926 = vmatmul.mubr.bf16.gmra.mrb[0].mxu0 %v1872
        %v1927 = vpop.f32.mrb[0].mxu0
        %v1928 = vadd.f32 0.0, %v1927
        %v1929 = vpop.f32.mrb[0].mxu0
        %v1930 = vpop.f32.mrb[0].mxu0
        %v1931 = vadd.f32 0.0, %v1930
        %v1932 = vpop.f32.mrb[0].mxu0
        %1933 = vmatprep.mubr.bf16.mxu0 0
        %1934 = vmatmul.mubr.bf16.gmra.mrb[0].mxu0 %v1875
        %v1935 = vpop.f32.mrb[0].mxu0
        %v1936 = vadd.f32 0.0, %v1935
        %v1937 = vpop.f32.mrb[0].mxu0
        %v1938 = vpop.f32.mrb[0].mxu0
        %v1939 = vadd.f32 0.0, %v1938
        %v1940 = vpop.f32.mrb[0].mxu0
        %1941 = vdwg.mxu0
        %v1942 = vadd.f32 %v1833, %v1912
        %v1943 = vadd.f32 %v1834, %v1915
        %v1944 = vadd.f32 %v1835, %v1920
        %v1945 = vadd.f32 %v1836, %v1923
        %v1946 = vadd.f32 %v1837, %v1928
        %v1947 = vadd.f32 %v1838, %v1931
        %v1948 = vadd.f32 %v1839, %v1936
        %v1949 = vadd.f32 %v1840, %v1939
        %v1950 = vmul.f32 %v1125, %v635
        %v1951 = vmul.f32 %v1126, %v636
        %v1952 = vmul.f32 %v1127, %v637
        %v1953 = vmul.f32 %v1128, %v638
        %v1954 = vmul.f32 %v1129, %v639
        %v1955 = vmul.f32 %v1130, %v640
        %v1956 = vmul.f32 %v1131, %v641
        %v1957 = vmul.f32 %v1124, %v642
        %v1958 = vrot.slane %v1950, 7
        %v1959 = vrot.slane %v1951, 7
        %v1960 = vrot.slane %v1952, 7
        %v1961 = vrot.slane %v1953, 7
        %v1962 = vrot.slane %v1954, 7
        %v1963 = vrot.slane %v1955, 7
        %v1964 = vrot.slane %v1956, 7
        %v1965 = vrot.slane %v1957, 7
        %v1966 = vsel %vm1149, %v1964, %v1965
        %v1967 = vsel %vm1149, %v1963, %v1964
        %v1968 = vsel %vm1149, %v1962, %v1963
        %v1969 = vsel %vm1149, %v1961, %v1962
        %v1970 = vsel %vm1149, %v1960, %v1961
        %v1971 = vsel %vm1149, %v1959, %v1960
        %v1972 = vsel %vm1149, %v1958, %v1959
        %v1973 = vsel %vm1149, %v1965, %v1958
        %v1974 = vmul.f32 %v1973, %v659
        %v1975 = vmul.f32 %v1972, %v660
        %v1976 = vmul.f32 %v1971, %v661
        %v1977 = vmul.f32 %v1970, %v662
        %v1978 = vmul.f32 %v1969, %v663
        %v1979 = vmul.f32 %v1968, %v664
        %v1980 = vmul.f32 %v1967, %v665
        %v1981 = vmul.f32 %v1966, %v666
        %v1982 = vpack.c.bf16 %v1975, %v1974
        %v1983 = vpack.c.bf16 %v1977, %v1976
        %v1984 = vpack.c.bf16 %v1979, %v1978
        %v1985 = vpack.c.bf16 %v1981, %v1980
        %v1986 = vpack.c.bf16 %v1951, %v1950
        %v1987 = vpack.c.bf16 %v1953, %v1952
        %v1988 = vpack.c.bf16 %v1955, %v1954
        %v1989 = vpack.c.bf16 %v1957, %v1956
        %v1990 = vrot.slane %v1950, 1
        %v1991 = vrot.slane %v1951, 1
        %v1992 = vrot.slane %v1952, 1
        %v1993 = vrot.slane %v1953, 1
        %v1994 = vrot.slane %v1954, 1
        %v1995 = vrot.slane %v1955, 1
        %v1996 = vrot.slane %v1956, 1
        %v1997 = vrot.slane %v1957, 1
        %v1998 = vsel %vm1182, %v1996, %v1997
        %v1999 = vsel %vm1182, %v1995, %v1996
        %v2000 = vsel %vm1182, %v1994, %v1995
        %v2001 = vsel %vm1182, %v1993, %v1994
        %v2002 = vsel %vm1182, %v1992, %v1993
        %v2003 = vsel %vm1182, %v1991, %v1992
        %v2004 = vsel %vm1182, %v1990, %v1991
        %v2005 = vsel %vm1182, %v1997, %v1990
        %v2006 = vmul.f32 %v2004, %v683
        %v2007 = vmul.f32 %v2003, %v684
        %v2008 = vmul.f32 %v2002, %v685
        %v2009 = vmul.f32 %v2001, %v686
        %v2010 = vmul.f32 %v2000, %v687
        %v2011 = vmul.f32 %v1999, %v688
        %v2012 = vmul.f32 %v1998, %v689
        %v2013 = vmul.f32 %v2005, %v690
        %v2014 = vpack.c.bf16 %v2007, %v2006
        %v2015 = vpack.c.bf16 %v2009, %v2008
        %v2016 = vpack.c.bf16 %v2011, %v2010
        %v2017 = vpack.c.bf16 %v2013, %v2012
        %s2018 = scalar_lea.vmem %s6, 192
        %v2019 = vld [vmem:[%s2018] sm:$0xf]
        %v2020 = vld [vmem:[%s2018 + $0x4] sm:$0xf]
        %v2021 = vld [vmem:[%s2018 + $0x8] sm:$0xf]
        %v2022 = vld [vmem:[%s2018 + $0xc] sm:$0xf]
        %v2023 = vld [vmem:[%s2018 + $0x10] sm:$0xf]
        %v2024 = vld [vmem:[%s2018 + $0x14] sm:$0xf]
        %v2025 = vld [vmem:[%s2018 + $0x18] sm:$0xf]
        %v2026 = vld [vmem:[%s2018 + $0x1c] sm:$0xf]
        %v2027 = vld [vmem:[%s2018 + $0x20] sm:$0xf]
        %v2028 = vld [vmem:[%s2018 + $0x24] sm:$0xf]
        %v2029 = vld [vmem:[%s2018 + $0x28] sm:$0xf]
        %v2030 = vld [vmem:[%s2018 + $0x2c] sm:$0xf]
        %v2031 = vld [vmem:[%s2018 + $0x30] sm:$0xf]
        %v2032 = vld [vmem:[%s2018 + $0x34] sm:$0xf]
        %v2033 = vld [vmem:[%s2018 + $0x38] sm:$0xf]
        %v2034 = vld [vmem:[%s2018 + $0x3c] sm:$0xf]
        %v2035 = vld [vmem:[%s2018 + $0x40] sm:$0xf]
        %v2036 = vld [vmem:[%s2018 + $0x44] sm:$0xf]
        %v2037 = vld [vmem:[%s2018 + $0x48] sm:$0xf]
        %v2038 = vld [vmem:[%s2018 + $0x4c] sm:$0xf]
        %v2039 = vld [vmem:[%s2018 + $0x50] sm:$0xf]
        %v2040 = vld [vmem:[%s2018 + $0x54] sm:$0xf]
        %v2041 = vld [vmem:[%s2018 + $0x58] sm:$0xf]
        %v2042 = vld [vmem:[%s2018 + $0x5c] sm:$0xf]
        %v2051 = vunpack.c.l.b16 %v2019
        %v2052 = vunpack.c.l.b16 %v2020
        %v2053 = vunpack.c.l.b16 %v2021
        %v2054 = vunpack.c.l.b16 %v2022
        %v2055 = vunpack.c.l.b16 %v2023
        %v2056 = vunpack.c.l.b16 %v2024
        %v2057 = vunpack.c.l.b16 %v2025
        %v2058 = vunpack.c.l.b16 %v2026
        %v2059 = vpack.c.b16 %v2052, %v2051
        %v2060 = vpack.c.b16 %v2054, %v2053
        %v2061 = vpack.c.b16 %v2056, %v2055
        %v2062 = vpack.c.b16 %v2058, %v2057
        %v2068 = vsel %vm705, %v1982, 0
        %v2071 = vsel %vm705, %v1983, 0
        %v2074 = vsel %vm705, %v1984, 0
        %v2077 = vsel %vm705, %v1985, 0
        %2079 = vmatprep.subr.bf16.mxu0 0
        %2080 = vmatpush1.bf16.msra.mxu0 %v2059
        %2081 = vmatprep.subr.bf16.mxu0 0
        %2082 = vmatpush1.bf16.msra.mxu0 %v2060
        %2083 = vmatprep.subr.bf16.mxu0 0
        %2084 = vmatpush1.bf16.msra.mxu0 %v2061
        %2085 = vmatprep.subr.bf16.mxu0 0
        %2086 = vmatpush1.bf16.msra.mxu0 %v2062
        %2087 = vmatprep.subr.bf16.mxu0 0
        %2088 = vmatpush1.bf16.msra.mxu0 0
        %2089 = vmatprep.subr.bf16.mxu0 0
        %2090 = vmatpush1.bf16.msra.mxu0 0
        %2091 = vmatprep.subr.bf16.mxu0 0
        %2092 = vmatpush1.bf16.msra.mxu0 0
        %2093 = vmatprep.subr.bf16.mxu0 0
        %2094 = vmatpush1.bf16.msra.mxu0 0
        %2095 = vmatprep.subr.bf16.mxu0 0
        %2096 = vmatpush1.bf16.msra.mxu0 0
        %2097 = vmatprep.subr.bf16.mxu0 0
        %2098 = vmatpush1.bf16.msra.mxu0 0
        %2099 = vmatprep.subr.bf16.mxu0 0
        %2100 = vmatpush1.bf16.msra.mxu0 0
        %2101 = vmatprep.subr.bf16.mxu0 0
        %2102 = vmatpush1.bf16.msra.mxu0 0
        %2103 = vmatprep.subr.bf16.mxu0 0
        %2104 = vmatpush1.bf16.msra.mxu0 0
        %2105 = vmatprep.subr.bf16.mxu0 0
        %2106 = vmatpush1.bf16.msra.mxu0 0
        %2107 = vmatprep.subr.bf16.mxu0 0
        %2108 = vmatpush1.bf16.msra.mxu0 0
        %2109 = vmatprep.subr.bf16.mxu0 0
        %2110 = vmatpush1.bf16.msra.mxu0 0
        %2111 = vmatprep.mubr.bf16.mxu0 0
        %2112 = vmatmul.mubr.bf16.gmra.mrb[0].mxu0 %v2068
        %v2113 = vpop.f32.mrb[0].mxu0
        %v2114 = vadd.f32 0.0, %v2113
        %v2115 = vpop.f32.mrb[0].mxu0
        %v2116 = vpop.f32.mrb[0].mxu0
        %v2117 = vadd.f32 0.0, %v2116
        %v2118 = vpop.f32.mrb[0].mxu0
        %2119 = vmatprep.mubr.bf16.mxu0 0
        %2120 = vmatmul.mubr.bf16.gmra.mrb[0].mxu0 %v2071
        %v2121 = vpop.f32.mrb[0].mxu0
        %v2122 = vadd.f32 0.0, %v2121
        %v2123 = vpop.f32.mrb[0].mxu0
        %v2124 = vpop.f32.mrb[0].mxu0
        %v2125 = vadd.f32 0.0, %v2124
        %v2126 = vpop.f32.mrb[0].mxu0
        %2127 = vmatprep.mubr.bf16.mxu0 0
        %2128 = vmatmul.mubr.bf16.gmra.mrb[0].mxu0 %v2074
        %v2129 = vpop.f32.mrb[0].mxu0
        %v2130 = vadd.f32 0.0, %v2129
        %v2131 = vpop.f32.mrb[0].mxu0
        %v2132 = vpop.f32.mrb[0].mxu0
        %v2133 = vadd.f32 0.0, %v2132
        %v2134 = vpop.f32.mrb[0].mxu0
        %2135 = vmatprep.mubr.bf16.mxu0 0
        %2136 = vmatmul.mubr.bf16.gmra.mrb[0].mxu0 %v2077
        %v2137 = vpop.f32.mrb[0].mxu0
        %v2138 = vadd.f32 0.0, %v2137
        %v2139 = vpop.f32.mrb[0].mxu0
        %v2140 = vpop.f32.mrb[0].mxu0
        %v2141 = vadd.f32 0.0, %v2140
        %v2142 = vpop.f32.mrb[0].mxu0
        %2143 = vdwg.mxu0
        %v2144 = vadd.f32 %v1942, %v2114
        %v2145 = vadd.f32 %v1943, %v2117
        %v2146 = vadd.f32 %v1944, %v2122
        %v2147 = vadd.f32 %v1945, %v2125
        %v2148 = vadd.f32 %v1946, %v2130
        %v2149 = vadd.f32 %v1947, %v2133
        %v2150 = vadd.f32 %v1948, %v2138
        %v2151 = vadd.f32 %v1949, %v2141
        %v2160 = vunpack.c.l.b16 %v2027
        %v2161 = vunpack.c.l.b16 %v2028
        %v2162 = vunpack.c.l.b16 %v2029
        %v2163 = vunpack.c.l.b16 %v2030
        %v2164 = vunpack.c.l.b16 %v2031
        %v2165 = vunpack.c.l.b16 %v2032
        %v2166 = vunpack.c.l.b16 %v2033
        %v2167 = vunpack.c.l.b16 %v2034
        %v2168 = vpack.c.b16 %v2161, %v2160
        %v2169 = vpack.c.b16 %v2163, %v2162
        %v2170 = vpack.c.b16 %v2165, %v2164
        %v2171 = vpack.c.b16 %v2167, %v2166
        %v2177 = vsel %vm705, %v1986, 0
        %v2180 = vsel %vm705, %v1987, 0
        %v2183 = vsel %vm705, %v1988, 0
        %v2186 = vsel %vm705, %v1989, 0
        %2188 = vmatprep.subr.bf16.mxu0 0
        %2189 = vmatpush1.bf16.msra.mxu0 %v2168
        %2190 = vmatprep.subr.bf16.mxu0 0
        %2191 = vmatpush1.bf16.msra.mxu0 %v2169
        %2192 = vmatprep.subr.bf16.mxu0 0
        %2193 = vmatpush1.bf16.msra.mxu0 %v2170
        %2194 = vmatprep.subr.bf16.mxu0 0
        %2195 = vmatpush1.bf16.msra.mxu0 %v2171
        %2196 = vmatprep.subr.bf16.mxu0 0
        %2197 = vmatpush1.bf16.msra.mxu0 0
        %2198 = vmatprep.subr.bf16.mxu0 0
        %2199 = vmatpush1.bf16.msra.mxu0 0
        %2200 = vmatprep.subr.bf16.mxu0 0
        %2201 = vmatpush1.bf16.msra.mxu0 0
        %2202 = vmatprep.subr.bf16.mxu0 0
        %2203 = vmatpush1.bf16.msra.mxu0 0
        %2204 = vmatprep.subr.bf16.mxu0 0
        %2205 = vmatpush1.bf16.msra.mxu0 0
        %2206 = vmatprep.subr.bf16.mxu0 0
        %2207 = vmatpush1.bf16.msra.mxu0 0
        %2208 = vmatprep.subr.bf16.mxu0 0
        %2209 = vmatpush1.bf16.msra.mxu0 0
        %2210 = vmatprep.subr.bf16.mxu0 0
        %2211 = vmatpush1.bf16.msra.mxu0 0
        %2212 = vmatprep.subr.bf16.mxu0 0
        %2213 = vmatpush1.bf16.msra.mxu0 0
        %2214 = vmatprep.subr.bf16.mxu0 0
        %2215 = vmatpush1.bf16.msra.mxu0 0
        %2216 = vmatprep.subr.bf16.mxu0 0
        %2217 = vmatpush1.bf16.msra.mxu0 0
        %2218 = vmatprep.subr.bf16.mxu0 0
        %2219 = vmatpush1.bf16.msra.mxu0 0
        %2220 = vmatprep.mubr.bf16.mxu0 0
        %2221 = vmatmul.mubr.bf16.gmra.mrb[0].mxu0 %v2177
        %v2222 = vpop.f32.mrb[0].mxu0
        %v2223 = vadd.f32 0.0, %v2222
        %v2224 = vpop.f32.mrb[0].mxu0
        %v2225 = vpop.f32.mrb[0].mxu0
        %v2226 = vadd.f32 0.0, %v2225
        %v2227 = vpop.f32.mrb[0].mxu0
        %2228 = vmatprep.mubr.bf16.mxu0 0
        %2229 = vmatmul.mubr.bf16.gmra.mrb[0].mxu0 %v2180
        %v2230 = vpop.f32.mrb[0].mxu0
        %v2231 = vadd.f32 0.0, %v2230
        %v2232 = vpop.f32.mrb[0].mxu0
        %v2233 = vpop.f32.mrb[0].mxu0
        %v2234 = vadd.f32 0.0, %v2233
        %v2235 = vpop.f32.mrb[0].mxu0
        %2236 = vmatprep.mubr.bf16.mxu0 0
        %2237 = vmatmul.mubr.bf16.gmra.mrb[0].mxu0 %v2183
        %v2238 = vpop.f32.mrb[0].mxu0
        %v2239 = vadd.f32 0.0, %v2238
        %v2240 = vpop.f32.mrb[0].mxu0
        %v2241 = vpop.f32.mrb[0].mxu0
        %v2242 = vadd.f32 0.0, %v2241
        %v2243 = vpop.f32.mrb[0].mxu0
        %2244 = vmatprep.mubr.bf16.mxu0 0
        %2245 = vmatmul.mubr.bf16.gmra.mrb[0].mxu0 %v2186
        %v2246 = vpop.f32.mrb[0].mxu0
        %v2247 = vadd.f32 0.0, %v2246
        %v2248 = vpop.f32.mrb[0].mxu0
        %v2249 = vpop.f32.mrb[0].mxu0
        %v2250 = vadd.f32 0.0, %v2249
        %v2251 = vpop.f32.mrb[0].mxu0
        %2252 = vdwg.mxu0
        %v2253 = vadd.f32 %v2144, %v2223
        %v2254 = vadd.f32 %v2145, %v2226
        %v2255 = vadd.f32 %v2146, %v2231
        %v2256 = vadd.f32 %v2147, %v2234
        %v2257 = vadd.f32 %v2148, %v2239
        %v2258 = vadd.f32 %v2149, %v2242
        %v2259 = vadd.f32 %v2150, %v2247
        %v2260 = vadd.f32 %v2151, %v2250
        %v2269 = vunpack.c.l.b16 %v2035
        %v2270 = vunpack.c.l.b16 %v2036
        %v2271 = vunpack.c.l.b16 %v2037
        %v2272 = vunpack.c.l.b16 %v2038
        %v2273 = vunpack.c.l.b16 %v2039
        %v2274 = vunpack.c.l.b16 %v2040
        %v2275 = vunpack.c.l.b16 %v2041
        %v2276 = vunpack.c.l.b16 %v2042
        %v2277 = vpack.c.b16 %v2270, %v2269
        %v2278 = vpack.c.b16 %v2272, %v2271
        %v2279 = vpack.c.b16 %v2274, %v2273
        %v2280 = vpack.c.b16 %v2276, %v2275
        %v2286 = vsel %vm705, %v2014, 0
        %v2289 = vsel %vm705, %v2015, 0
        %v2292 = vsel %vm705, %v2016, 0
        %v2295 = vsel %vm705, %v2017, 0
        %2297 = vmatprep.subr.bf16.mxu0 0
        %2298 = vmatpush1.bf16.msra.mxu0 %v2277
        %2299 = vmatprep.subr.bf16.mxu0 0
        %2300 = vmatpush1.bf16.msra.mxu0 %v2278
        %2301 = vmatprep.subr.bf16.mxu0 0
        %2302 = vmatpush1.bf16.msra.mxu0 %v2279
        %2303 = vmatprep.subr.bf16.mxu0 0
        %2304 = vmatpush1.bf16.msra.mxu0 %v2280
        %2305 = vmatprep.subr.bf16.mxu0 0
        %2306 = vmatpush1.bf16.msra.mxu0 0
        %2307 = vmatprep.subr.bf16.mxu0 0
        %2308 = vmatpush1.bf16.msra.mxu0 0
        %2309 = vmatprep.subr.bf16.mxu0 0
        %2310 = vmatpush1.bf16.msra.mxu0 0
        %2311 = vmatprep.subr.bf16.mxu0 0
        %2312 = vmatpush1.bf16.msra.mxu0 0
        %2313 = vmatprep.subr.bf16.mxu0 0
        %2314 = vmatpush1.bf16.msra.mxu0 0
        %2315 = vmatprep.subr.bf16.mxu0 0
        %2316 = vmatpush1.bf16.msra.mxu0 0
        %2317 = vmatprep.subr.bf16.mxu0 0
        %2318 = vmatpush1.bf16.msra.mxu0 0
        %2319 = vmatprep.subr.bf16.mxu0 0
        %2320 = vmatpush1.bf16.msra.mxu0 0
        %2321 = vmatprep.subr.bf16.mxu0 0
        %2322 = vmatpush1.bf16.msra.mxu0 0
        %2323 = vmatprep.subr.bf16.mxu0 0
        %2324 = vmatpush1.bf16.msra.mxu0 0
        %2325 = vmatprep.subr.bf16.mxu0 0
        %2326 = vmatpush1.bf16.msra.mxu0 0
        %2327 = vmatprep.subr.bf16.mxu0 0
        %2328 = vmatpush1.bf16.msra.mxu0 0
        %2329 = vmatprep.mubr.bf16.mxu0 0
        %2330 = vmatmul.mubr.bf16.gmra.mrb[0].mxu0 %v2286
        %v2331 = vpop.f32.mrb[0].mxu0
        %v2332 = vadd.f32 0.0, %v2331
        %v2333 = vpop.f32.mrb[0].mxu0
        %v2334 = vpop.f32.mrb[0].mxu0
        %v2335 = vadd.f32 0.0, %v2334
        %v2336 = vpop.f32.mrb[0].mxu0
        %2337 = vmatprep.mubr.bf16.mxu0 0
        %2338 = vmatmul.mubr.bf16.gmra.mrb[0].mxu0 %v2289
        %v2339 = vpop.f32.mrb[0].mxu0
        %v2340 = vadd.f32 0.0, %v2339
        %v2341 = vpop.f32.mrb[0].mxu0
        %v2342 = vpop.f32.mrb[0].mxu0
        %v2343 = vadd.f32 0.0, %v2342
        %v2344 = vpop.f32.mrb[0].mxu0
        %2345 = vmatprep.mubr.bf16.mxu0 0
        %2346 = vmatmul.mubr.bf16.gmra.mrb[0].mxu0 %v2292
        %v2347 = vpop.f32.mrb[0].mxu0
        %v2348 = vadd.f32 0.0, %v2347
        %v2349 = vpop.f32.mrb[0].mxu0
        %v2350 = vpop.f32.mrb[0].mxu0
        %v2351 = vadd.f32 0.0, %v2350
        %v2352 = vpop.f32.mrb[0].mxu0
        %2353 = vmatprep.mubr.bf16.mxu0 0
        %2354 = vmatmul.mubr.bf16.gmra.mrb[0].mxu0 %v2295
        %v2355 = vpop.f32.mrb[0].mxu0
        %v2356 = vadd.f32 0.0, %v2355
        %v2357 = vpop.f32.mrb[0].mxu0
        %v2358 = vpop.f32.mrb[0].mxu0
        %v2359 = vadd.f32 0.0, %v2358
        %v2360 = vpop.f32.mrb[0].mxu0
        %2361 = vdwg.mxu0
        %v2362 = vadd.f32 %v2253, %v2332
        %v2363 = vadd.f32 %v2254, %v2335
        %v2364 = vadd.f32 %v2255, %v2340
        %v2365 = vadd.f32 %v2256, %v2343
        %v2366 = vadd.f32 %v2257, %v2348
        %v2367 = vadd.f32 %v2258, %v2351
        %v2368 = vadd.f32 %v2259, %v2356
        %v2369 = vadd.f32 %v2260, %v2359
        %v2371 = vlaneseq
        %v2372 = vshrl.u32 %v2371, 7
        %v2373 = vsub.s32 0, %v2372
        %v2374 = vrot.slane %v1132, %v2373
        %v2376 = vadd.f32 %v2362, %v2374
        %v2377 = vadd.f32 %v2363, %v2374
        %v2378 = vadd.f32 %v2364, %v2374
        %v2379 = vadd.f32 %v2365, %v2374
        %v2380 = vadd.f32 %v2366, %v2374
        %v2381 = vadd.f32 %v2367, %v2374
        %v2382 = vadd.f32 %v2368, %v2374
        %v2383 = vadd.f32 %v2369, %v2374
        %v2384 = vld [vmem:[%s10] sm:$0xff]
        %v2385 = vld [vmem:[%s10 + $0x8] sm:$0xff]
        %v2386 = vld [vmem:[%s10 + $0x10] sm:$0xff]
        %v2387 = vld [vmem:[%s10 + $0x18] sm:$0xff]
        %v2388 = vld [vmem:[%s10 + $0x20] sm:$0xff]
        %v2389 = vld [vmem:[%s10 + $0x28] sm:$0xff]
        %v2390 = vld [vmem:[%s10 + $0x30] sm:$0xff]
        %v2391 = vld [vmem:[%s10 + $0x38] sm:$0xff]
        %v2392 = vld [vmem:[%s10 + $0x40] sm:$0xff]
        %v2393 = vld [vmem:[%s10 + $0x48] sm:$0xff]
        %v2394 = vld [vmem:[%s10 + $0x50] sm:$0xff]
        %v2395 = vld [vmem:[%s10 + $0x58] sm:$0xff]
        %v2396 = vld [vmem:[%s10 + $0x60] sm:$0xff]
        %v2397 = vld [vmem:[%s10 + $0x68] sm:$0xff]
        %v2398 = vld [vmem:[%s10 + $0x70] sm:$0xff]
        %v2399 = vld [vmem:[%s10 + $0x78] sm:$0xff]
        %v2400 = vld [vmem:[%s11] sm:$0xff]
        %v2401 = vld [vmem:[%s11 + $0x8] sm:$0xff]
        %v2402 = vld [vmem:[%s11 + $0x10] sm:$0xff]
        %v2403 = vld [vmem:[%s11 + $0x18] sm:$0xff]
        %v2404 = vld [vmem:[%s8] sm:$0x1]
        %v2405 = vld [vmem:[%s9] sm:$0x1]
        %v2407 = vlaneseq
        %v2408 = vshrl.u32 %v2407, 7
        %v2409 = vsub.s32 0, %v2408
        %v2410 = vrot.slane %v561, %v2409
        %v2412 = vadd.f32 %v2376, %v2410
        %v2413 = vadd.f32 %v2377, %v2410
        %v2414 = vadd.f32 %v2378, %v2410
        %v2415 = vadd.f32 %v2379, %v2410
        %v2416 = vadd.f32 %v2380, %v2410
        %v2417 = vadd.f32 %v2381, %v2410
        %v2418 = vadd.f32 %v2382, %v2410
        %v2419 = vadd.f32 %v2383, %v2410
        %v2420 = vadd.f32 %v2412, %v2413
        %v2421 = vadd.f32 %v2420, %v2414
        %v2422 = vadd.f32 %v2421, %v2415
        %v2423 = vadd.f32 %v2422, %v2416
        %v2424 = vadd.f32 %v2423, %v2417
        %v2425 = vadd.f32 %v2424, %v2418
        %v2426 = vadd.f32 %v2425, %v2419
        %v2427 = vrot.slane %v2426, 4
        %v2428 = vadd.f32 %v2426, %v2427
        %v2429 = vrot.slane %v2428, 2
        %v2430 = vadd.f32 %v2428, %v2429
        %v2431 = vrot.slane %v2430, 1
        %v2432 = vadd.f32 %v2430, %v2431
        %v2433 = vmul.f32 %v2412, %v2412
        %v2434 = vmul.f32 %v2413, %v2413
        %v2435 = vmul.f32 %v2414, %v2414
        %v2436 = vmul.f32 %v2415, %v2415
        %v2437 = vmul.f32 %v2416, %v2416
        %v2438 = vmul.f32 %v2417, %v2417
        %v2439 = vmul.f32 %v2418, %v2418
        %v2440 = vmul.f32 %v2419, %v2419
        %v2441 = vadd.f32 %v2433, %v2434
        %v2442 = vadd.f32 %v2441, %v2435
        %v2443 = vadd.f32 %v2442, %v2436
        %v2444 = vadd.f32 %v2443, %v2437
        %v2445 = vadd.f32 %v2444, %v2438
        %v2446 = vadd.f32 %v2445, %v2439
        %v2447 = vadd.f32 %v2446, %v2440
        %v2448 = vrot.slane %v2447, 4
        %v2449 = vadd.f32 %v2447, %v2448
        %v2450 = vrot.slane %v2449, 2
        %v2451 = vadd.f32 %v2449, %v2450
        %v2452 = vrot.slane %v2451, 1
        %v2453 = vadd.f32 %v2451, %v2452
        %2454 = vmatprep.subr.mxu0 0.0
        %2455 = vmatpush1.msra.mxu0 %v2384
        %2456 = vmatprep.subr.mxu0 0.0
        %2457 = vmatpush1.msra.mxu0 %v2385
        %2458 = vmatprep.subr.mxu0 0.0
        %2459 = vmatpush1.msra.mxu0 %v2386
        %2460 = vmatprep.subr.mxu0 0.0
        %2461 = vmatpush1.msra.mxu0 %v2387
        %2462 = vmatprep.subr.mxu0 0.0
        %2463 = vmatpush1.msra.mxu0 %v2388
        %2464 = vmatprep.subr.mxu0 0.0
        %2465 = vmatpush1.msra.mxu0 %v2389
        %2466 = vmatprep.subr.mxu0 0.0
        %2467 = vmatpush1.msra.mxu0 %v2390
        %2468 = vmatprep.subr.mxu0 0.0
        %2469 = vmatpush1.msra.mxu0 %v2391
        %2470 = vmatprep.subr.mxu0 0.0
        %2471 = vmatpush1.msra.mxu0 %v2392
        %2472 = vmatprep.subr.mxu0 0.0
        %2473 = vmatpush1.msra.mxu0 %v2393
        %2474 = vmatprep.subr.mxu0 0.0
        %2475 = vmatpush1.msra.mxu0 %v2394
        %2476 = vmatprep.subr.mxu0 0.0
        %2477 = vmatpush1.msra.mxu0 %v2395
        %2478 = vmatprep.subr.mxu0 0.0
        %2479 = vmatpush1.msra.mxu0 %v2396
        %2480 = vmatprep.subr.mxu0 0.0
        %2481 = vmatpush1.msra.mxu0 %v2397
        %2482 = vmatprep.subr.mxu0 0.0
        %2483 = vmatpush1.msra.mxu0 %v2398
        %2484 = vmatprep.subr.mxu0 0.0
        %2485 = vmatpush1.msra.mxu0 %v2399
        %2486 = vmatprep.subr.mxu0 0.0
        %2487 = vmatpush1.msra.mxu0 0.0
        %2488 = vmatprep.subr.mxu0 0.0
        %2489 = vmatpush1.msra.mxu0 0.0
        %2490 = vmatprep.subr.mxu0 0.0
        %2491 = vmatpush1.msra.mxu0 0.0
        %2492 = vmatprep.subr.mxu0 0.0
        %2493 = vmatpush1.msra.mxu0 0.0
        %2494 = vmatprep.subr.mxu0 0.0
        %2495 = vmatpush1.msra.mxu0 0.0
        %2496 = vmatprep.subr.mxu0 0.0
        %2497 = vmatpush1.msra.mxu0 0.0
        %2498 = vmatprep.subr.mxu0 0.0
        %2499 = vmatpush1.msra.mxu0 0.0
        %2500 = vmatprep.subr.mxu0 0.0
        %2501 = vmatpush1.msra.mxu0 0.0
        %2502 = vmatprep.subr.mxu0 0.0
        %2503 = vmatpush1.msra.mxu0 0.0
        %2504 = vmatprep.subr.mxu0 0.0
        %2505 = vmatpush1.msra.mxu0 0.0
        %2506 = vmatprep.subr.mxu0 0.0
        %2507 = vmatpush1.msra.mxu0 0.0
        %2508 = vmatprep.subr.mxu0 0.0
        %2509 = vmatpush1.msra.mxu0 0.0
        %2510 = vmatprep.subr.mxu0 0.0
        %2511 = vmatpush1.msra.mxu0 0.0
        %2512 = vmatprep.subr.mxu0 0.0
        %2513 = vmatpush1.msra.mxu0 0.0
        %2514 = vmatprep.subr.mxu0 0.0
        %2515 = vmatpush1.msra.mxu0 0.0
        %2516 = vmatprep.subr.mxu0 0.0
        %2517 = vmatpush1.msra.mxu0 0.0
        %2518 = vmatprep.mubr.f32.mxu0 0.0
        %2519 = vmatmul.mubr.f32.gmra.mrb[0].mxu0 %v2432
        %v2520 = vpop.f32.mrb[0].mxu0
        %v2521 = vadd.f32 0.0, %v2520
        %v2522 = vpop.f32.mrb[0].mxu0
        %2523 = vdwg.mxu0
        %v2524 = vmul.f32 %v2521, 0.00390625
        %2525 = vmatprep.subr.mxu0 0.0
        %2526 = vmatpush1.msra.mxu0 %v2384
        %2527 = vmatprep.subr.mxu0 0.0
        %2528 = vmatpush1.msra.mxu0 %v2385
        %2529 = vmatprep.subr.mxu0 0.0
        %2530 = vmatpush1.msra.mxu0 %v2386
        %2531 = vmatprep.subr.mxu0 0.0
        %2532 = vmatpush1.msra.mxu0 %v2387
        %2533 = vmatprep.subr.mxu0 0.0
        %2534 = vmatpush1.msra.mxu0 %v2388
        %2535 = vmatprep.subr.mxu0 0.0
        %2536 = vmatpush1.msra.mxu0 %v2389
        %2537 = vmatprep.subr.mxu0 0.0
        %2538 = vmatpush1.msra.mxu0 %v2390
        %2539 = vmatprep.subr.mxu0 0.0
        %2540 = vmatpush1.msra.mxu0 %v2391
        %2541 = vmatprep.subr.mxu0 0.0
        %2542 = vmatpush1.msra.mxu0 %v2392
        %2543 = vmatprep.subr.mxu0 0.0
        %2544 = vmatpush1.msra.mxu0 %v2393
        %2545 = vmatprep.subr.mxu0 0.0
        %2546 = vmatpush1.msra.mxu0 %v2394
        %2547 = vmatprep.subr.mxu0 0.0
        %2548 = vmatpush1.msra.mxu0 %v2395
        %2549 = vmatprep.subr.mxu0 0.0
        %2550 = vmatpush1.msra.mxu0 %v2396
        %2551 = vmatprep.subr.mxu0 0.0
        %2552 = vmatpush1.msra.mxu0 %v2397
        %2553 = vmatprep.subr.mxu0 0.0
        %2554 = vmatpush1.msra.mxu0 %v2398
        %2555 = vmatprep.subr.mxu0 0.0
        %2556 = vmatpush1.msra.mxu0 %v2399
        %2557 = vmatprep.subr.mxu0 0.0
        %2558 = vmatpush1.msra.mxu0 0.0
        %2559 = vmatprep.subr.mxu0 0.0
        %2560 = vmatpush1.msra.mxu0 0.0
        %2561 = vmatprep.subr.mxu0 0.0
        %2562 = vmatpush1.msra.mxu0 0.0
        %2563 = vmatprep.subr.mxu0 0.0
        %2564 = vmatpush1.msra.mxu0 0.0
        %2565 = vmatprep.subr.mxu0 0.0
        %2566 = vmatpush1.msra.mxu0 0.0
        %2567 = vmatprep.subr.mxu0 0.0
        %2568 = vmatpush1.msra.mxu0 0.0
        %2569 = vmatprep.subr.mxu0 0.0
        %2570 = vmatpush1.msra.mxu0 0.0
        %2571 = vmatprep.subr.mxu0 0.0
        %2572 = vmatpush1.msra.mxu0 0.0
        %2573 = vmatprep.subr.mxu0 0.0
        %2574 = vmatpush1.msra.mxu0 0.0
        %2575 = vmatprep.subr.mxu0 0.0
        %2576 = vmatpush1.msra.mxu0 0.0
        %2577 = vmatprep.subr.mxu0 0.0
        %2578 = vmatpush1.msra.mxu0 0.0
        %2579 = vmatprep.subr.mxu0 0.0
        %2580 = vmatpush1.msra.mxu0 0.0
        %2581 = vmatprep.subr.mxu0 0.0
        %2582 = vmatpush1.msra.mxu0 0.0
        %2583 = vmatprep.subr.mxu0 0.0
        %2584 = vmatpush1.msra.mxu0 0.0
        %2585 = vmatprep.subr.mxu0 0.0
        %2586 = vmatpush1.msra.mxu0 0.0
        %2587 = vmatprep.subr.mxu0 0.0
        %2588 = vmatpush1.msra.mxu0 0.0
        %2589 = vmatprep.mubr.f32.mxu0 0.0
        %2590 = vmatmul.mubr.f32.gmra.mrb[0].mxu0 %v2453
        %v2591 = vpop.f32.mrb[0].mxu0
        %v2592 = vadd.f32 0.0, %v2591
        %v2593 = vpop.f32.mrb[0].mxu0
        %2594 = vdwg.mxu0
        %v2595 = vmul.f32 %v2592, 0.00390625
        %v2596 = vmul.f32 %v2524, %v2524
        %v2597 = vsub.f32 %v2595, %v2596
        %v2598 = vmax.f32 %v2597, 0.0
        %v2600 = vsel %vm907, %v2524, 0
        %2602 = vmatprep.subr.mxu0 0.0
        %2603 = vmatpush1.msra.mxu0 %v2400
        %2604 = vmatprep.subr.mxu0 0.0
        %2605 = vmatpush1.msra.mxu0 %v2401
        %2606 = vmatprep.subr.mxu0 0.0
        %2607 = vmatpush1.msra.mxu0 %v2402
        %2608 = vmatprep.subr.mxu0 0.0
        %2609 = vmatpush1.msra.mxu0 %v2403
        %2610 = vmatprep.subr.mxu0 0.0
        %2611 = vmatpush1.msra.mxu0 0.0
        %2612 = vmatprep.subr.mxu0 0.0
        %2613 = vmatpush1.msra.mxu0 0.0
        %2614 = vmatprep.subr.mxu0 0.0
        %2615 = vmatpush1.msra.mxu0 0.0
        %2616 = vmatprep.subr.mxu0 0.0
        %2617 = vmatpush1.msra.mxu0 0.0
        %2618 = vmatprep.subr.mxu0 0.0
        %2619 = vmatpush1.msra.mxu0 0.0
        %2620 = vmatprep.subr.mxu0 0.0
        %2621 = vmatpush1.msra.mxu0 0.0
        %2622 = vmatprep.subr.mxu0 0.0
        %2623 = vmatpush1.msra.mxu0 0.0
        %2624 = vmatprep.subr.mxu0 0.0
        %2625 = vmatpush1.msra.mxu0 0.0
        %2626 = vmatprep.subr.mxu0 0.0
        %2627 = vmatpush1.msra.mxu0 0.0
        %2628 = vmatprep.subr.mxu0 0.0
        %2629 = vmatpush1.msra.mxu0 0.0
        %2630 = vmatprep.subr.mxu0 0.0
        %2631 = vmatpush1.msra.mxu0 0.0
        %2632 = vmatprep.subr.mxu0 0.0
        %2633 = vmatpush1.msra.mxu0 0.0
        %2634 = vmatprep.subr.mxu0 0.0
        %2635 = vmatpush1.msra.mxu0 0.0
        %2636 = vmatprep.subr.mxu0 0.0
        %2637 = vmatpush1.msra.mxu0 0.0
        %2638 = vmatprep.subr.mxu0 0.0
        %2639 = vmatpush1.msra.mxu0 0.0
        %2640 = vmatprep.subr.mxu0 0.0
        %2641 = vmatpush1.msra.mxu0 0.0
        %2642 = vmatprep.subr.mxu0 0.0
        %2643 = vmatpush1.msra.mxu0 0.0
        %2644 = vmatprep.subr.mxu0 0.0
        %2645 = vmatpush1.msra.mxu0 0.0
        %2646 = vmatprep.subr.mxu0 0.0
        %2647 = vmatpush1.msra.mxu0 0.0
        %2648 = vmatprep.subr.mxu0 0.0
        %2649 = vmatpush1.msra.mxu0 0.0
        %2650 = vmatprep.subr.mxu0 0.0
        %2651 = vmatpush1.msra.mxu0 0.0
        %2652 = vmatprep.subr.mxu0 0.0
        %2653 = vmatpush1.msra.mxu0 0.0
        %2654 = vmatprep.subr.mxu0 0.0
        %2655 = vmatpush1.msra.mxu0 0.0
        %2656 = vmatprep.subr.mxu0 0.0
        %2657 = vmatpush1.msra.mxu0 0.0
        %2658 = vmatprep.subr.mxu0 0.0
        %2659 = vmatpush1.msra.mxu0 0.0
        %2660 = vmatprep.subr.mxu0 0.0
        %2661 = vmatpush1.msra.mxu0 0.0
        %2662 = vmatprep.subr.mxu0 0.0
        %2663 = vmatpush1.msra.mxu0 0.0
        %2664 = vmatprep.subr.mxu0 0.0
        %2665 = vmatpush1.msra.mxu0 0.0
        %2666 = vmatprep.mubr.f32.mxu0 0.0
        %2667 = vmatmul.mubr.f32.gmra.mrb[0].mxu0 %v2600
        %v2668 = vpop.f32.mrb[0].mxu0
        %v2669 = vadd.f32 0.0, %v2668
        %v2670 = vpop.f32.mrb[0].mxu0
        %2671 = vdwg.mxu0
        %v2673 = vsel %vm907, %v2598, 0
        %2675 = vmatprep.subr.mxu0 0.0
        %2676 = vmatpush1.msra.mxu0 %v2400
        %2677 = vmatprep.subr.mxu0 0.0
        %2678 = vmatpush1.msra.mxu0 %v2401
        %2679 = vmatprep.subr.mxu0 0.0
        %2680 = vmatpush1.msra.mxu0 %v2402
        %2681 = vmatprep.subr.mxu0 0.0
        %2682 = vmatpush1.msra.mxu0 %v2403
        %2683 = vmatprep.subr.mxu0 0.0
        %2684 = vmatpush1.msra.mxu0 0.0
        %2685 = vmatprep.subr.mxu0 0.0
        %2686 = vmatpush1.msra.mxu0 0.0
        %2687 = vmatprep.subr.mxu0 0.0
        %2688 = vmatpush1.msra.mxu0 0.0
        %2689 = vmatprep.subr.mxu0 0.0
        %2690 = vmatpush1.msra.mxu0 0.0
        %2691 = vmatprep.subr.mxu0 0.0
        %2692 = vmatpush1.msra.mxu0 0.0
        %2693 = vmatprep.subr.mxu0 0.0
        %2694 = vmatpush1.msra.mxu0 0.0
        %2695 = vmatprep.subr.mxu0 0.0
        %2696 = vmatpush1.msra.mxu0 0.0
        %2697 = vmatprep.subr.mxu0 0.0
        %2698 = vmatpush1.msra.mxu0 0.0
        %2699 = vmatprep.subr.mxu0 0.0
        %2700 = vmatpush1.msra.mxu0 0.0
        %2701 = vmatprep.subr.mxu0 0.0
        %2702 = vmatpush1.msra.mxu0 0.0
        %2703 = vmatprep.subr.mxu0 0.0
        %2704 = vmatpush1.msra.mxu0 0.0
        %2705 = vmatprep.subr.mxu0 0.0
        %2706 = vmatpush1.msra.mxu0 0.0
        %2707 = vmatprep.subr.mxu0 0.0
        %2708 = vmatpush1.msra.mxu0 0.0
        %2709 = vmatprep.subr.mxu0 0.0
        %2710 = vmatpush1.msra.mxu0 0.0
        %2711 = vmatprep.subr.mxu0 0.0
        %2712 = vmatpush1.msra.mxu0 0.0
        %2713 = vmatprep.subr.mxu0 0.0
        %2714 = vmatpush1.msra.mxu0 0.0
        %2715 = vmatprep.subr.mxu0 0.0
        %2716 = vmatpush1.msra.mxu0 0.0
        %2717 = vmatprep.subr.mxu0 0.0
        %2718 = vmatpush1.msra.mxu0 0.0
        %2719 = vmatprep.subr.mxu0 0.0
        %2720 = vmatpush1.msra.mxu0 0.0
        %2721 = vmatprep.subr.mxu0 0.0
        %2722 = vmatpush1.msra.mxu0 0.0
        %2723 = vmatprep.subr.mxu0 0.0
        %2724 = vmatpush1.msra.mxu0 0.0
        %2725 = vmatprep.subr.mxu0 0.0
        %2726 = vmatpush1.msra.mxu0 0.0
        %2727 = vmatprep.subr.mxu0 0.0
        %2728 = vmatpush1.msra.mxu0 0.0
        %2729 = vmatprep.subr.mxu0 0.0
        %2730 = vmatpush1.msra.mxu0 0.0
        %2731 = vmatprep.subr.mxu0 0.0
        %2732 = vmatpush1.msra.mxu0 0.0
        %2733 = vmatprep.subr.mxu0 0.0
        %2734 = vmatpush1.msra.mxu0 0.0
        %2735 = vmatprep.subr.mxu0 0.0
        %2736 = vmatpush1.msra.mxu0 0.0
        %2737 = vmatprep.subr.mxu0 0.0
        %2738 = vmatpush1.msra.mxu0 0.0
        %2739 = vmatprep.mubr.f32.mxu0 0.0
        %2740 = vmatmul.mubr.f32.gmra.mrb[0].mxu0 %v2673
        %v2741 = vpop.f32.mrb[0].mxu0
        %v2742 = vadd.f32 1e-06, %v2741
        %v2743 = vpop.f32.mrb[0].mxu0
        %2744 = vdwg.mxu0
        %v2745 = vrsqrt.pop %v2742
        %v2746 = vmul.f32 %v2745, %v2404
        %v2747 = vmul.f32 %v2669, %v2746
        %v2748 = vsub.f32 %v2405, %v2747
        %v2749 = vlaneseq
        %v2750 = vshrl.u32 %v2749, 7
        %v2751 = vsub.s32 0, %v2750
        %v2752 = vrot.slane %v2746, %v2751
        %v2753 = vmul.f32 %v2412, %v2752
        %v2754 = vmul.f32 %v2413, %v2752
        %v2755 = vmul.f32 %v2414, %v2752
        %v2756 = vmul.f32 %v2415, %v2752
        %v2757 = vmul.f32 %v2416, %v2752
        %v2758 = vmul.f32 %v2417, %v2752
        %v2759 = vmul.f32 %v2418, %v2752
        %v2760 = vmul.f32 %v2419, %v2752
        %v2762 = vlaneseq
        %v2763 = vshrl.u32 %v2762, 7
        %v2764 = vsub.s32 0, %v2763
        %v2765 = vrot.slane %v2748, %v2764
        %v2767 = vadd.f32 %v2753, %v2765
        %v2768 = vadd.f32 %v2754, %v2765
        %v2769 = vadd.f32 %v2755, %v2765
        %v2770 = vadd.f32 %v2756, %v2765
        %v2771 = vadd.f32 %v2757, %v2765
        %v2772 = vadd.f32 %v2758, %v2765
        %v2773 = vadd.f32 %v2759, %v2765
        %v2774 = vadd.f32 %v2760, %v2765
        %v2775 = vsub.f32 0.0, %v2767
        %v2776 = vsub.f32 0.0, %v2768
        %v2777 = vsub.f32 0.0, %v2769
        %v2778 = vsub.f32 0.0, %v2770
        %v2779 = vsub.f32 0.0, %v2771
        %v2780 = vsub.f32 0.0, %v2772
        %v2781 = vsub.f32 0.0, %v2773
        %v2782 = vsub.f32 0.0, %v2774
        %v2783 = vmul.f32 %v2775, 1.442695
        %v2784 = vpow.pop %v2783
        %v2785 = vmul.f32 %v2776, 1.442695
        %v2786 = vpow.pop %v2785
        %v2787 = vmul.f32 %v2777, 1.442695
        %v2788 = vpow.pop %v2787
        %v2789 = vmul.f32 %v2778, 1.442695
        %v2790 = vpow.pop %v2789
        %v2791 = vmul.f32 %v2779, 1.442695
        %v2792 = vpow.pop %v2791
        %v2793 = vmul.f32 %v2780, 1.442695
        %v2794 = vpow.pop %v2793
        %v2795 = vmul.f32 %v2781, 1.442695
        %v2796 = vpow.pop %v2795
        %v2797 = vmul.f32 %v2782, 1.442695
        %v2798 = vpow.pop %v2797
        %v2799 = vadd.f32 %v2784, 1.0
        %v2800 = vadd.f32 %v2786, 1.0
        %v2801 = vadd.f32 %v2788, 1.0
        %v2802 = vadd.f32 %v2790, 1.0
        %v2803 = vadd.f32 %v2792, 1.0
        %v2804 = vadd.f32 %v2794, 1.0
        %v2805 = vadd.f32 %v2796, 1.0
        %v2806 = vadd.f32 %v2798, 1.0
        %v2807 = vrcp.pop %v2799
        %v2808 = vrcp.pop %v2800
        %v2809 = vrcp.pop %v2801
        %v2810 = vrcp.pop %v2802
        %v2811 = vrcp.pop %v2803
        %v2812 = vrcp.pop %v2804
        %v2813 = vrcp.pop %v2805
        %v2814 = vrcp.pop %v2806
        %v2815 = vmul.f32 %v2767, %v2807
        %v2816 = vmul.f32 %v2768, %v2808
        %v2817 = vmul.f32 %v2769, %v2809
        %v2818 = vmul.f32 %v2770, %v2810
        %v2819 = vmul.f32 %v2771, %v2811
        %v2820 = vmul.f32 %v2772, %v2812
        %v2821 = vmul.f32 %v2773, %v2813
        %v2822 = vmul.f32 %v2774, %v2814
        %v2823 = vld [vmem:[%s13] sm:$0x1]
        %v2824 = vmul.f32 %v2822, %v611
        %v2825 = vmul.f32 %v2815, %v612
        %v2826 = vmul.f32 %v2816, %v613
        %v2827 = vmul.f32 %v2817, %v614
        %v2828 = vmul.f32 %v2818, %v615
        %v2829 = vmul.f32 %v2819, %v616
        %v2830 = vmul.f32 %v2820, %v617
        %v2831 = vmul.f32 %v2821, %v618
        %v2832 = vrot.slane %v2824, 7
        %v2833 = vrot.slane %v2825, 7
        %v2834 = vrot.slane %v2826, 7
        %v2835 = vrot.slane %v2827, 7
        %v2836 = vrot.slane %v2828, 7
        %v2837 = vrot.slane %v2829, 7
        %v2838 = vrot.slane %v2830, 7
        %v2839 = vrot.slane %v2831, 7
        %v2840 = vsel %vm1149, %v2838, %v2839
        %v2841 = vsel %vm1149, %v2837, %v2838
        %v2842 = vsel %vm1149, %v2836, %v2837
        %v2843 = vsel %vm1149, %v2835, %v2836
        %v2844 = vsel %vm1149, %v2834, %v2835
        %v2845 = vsel %vm1149, %v2833, %v2834
        %v2846 = vsel %vm1149, %v2832, %v2833
        %v2847 = vsel %vm1149, %v2839, %v2832
        %v2848 = vmul.f32 %v2847, %v659
        %v2849 = vmul.f32 %v2846, %v660
        %v2850 = vmul.f32 %v2845, %v661
        %v2851 = vmul.f32 %v2844, %v662
        %v2852 = vmul.f32 %v2843, %v663
        %v2853 = vmul.f32 %v2842, %v664
        %v2854 = vmul.f32 %v2841, %v665
        %v2855 = vmul.f32 %v2840, %v666
        %v2856 = vpack.c.bf16 %v2849, %v2848
        %v2857 = vpack.c.bf16 %v2851, %v2850
        %v2858 = vpack.c.bf16 %v2853, %v2852
        %v2859 = vpack.c.bf16 %v2855, %v2854
        %v2860 = vpack.c.bf16 %v2825, %v2824
        %v2861 = vpack.c.bf16 %v2827, %v2826
        %v2862 = vpack.c.bf16 %v2829, %v2828
        %v2863 = vpack.c.bf16 %v2831, %v2830
        %v2864 = vrot.slane %v2824, 1
        %v2865 = vrot.slane %v2825, 1
        %v2866 = vrot.slane %v2826, 1
        %v2867 = vrot.slane %v2827, 1
        %v2868 = vrot.slane %v2828, 1
        %v2869 = vrot.slane %v2829, 1
        %v2870 = vrot.slane %v2830, 1
        %v2871 = vrot.slane %v2831, 1
        %v2872 = vsel %vm1182, %v2870, %v2871
        %v2873 = vsel %vm1182, %v2869, %v2870
        %v2874 = vsel %vm1182, %v2868, %v2869
        %v2875 = vsel %vm1182, %v2867, %v2868
        %v2876 = vsel %vm1182, %v2866, %v2867
        %v2877 = vsel %vm1182, %v2865, %v2866
        %v2878 = vsel %vm1182, %v2864, %v2865
        %v2879 = vsel %vm1182, %v2871, %v2864
        %v2880 = vmul.f32 %v2878, %v683
        %v2881 = vmul.f32 %v2877, %v684
        %v2882 = vmul.f32 %v2876, %v685
        %v2883 = vmul.f32 %v2875, %v686
        %v2884 = vmul.f32 %v2874, %v687
        %v2885 = vmul.f32 %v2873, %v688
        %v2886 = vmul.f32 %v2872, %v689
        %v2887 = vmul.f32 %v2879, %v690
        %v2888 = vpack.c.bf16 %v2881, %v2880
        %v2889 = vpack.c.bf16 %v2883, %v2882
        %v2890 = vpack.c.bf16 %v2885, %v2884
        %v2891 = vpack.c.bf16 %v2887, %v2886
        %v2892 = vld [vmem:[#allocation2] sm:$0xf]
        %v2893 = vld [vmem:[#allocation2 + $0x4] sm:$0xf]
        %v2894 = vld [vmem:[#allocation2 + $0x8] sm:$0xf]
        %v2895 = vld [vmem:[#allocation2 + $0xc] sm:$0xf]
        %v2896 = vld [vmem:[#allocation2 + $0x10] sm:$0xf]
        %v2897 = vld [vmem:[#allocation2 + $0x14] sm:$0xf]
        %v2898 = vld [vmem:[#allocation2 + $0x18] sm:$0xf]
        %v2899 = vld [vmem:[#allocation2 + $0x1c] sm:$0xf]
        %v2900 = vld [vmem:[#allocation2 + $0x20] sm:$0xf]
        %v2901 = vld [vmem:[#allocation2 + $0x24] sm:$0xf]
        %v2902 = vld [vmem:[#allocation2 + $0x28] sm:$0xf]
        %v2903 = vld [vmem:[#allocation2 + $0x2c] sm:$0xf]
        %v2904 = vld [vmem:[#allocation2 + $0x30] sm:$0xf]
        %v2905 = vld [vmem:[#allocation2 + $0x34] sm:$0xf]
        %v2906 = vld [vmem:[#allocation2 + $0x38] sm:$0xf]
        %v2907 = vld [vmem:[#allocation2 + $0x3c] sm:$0xf]
        %v2908 = vld [vmem:[#allocation2 + $0x40] sm:$0xf]
        %v2909 = vld [vmem:[#allocation2 + $0x44] sm:$0xf]
        %v2910 = vld [vmem:[#allocation2 + $0x48] sm:$0xf]
        %v2911 = vld [vmem:[#allocation2 + $0x4c] sm:$0xf]
        %v2912 = vld [vmem:[#allocation2 + $0x50] sm:$0xf]
        %v2913 = vld [vmem:[#allocation2 + $0x54] sm:$0xf]
        %v2914 = vld [vmem:[#allocation2 + $0x58] sm:$0xf]
        %v2915 = vld [vmem:[#allocation2 + $0x5c] sm:$0xf]
        %v2916 = vld [vmem:[#allocation2 + $0x60] sm:$0xf]
        %v2917 = vld [vmem:[#allocation2 + $0x64] sm:$0xf]
        %v2918 = vld [vmem:[#allocation2 + $0x68] sm:$0xf]
        %v2919 = vld [vmem:[#allocation2 + $0x6c] sm:$0xf]
        %v2920 = vld [vmem:[#allocation2 + $0x70] sm:$0xf]
        %v2921 = vld [vmem:[#allocation2 + $0x74] sm:$0xf]
        %v2922 = vld [vmem:[#allocation2 + $0x78] sm:$0xf]
        %v2923 = vld [vmem:[#allocation2 + $0x7c] sm:$0xf]
        %v2924 = vld [vmem:[#allocation2 + $0x80] sm:$0xf]
        %v2925 = vld [vmem:[#allocation2 + $0x84] sm:$0xf]
        %v2926 = vld [vmem:[#allocation2 + $0x88] sm:$0xf]
        %v2927 = vld [vmem:[#allocation2 + $0x8c] sm:$0xf]
        %v2928 = vld [vmem:[#allocation2 + $0x90] sm:$0xf]
        %v2929 = vld [vmem:[#allocation2 + $0x94] sm:$0xf]
        %v2930 = vld [vmem:[#allocation2 + $0x98] sm:$0xf]
        %v2931 = vld [vmem:[#allocation2 + $0x9c] sm:$0xf]
        %v2932 = vld [vmem:[#allocation2 + $0xa0] sm:$0xf]
        %v2933 = vld [vmem:[#allocation2 + $0xa4] sm:$0xf]
        %v2934 = vld [vmem:[#allocation2 + $0xa8] sm:$0xf]
        %v2935 = vld [vmem:[#allocation2 + $0xac] sm:$0xf]
        %v2936 = vld [vmem:[#allocation2 + $0xb0] sm:$0xf]
        %v2937 = vld [vmem:[#allocation2 + $0xb4] sm:$0xf]
        %v2938 = vld [vmem:[#allocation2 + $0xb8] sm:$0xf]
        %v2939 = vld [vmem:[#allocation2 + $0xbc] sm:$0xf]
        %v2940 = vrot.slane %v2815, 7
        %v2941 = vrot.slane %v2816, 7
        %v2942 = vrot.slane %v2817, 7
        %v2943 = vrot.slane %v2818, 7
        %v2944 = vrot.slane %v2819, 7
        %v2945 = vrot.slane %v2820, 7
        %v2946 = vrot.slane %v2821, 7
        %v2947 = vrot.slane %v2822, 7
        %v2948 = vsel %vm1149, %v2946, %v2947
        %v2949 = vsel %vm1149, %v2945, %v2946
        %v2950 = vsel %vm1149, %v2944, %v2945
        %v2951 = vsel %vm1149, %v2943, %v2944
        %v2952 = vsel %vm1149, %v2942, %v2943
        %v2953 = vsel %vm1149, %v2941, %v2942
        %v2954 = vsel %vm1149, %v2940, %v2941
        %v2955 = vsel %vm1149, %v2947, %v2940
        %v2956 = vmul.f32 %v2955, %v659
        %v2957 = vmul.f32 %v2954, %v660
        %v2958 = vmul.f32 %v2953, %v661
        %v2959 = vmul.f32 %v2952, %v662
        %v2960 = vmul.f32 %v2951, %v663
        %v2961 = vmul.f32 %v2950, %v664
        %v2962 = vmul.f32 %v2949, %v665
        %v2963 = vmul.f32 %v2948, %v666
        %v2964 = vpack.c.bf16 %v2957, %v2956
        %v2965 = vpack.c.bf16 %v2959, %v2958
        %v2966 = vpack.c.bf16 %v2961, %v2960
        %v2967 = vpack.c.bf16 %v2963, %v2962
        %v2968 = vpack.c.bf16 %v2816, %v2815
        %v2969 = vpack.c.bf16 %v2818, %v2817
        %v2970 = vpack.c.bf16 %v2820, %v2819
        %v2971 = vpack.c.bf16 %v2822, %v2821
        %v2972 = vrot.slane %v2815, 1
        %v2973 = vrot.slane %v2816, 1
        %v2974 = vrot.slane %v2817, 1
        %v2975 = vrot.slane %v2818, 1
        %v2976 = vrot.slane %v2819, 1
        %v2977 = vrot.slane %v2820, 1
        %v2978 = vrot.slane %v2821, 1
        %v2979 = vrot.slane %v2822, 1
        %v2980 = vsel %vm1182, %v2978, %v2979
        %v2981 = vsel %vm1182, %v2977, %v2978
        %v2982 = vsel %vm1182, %v2976, %v2977
        %v2983 = vsel %vm1182, %v2975, %v2976
        %v2984 = vsel %vm1182, %v2974, %v2975
        %v2985 = vsel %vm1182, %v2973, %v2974
        %v2986 = vsel %vm1182, %v2972, %v2973
        %v2987 = vsel %vm1182, %v2979, %v2972
        %v2988 = vmul.f32 %v2986, %v683
        %v2989 = vmul.f32 %v2985, %v684
        %v2990 = vmul.f32 %v2984, %v685
        %v2991 = vmul.f32 %v2983, %v686
        %v2992 = vmul.f32 %v2982, %v687
        %v2993 = vmul.f32 %v2981, %v688
        %v2994 = vmul.f32 %v2980, %v689
        %v2995 = vmul.f32 %v2987, %v690
        %v2996 = vpack.c.bf16 %v2989, %v2988
        %v2997 = vpack.c.bf16 %v2991, %v2990
        %v2998 = vpack.c.bf16 %v2993, %v2992
        %v2999 = vpack.c.bf16 %v2995, %v2994
        %s3000 = scalar_lea.vmem [#allocation2], 192
        %v3001 = vld [vmem:[%s3000] sm:$0xf]
        %v3002 = vld [vmem:[%s3000 + $0x4] sm:$0xf]
        %v3003 = vld [vmem:[%s3000 + $0x8] sm:$0xf]
        %v3004 = vld [vmem:[%s3000 + $0xc] sm:$0xf]
        %v3005 = vld [vmem:[%s3000 + $0x10] sm:$0xf]
        %v3006 = vld [vmem:[%s3000 + $0x14] sm:$0xf]
        %v3007 = vld [vmem:[%s3000 + $0x18] sm:$0xf]
        %v3008 = vld [vmem:[%s3000 + $0x1c] sm:$0xf]
        %v3009 = vld [vmem:[%s3000 + $0x20] sm:$0xf]
        %v3010 = vld [vmem:[%s3000 + $0x24] sm:$0xf]
        %v3011 = vld [vmem:[%s3000 + $0x28] sm:$0xf]
        %v3012 = vld [vmem:[%s3000 + $0x2c] sm:$0xf]
        %v3013 = vld [vmem:[%s3000 + $0x30] sm:$0xf]
        %v3014 = vld [vmem:[%s3000 + $0x34] sm:$0xf]
        %v3015 = vld [vmem:[%s3000 + $0x38] sm:$0xf]
        %v3016 = vld [vmem:[%s3000 + $0x3c] sm:$0xf]
        %v3017 = vld [vmem:[%s3000 + $0x40] sm:$0xf]
        %v3018 = vld [vmem:[%s3000 + $0x44] sm:$0xf]
        %v3019 = vld [vmem:[%s3000 + $0x48] sm:$0xf]
        %v3020 = vld [vmem:[%s3000 + $0x4c] sm:$0xf]
        %v3021 = vld [vmem:[%s3000 + $0x50] sm:$0xf]
        %v3022 = vld [vmem:[%s3000 + $0x54] sm:$0xf]
        %v3023 = vld [vmem:[%s3000 + $0x58] sm:$0xf]
        %v3024 = vld [vmem:[%s3000 + $0x5c] sm:$0xf]
        %v3025 = vld [vmem:[%s3000 + $0x60] sm:$0xf]
        %v3026 = vld [vmem:[%s3000 + $0x64] sm:$0xf]
        %v3027 = vld [vmem:[%s3000 + $0x68] sm:$0xf]
        %v3028 = vld [vmem:[%s3000 + $0x6c] sm:$0xf]
        %v3029 = vld [vmem:[%s3000 + $0x70] sm:$0xf]
        %v3030 = vld [vmem:[%s3000 + $0x74] sm:$0xf]
        %v3031 = vld [vmem:[%s3000 + $0x78] sm:$0xf]
        %v3032 = vld [vmem:[%s3000 + $0x7c] sm:$0xf]
        %v3033 = vld [vmem:[%s3000 + $0x80] sm:$0xf]
        %v3034 = vld [vmem:[%s3000 + $0x84] sm:$0xf]
        %v3035 = vld [vmem:[%s3000 + $0x88] sm:$0xf]
        %v3036 = vld [vmem:[%s3000 + $0x8c] sm:$0xf]
        %v3037 = vld [vmem:[%s3000 + $0x90] sm:$0xf]
        %v3038 = vld [vmem:[%s3000 + $0x94] sm:$0xf]
        %v3039 = vld [vmem:[%s3000 + $0x98] sm:$0xf]
        %v3040 = vld [vmem:[%s3000 + $0x9c] sm:$0xf]
        %v3041 = vld [vmem:[%s3000 + $0xa0] sm:$0xf]
        %v3042 = vld [vmem:[%s3000 + $0xa4] sm:$0xf]
        %v3043 = vld [vmem:[%s3000 + $0xa8] sm:$0xf]
        %v3044 = vld [vmem:[%s3000 + $0xac] sm:$0xf]
        %v3045 = vld [vmem:[%s3000 + $0xb0] sm:$0xf]
        %v3046 = vld [vmem:[%s3000 + $0xb4] sm:$0xf]
        %v3047 = vld [vmem:[%s3000 + $0xb8] sm:$0xf]
        %v3048 = vld [vmem:[%s3000 + $0xbc] sm:$0xf]
        %v3097 = vunpack.c.l.b16 %v3001
        %v3098 = vunpack.c.l.b16 %v3002
        %v3099 = vunpack.c.l.b16 %v3003
        %v3100 = vunpack.c.l.b16 %v3004
        %v3101 = vunpack.c.l.b16 %v3005
        %v3102 = vunpack.c.l.b16 %v3006
        %v3103 = vunpack.c.l.b16 %v3007
        %v3104 = vunpack.c.l.b16 %v3008
        %v3105 = vunpack.c.l.b16 %v3009
        %v3106 = vunpack.c.l.b16 %v3010
        %v3107 = vunpack.c.l.b16 %v3011
        %v3108 = vunpack.c.l.b16 %v3012
        %v3109 = vunpack.c.l.b16 %v3013
        %v3110 = vunpack.c.l.b16 %v3014
        %v3111 = vunpack.c.l.b16 %v3015
        %v3112 = vunpack.c.l.b16 %v3016
        %v3113 = vunpack.c.l.b16 %v3017
        %v3114 = vunpack.c.l.b16 %v3018
        %v3115 = vunpack.c.l.b16 %v3019
        %v3116 = vunpack.c.l.b16 %v3020
        %v3117 = vunpack.c.l.b16 %v3021
        %v3118 = vunpack.c.l.b16 %v3022
        %v3119 = vunpack.c.l.b16 %v3023
        %v3120 = vunpack.c.l.b16 %v3024
        %v3121 = vunpack.c.l.b16 %v3025
        %v3122 = vunpack.c.l.b16 %v3026
        %v3123 = vunpack.c.l.b16 %v3027
        %v3124 = vunpack.c.l.b16 %v3028
        %v3125 = vunpack.c.l.b16 %v3029
        %v3126 = vunpack.c.l.b16 %v3030
        %v3127 = vunpack.c.l.b16 %v3031
        %v3128 = vunpack.c.l.b16 %v3032
        %v3129 = vunpack.c.l.b16 %v3033
        %v3130 = vunpack.c.l.b16 %v3034
        %v3131 = vunpack.c.l.b16 %v3035
        %v3132 = vunpack.c.l.b16 %v3036
        %v3133 = vunpack.c.l.b16 %v3037
        %v3134 = vunpack.c.l.b16 %v3038
        %v3135 = vunpack.c.l.b16 %v3039
        %v3136 = vunpack.c.l.b16 %v3040
        %v3137 = vunpack.c.l.b16 %v3041
        %v3138 = vunpack.c.l.b16 %v3042
        %v3139 = vunpack.c.l.b16 %v3043
        %v3140 = vunpack.c.l.b16 %v3044
        %v3141 = vunpack.c.l.b16 %v3045
        %v3142 = vunpack.c.l.b16 %v3046
        %v3143 = vunpack.c.l.b16 %v3047
        %v3144 = vunpack.c.l.b16 %v3048
        %v3145 = vpack.c.b16 %v3098, %v3097
        %v3146 = vpack.c.b16 %v3100, %v3099
        %v3147 = vpack.c.b16 %v3102, %v3101
        %v3148 = vpack.c.b16 %v3104, %v3103
        %v3149 = vpack.c.b16 %v3106, %v3105
        %v3150 = vpack.c.b16 %v3108, %v3107
        %v3151 = vpack.c.b16 %v3110, %v3109
        %v3152 = vpack.c.b16 %v3112, %v3111
        %v3153 = vpack.c.b16 %v3114, %v3113
        %v3154 = vpack.c.b16 %v3116, %v3115
        %v3155 = vpack.c.b16 %v3118, %v3117
        %v3156 = vpack.c.b16 %v3120, %v3119
        %v3157 = vpack.c.b16 %v3122, %v3121
        %v3158 = vpack.c.b16 %v3124, %v3123
        %v3159 = vpack.c.b16 %v3126, %v3125
        %v3160 = vpack.c.b16 %v3128, %v3127
        %v3161 = vpack.c.b16 %v3130, %v3129
        %v3162 = vpack.c.b16 %v3132, %v3131
        %v3163 = vpack.c.b16 %v3134, %v3133
        %v3164 = vpack.c.b16 %v3136, %v3135
        %v3165 = vpack.c.b16 %v3138, %v3137
        %v3166 = vpack.c.b16 %v3140, %v3139
        %v3167 = vpack.c.b16 %v3142, %v3141
        %v3168 = vpack.c.b16 %v3144, %v3143
        %3193 = vmatprep.subr.bf16.mxu0 0
        %3194 = vmatpush1.bf16.msra.mxu0 %v3145
        %3195 = vmatprep.subr.bf16.mxu0 0
        %3196 = vmatpush1.bf16.msra.mxu0 %v3146
        %3197 = vmatprep.subr.bf16.mxu0 0
        %3198 = vmatpush1.bf16.msra.mxu0 %v3147
        %3199 = vmatprep.subr.bf16.mxu0 0
        %3200 = vmatpush1.bf16.msra.mxu0 %v3148
        %3201 = vmatprep.subr.bf16.mxu0 0
        %3202 = vmatpush1.bf16.msra.mxu0 %v3149
        %3203 = vmatprep.subr.bf16.mxu0 0
        %3204 = vmatpush1.bf16.msra.mxu0 %v3150
        %3205 = vmatprep.subr.bf16.mxu0 0
        %3206 = vmatpush1.bf16.msra.mxu0 %v3151
        %3207 = vmatprep.subr.bf16.mxu0 0
        %3208 = vmatpush1.bf16.msra.mxu0 %v3152
        %3209 = vmatprep.subr.bf16.mxu0 0
        %3210 = vmatpush1.bf16.msra.mxu0 %v3153
        %3211 = vmatprep.subr.bf16.mxu0 0
        %3212 = vmatpush1.bf16.msra.mxu0 %v3154
        %3213 = vmatprep.subr.bf16.mxu0 0
        %3214 = vmatpush1.bf16.msra.mxu0 %v3155
        %3215 = vmatprep.subr.bf16.mxu0 0
        %3216 = vmatpush1.bf16.msra.mxu0 %v3156
        %3217 = vmatprep.subr.bf16.mxu0 0
        %3218 = vmatpush1.bf16.msra.mxu0 %v3157
        %3219 = vmatprep.subr.bf16.mxu0 0
        %3220 = vmatpush1.bf16.msra.mxu0 %v3158
        %3221 = vmatprep.subr.bf16.mxu0 0
        %3222 = vmatpush1.bf16.msra.mxu0 %v3159
        %3223 = vmatprep.subr.bf16.mxu0 0
        %3224 = vmatpush1.bf16.msra.mxu0 %v3160
        %3225 = vmatprep.mubr.bf16.mxu0 %v2968
        %3226 = vmatmul.mubr.bf16.gmra.mrb[0].mxu0 %v2964
        %v3227 = vpop.f32.mrb[0].mxu0
        %v3228 = vadd.f32 0.0, %v3227
        %v3229 = vpop.f32.mrb[0].mxu0
        %v3230 = vpop.f32.mrb[0].mxu0
        %v3231 = vadd.f32 0.0, %v3230
        %v3232 = vpop.f32.mrb[0].mxu0
        %3233 = vmatprep.mubr.bf16.mxu0 %v2969
        %3234 = vmatmul.mubr.bf16.gmra.mrb[0].mxu0 %v2965
        %v3235 = vpop.f32.mrb[0].mxu0
        %v3236 = vadd.f32 0.0, %v3235
        %v3237 = vpop.f32.mrb[0].mxu0
        %v3238 = vpop.f32.mrb[0].mxu0
        %v3239 = vadd.f32 0.0, %v3238
        %v3240 = vpop.f32.mrb[0].mxu0
        %3241 = vmatprep.mubr.bf16.mxu0 %v2970
        %3242 = vmatmul.mubr.bf16.gmra.mrb[0].mxu0 %v2966
        %v3243 = vpop.f32.mrb[0].mxu0
        %v3244 = vadd.f32 0.0, %v3243
        %v3245 = vpop.f32.mrb[0].mxu0
        %v3246 = vpop.f32.mrb[0].mxu0
        %v3247 = vadd.f32 0.0, %v3246
        %v3248 = vpop.f32.mrb[0].mxu0
        %3249 = vmatprep.mubr.bf16.mxu0 %v2971
        %3250 = vmatmul.mubr.bf16.gmra.mrb[0].mxu0 %v2967
        %v3251 = vpop.f32.mrb[0].mxu0
        %v3252 = vadd.f32 0.0, %v3251
        %v3253 = vpop.f32.mrb[0].mxu0
        %v3254 = vpop.f32.mrb[0].mxu0
        %v3255 = vadd.f32 0.0, %v3254
        %v3256 = vpop.f32.mrb[0].mxu0
        %3257 = vdwg.mxu0
        %3258 = vmatprep.subr.bf16.mxu0 0
        %3259 = vmatpush1.bf16.msra.mxu0 %v3161
        %3260 = vmatprep.subr.bf16.mxu0 0
        %3261 = vmatpush1.bf16.msra.mxu0 %v3162
        %3262 = vmatprep.subr.bf16.mxu0 0
        %3263 = vmatpush1.bf16.msra.mxu0 %v3163
        %3264 = vmatprep.subr.bf16.mxu0 0
        %3265 = vmatpush1.bf16.msra.mxu0 %v3164
        %3266 = vmatprep.subr.bf16.mxu0 0
        %3267 = vmatpush1.bf16.msra.mxu0 %v3165
        %3268 = vmatprep.subr.bf16.mxu0 0
        %3269 = vmatpush1.bf16.msra.mxu0 %v3166
        %3270 = vmatprep.subr.bf16.mxu0 0
        %3271 = vmatpush1.bf16.msra.mxu0 %v3167
        %3272 = vmatprep.subr.bf16.mxu0 0
        %3273 = vmatpush1.bf16.msra.mxu0 %v3168
        %3274 = vmatprep.subr.bf16.mxu0 0
        %3275 = vmatpush1.bf16.msra.mxu0 0
        %3276 = vmatprep.subr.bf16.mxu0 0
        %3277 = vmatpush1.bf16.msra.mxu0 0
        %3278 = vmatprep.subr.bf16.mxu0 0
        %3279 = vmatpush1.bf16.msra.mxu0 0
        %3280 = vmatprep.subr.bf16.mxu0 0
        %3281 = vmatpush1.bf16.msra.mxu0 0
        %3282 = vmatprep.subr.bf16.mxu0 0
        %3283 = vmatpush1.bf16.msra.mxu0 0
        %3284 = vmatprep.subr.bf16.mxu0 0
        %3285 = vmatpush1.bf16.msra.mxu0 0
        %3286 = vmatprep.subr.bf16.mxu0 0
        %3287 = vmatpush1.bf16.msra.mxu0 0
        %3288 = vmatprep.subr.bf16.mxu0 0
        %3289 = vmatpush1.bf16.msra.mxu0 0
        %3290 = vmatprep.mubr.bf16.mxu0 0
        %3291 = vmatmul.mubr.bf16.gmra.mrb[0].mxu0 %v2996
        %v3292 = vpop.f32.mrb[0].mxu0
        %v3293 = vadd.f32 %v3228, %v3292
        %v3294 = vpop.f32.mrb[0].mxu0
        %v3295 = vpop.f32.mrb[0].mxu0
        %v3296 = vadd.f32 %v3231, %v3295
        %v3297 = vpop.f32.mrb[0].mxu0
        %3298 = vmatprep.mubr.bf16.mxu0 0
        %3299 = vmatmul.mubr.bf16.gmra.mrb[0].mxu0 %v2997
        %v3300 = vpop.f32.mrb[0].mxu0
        %v3301 = vadd.f32 %v3236, %v3300
        %v3302 = vpop.f32.mrb[0].mxu0
        %v3303 = vpop.f32.mrb[0].mxu0
        %v3304 = vadd.f32 %v3239, %v3303
        %v3305 = vpop.f32.mrb[0].mxu0
        %3306 = vmatprep.mubr.bf16.mxu0 0
        %3307 = vmatmul.mubr.bf16.gmra.mrb[0].mxu0 %v2998
        %v3308 = vpop.f32.mrb[0].mxu0
        %v3309 = vadd.f32 %v3244, %v3308
        %v3310 = vpop.f32.mrb[0].mxu0
        %v3311 = vpop.f32.mrb[0].mxu0
        %v3312 = vadd.f32 %v3247, %v3311
        %v3313 = vpop.f32.mrb[0].mxu0
        %3314 = vmatprep.mubr.bf16.mxu0 0
        %3315 = vmatmul.mubr.bf16.gmra.mrb[0].mxu0 %v2999
        %v3316 = vpop.f32.mrb[0].mxu0
        %v3317 = vadd.f32 %v3252, %v3316
        %v3318 = vpop.f32.mrb[0].mxu0
        %v3319 = vpop.f32.mrb[0].mxu0
        %v3320 = vadd.f32 %v3255, %v3319
        %v3321 = vpop.f32.mrb[0].mxu0
        %3322 = vdwg.mxu0
        %v3371 = vunpack.c.l.b16 %v2892
        %v3372 = vunpack.c.l.b16 %v2893
        %v3373 = vunpack.c.l.b16 %v2894
        %v3374 = vunpack.c.l.b16 %v2895
        %v3375 = vunpack.c.l.b16 %v2896
        %v3376 = vunpack.c.l.b16 %v2897
        %v3377 = vunpack.c.l.b16 %v2898
        %v3378 = vunpack.c.l.b16 %v2899
        %v3379 = vunpack.c.l.b16 %v2900
        %v3380 = vunpack.c.l.b16 %v2901
        %v3381 = vunpack.c.l.b16 %v2902
        %v3382 = vunpack.c.l.b16 %v2903
        %v3383 = vunpack.c.l.b16 %v2904
        %v3384 = vunpack.c.l.b16 %v2905
        %v3385 = vunpack.c.l.b16 %v2906
        %v3386 = vunpack.c.l.b16 %v2907
        %v3387 = vunpack.c.l.b16 %v2908
        %v3388 = vunpack.c.l.b16 %v2909
        %v3389 = vunpack.c.l.b16 %v2910
        %v3390 = vunpack.c.l.b16 %v2911
        %v3391 = vunpack.c.l.b16 %v2912
        %v3392 = vunpack.c.l.b16 %v2913
        %v3393 = vunpack.c.l.b16 %v2914
        %v3394 = vunpack.c.l.b16 %v2915
        %v3395 = vunpack.c.l.b16 %v2916
        %v3396 = vunpack.c.l.b16 %v2917
        %v3397 = vunpack.c.l.b16 %v2918
        %v3398 = vunpack.c.l.b16 %v2919
        %v3399 = vunpack.c.l.b16 %v2920
        %v3400 = vunpack.c.l.b16 %v2921
        %v3401 = vunpack.c.l.b16 %v2922
        %v3402 = vunpack.c.l.b16 %v2923
        %v3403 = vunpack.c.l.b16 %v2924
        %v3404 = vunpack.c.l.b16 %v2925
        %v3405 = vunpack.c.l.b16 %v2926
        %v3406 = vunpack.c.l.b16 %v2927
        %v3407 = vunpack.c.l.b16 %v2928
        %v3408 = vunpack.c.l.b16 %v2929
        %v3409 = vunpack.c.l.b16 %v2930
        %v3410 = vunpack.c.l.b16 %v2931
        %v3411 = vunpack.c.l.b16 %v2932
        %v3412 = vunpack.c.l.b16 %v2933
        %v3413 = vunpack.c.l.b16 %v2934
        %v3414 = vunpack.c.l.b16 %v2935
        %v3415 = vunpack.c.l.b16 %v2936
        %v3416 = vunpack.c.l.b16 %v2937
        %v3417 = vunpack.c.l.b16 %v2938
        %v3418 = vunpack.c.l.b16 %v2939
        %v3419 = vpack.c.b16 %v3372, %v3371
        %v3420 = vpack.c.b16 %v3374, %v3373
        %v3421 = vpack.c.b16 %v3376, %v3375
        %v3422 = vpack.c.b16 %v3378, %v3377
        %v3423 = vpack.c.b16 %v3380, %v3379
        %v3424 = vpack.c.b16 %v3382, %v3381
        %v3425 = vpack.c.b16 %v3384, %v3383
        %v3426 = vpack.c.b16 %v3386, %v3385
        %v3427 = vpack.c.b16 %v3388, %v3387
        %v3428 = vpack.c.b16 %v3390, %v3389
        %v3429 = vpack.c.b16 %v3392, %v3391
        %v3430 = vpack.c.b16 %v3394, %v3393
        %v3431 = vpack.c.b16 %v3396, %v3395
        %v3432 = vpack.c.b16 %v3398, %v3397
        %v3433 = vpack.c.b16 %v3400, %v3399
        %v3434 = vpack.c.b16 %v3402, %v3401
        %v3435 = vpack.c.b16 %v3404, %v3403
        %v3436 = vpack.c.b16 %v3406, %v3405
        %v3437 = vpack.c.b16 %v3408, %v3407
        %v3438 = vpack.c.b16 %v3410, %v3409
        %v3439 = vpack.c.b16 %v3412, %v3411
        %v3440 = vpack.c.b16 %v3414, %v3413
        %v3441 = vpack.c.b16 %v3416, %v3415
        %v3442 = vpack.c.b16 %v3418, %v3417
        %3467 = vmatprep.subr.bf16.mxu0 0
        %3468 = vmatpush1.bf16.msra.mxu0 %v3419
        %3469 = vmatprep.subr.bf16.mxu0 0
        %3470 = vmatpush1.bf16.msra.mxu0 %v3420
        %3471 = vmatprep.subr.bf16.mxu0 0
        %3472 = vmatpush1.bf16.msra.mxu0 %v3421
        %3473 = vmatprep.subr.bf16.mxu0 0
        %3474 = vmatpush1.bf16.msra.mxu0 %v3422
        %3475 = vmatprep.subr.bf16.mxu0 0
        %3476 = vmatpush1.bf16.msra.mxu0 %v3423
        %3477 = vmatprep.subr.bf16.mxu0 0
        %3478 = vmatpush1.bf16.msra.mxu0 %v3424
        %3479 = vmatprep.subr.bf16.mxu0 0
        %3480 = vmatpush1.bf16.msra.mxu0 %v3425
        %3481 = vmatprep.subr.bf16.mxu0 0
        %3482 = vmatpush1.bf16.msra.mxu0 %v3426
        %3483 = vmatprep.subr.bf16.mxu0 0
        %3484 = vmatpush1.bf16.msra.mxu0 %v3427
        %3485 = vmatprep.subr.bf16.mxu0 0
        %3486 = vmatpush1.bf16.msra.mxu0 %v3428
        %3487 = vmatprep.subr.bf16.mxu0 0
        %3488 = vmatpush1.bf16.msra.mxu0 %v3429
        %3489 = vmatprep.subr.bf16.mxu0 0
        %3490 = vmatpush1.bf16.msra.mxu0 %v3430
        %3491 = vmatprep.subr.bf16.mxu0 0
        %3492 = vmatpush1.bf16.msra.mxu0 %v3431
        %3493 = vmatprep.subr.bf16.mxu0 0
        %3494 = vmatpush1.bf16.msra.mxu0 %v3432
        %3495 = vmatprep.subr.bf16.mxu0 0
        %3496 = vmatpush1.bf16.msra.mxu0 %v3433
        %3497 = vmatprep.subr.bf16.mxu0 0
        %3498 = vmatpush1.bf16.msra.mxu0 %v3434
        %3499 = vmatprep.mubr.bf16.mxu0 %v2860
        %3500 = vmatmul.mubr.bf16.gmra.mrb[0].mxu0 %v2856
        %v3501 = vpop.f32.mrb[0].mxu0
        %v3502 = vadd.f32 %v3293, %v3501
        %v3503 = vpop.f32.mrb[0].mxu0
        %v3504 = vpop.f32.mrb[0].mxu0
        %v3505 = vadd.f32 %v3296, %v3504
        %v3506 = vpop.f32.mrb[0].mxu0
        %3507 = vmatprep.mubr.bf16.mxu0 %v2861
        %3508 = vmatmul.mubr.bf16.gmra.mrb[0].mxu0 %v2857
        %v3509 = vpop.f32.mrb[0].mxu0
        %v3510 = vadd.f32 %v3301, %v3509
        %v3511 = vpop.f32.mrb[0].mxu0
        %v3512 = vpop.f32.mrb[0].mxu0
        %v3513 = vadd.f32 %v3304, %v3512
        %v3514 = vpop.f32.mrb[0].mxu0
        %3515 = vmatprep.mubr.bf16.mxu0 %v2862
        %3516 = vmatmul.mubr.bf16.gmra.mrb[0].mxu0 %v2858
        %v3517 = vpop.f32.mrb[0].mxu0
        %v3518 = vadd.f32 %v3309, %v3517
        %v3519 = vpop.f32.mrb[0].mxu0
        %v3520 = vpop.f32.mrb[0].mxu0
        %v3521 = vadd.f32 %v3312, %v3520
        %v3522 = vpop.f32.mrb[0].mxu0
        %3523 = vmatprep.mubr.bf16.mxu0 %v2863
        %3524 = vmatmul.mubr.bf16.gmra.mrb[0].mxu0 %v2859
        %v3525 = vpop.f32.mrb[0].mxu0
        %v3526 = vadd.f32 %v3317, %v3525
        %v3527 = vpop.f32.mrb[0].mxu0
        %v3528 = vpop.f32.mrb[0].mxu0
        %v3529 = vadd.f32 %v3320, %v3528
        %v3530 = vpop.f32.mrb[0].mxu0
        %3531 = vdwg.mxu0
        %3532 = vmatprep.subr.bf16.mxu0 0
        %3533 = vmatpush1.bf16.msra.mxu0 %v3435
        %3534 = vmatprep.subr.bf16.mxu0 0
        %3535 = vmatpush1.bf16.msra.mxu0 %v3436
        %3536 = vmatprep.subr.bf16.mxu0 0
        %3537 = vmatpush1.bf16.msra.mxu0 %v3437
        %3538 = vmatprep.subr.bf16.mxu0 0
        %3539 = vmatpush1.bf16.msra.mxu0 %v3438
        %3540 = vmatprep.subr.bf16.mxu0 0
        %3541 = vmatpush1.bf16.msra.mxu0 %v3439
        %3542 = vmatprep.subr.bf16.mxu0 0
        %3543 = vmatpush1.bf16.msra.mxu0 %v3440
        %3544 = vmatprep.subr.bf16.mxu0 0
        %3545 = vmatpush1.bf16.msra.mxu0 %v3441
        %3546 = vmatprep.subr.bf16.mxu0 0
        %3547 = vmatpush1.bf16.msra.mxu0 %v3442
        %3548 = vmatprep.subr.bf16.mxu0 0
        %3549 = vmatpush1.bf16.msra.mxu0 0
        %3550 = vmatprep.subr.bf16.mxu0 0
        %3551 = vmatpush1.bf16.msra.mxu0 0
        %3552 = vmatprep.subr.bf16.mxu0 0
        %3553 = vmatpush1.bf16.msra.mxu0 0
        %3554 = vmatprep.subr.bf16.mxu0 0
        %3555 = vmatpush1.bf16.msra.mxu0 0
        %3556 = vmatprep.subr.bf16.mxu0 0
        %3557 = vmatpush1.bf16.msra.mxu0 0
        %3558 = vmatprep.subr.bf16.mxu0 0
        %3559 = vmatpush1.bf16.msra.mxu0 0
        %3560 = vmatprep.subr.bf16.mxu0 0
        %3561 = vmatpush1.bf16.msra.mxu0 0
        %3562 = vmatprep.subr.bf16.mxu0 0
        %3563 = vmatpush1.bf16.msra.mxu0 0
        %3564 = vmatprep.mubr.bf16.mxu0 0
        %3565 = vmatmul.mubr.bf16.gmra.mrb[0].mxu0 %v2888
        %v3566 = vpop.f32.mrb[0].mxu0
        %v3567 = vadd.f32 %v3502, %v3566
        %v3568 = vpop.f32.mrb[0].mxu0
        %v3569 = vpop.f32.mrb[0].mxu0
        %v3570 = vadd.f32 %v3505, %v3569
        %v3571 = vpop.f32.mrb[0].mxu0
        %3572 = vmatprep.mubr.bf16.mxu0 0
        %3573 = vmatmul.mubr.bf16.gmra.mrb[0].mxu0 %v2889
        %v3574 = vpop.f32.mrb[0].mxu0
        %v3575 = vadd.f32 %v3510, %v3574
        %v3576 = vpop.f32.mrb[0].mxu0
        %v3577 = vpop.f32.mrb[0].mxu0
        %v3578 = vadd.f32 %v3513, %v3577
        %v3579 = vpop.f32.mrb[0].mxu0
        %3580 = vmatprep.mubr.bf16.mxu0 0
        %3581 = vmatmul.mubr.bf16.gmra.mrb[0].mxu0 %v2890
        %v3582 = vpop.f32.mrb[0].mxu0
        %v3583 = vadd.f32 %v3518, %v3582
        %v3584 = vpop.f32.mrb[0].mxu0
        %v3585 = vpop.f32.mrb[0].mxu0
        %v3586 = vadd.f32 %v3521, %v3585
        %v3587 = vpop.f32.mrb[0].mxu0
        %3588 = vmatprep.mubr.bf16.mxu0 0
        %3589 = vmatmul.mubr.bf16.gmra.mrb[0].mxu0 %v2891
        %v3590 = vpop.f32.mrb[0].mxu0
        %v3591 = vadd.f32 %v3526, %v3590
        %v3592 = vpop.f32.mrb[0].mxu0
        %v3593 = vpop.f32.mrb[0].mxu0
        %v3594 = vadd.f32 %v3529, %v3593
        %v3595 = vpop.f32.mrb[0].mxu0
        %3596 = vdwg.mxu0
        %v3597 = vmul.f32 %v2816, %v635
        %v3598 = vmul.f32 %v2817, %v636
        %v3599 = vmul.f32 %v2818, %v637
        %v3600 = vmul.f32 %v2819, %v638
        %v3601 = vmul.f32 %v2820, %v639
        %v3602 = vmul.f32 %v2821, %v640
        %v3603 = vmul.f32 %v2822, %v641
        %v3604 = vmul.f32 %v2815, %v642
        %v3605 = vrot.slane %v3597, 7
        %v3606 = vrot.slane %v3598, 7
        %v3607 = vrot.slane %v3599, 7
        %v3608 = vrot.slane %v3600, 7
        %v3609 = vrot.slane %v3601, 7
        %v3610 = vrot.slane %v3602, 7
        %v3611 = vrot.slane %v3603, 7
        %v3612 = vrot.slane %v3604, 7
        %v3613 = vsel %vm1149, %v3611, %v3612
        %v3614 = vsel %vm1149, %v3610, %v3611
        %v3615 = vsel %vm1149, %v3609, %v3610
        %v3616 = vsel %vm1149, %v3608, %v3609
        %v3617 = vsel %vm1149, %v3607, %v3608
        %v3618 = vsel %vm1149, %v3606, %v3607
        %v3619 = vsel %vm1149, %v3605, %v3606
        %v3620 = vsel %vm1149, %v3612, %v3605
        %v3621 = vmul.f32 %v3620, %v659
        %v3622 = vmul.f32 %v3619, %v660
        %v3623 = vmul.f32 %v3618, %v661
        %v3624 = vmul.f32 %v3617, %v662
        %v3625 = vmul.f32 %v3616, %v663
        %v3626 = vmul.f32 %v3615, %v664
        %v3627 = vmul.f32 %v3614, %v665
        %v3628 = vmul.f32 %v3613, %v666
        %v3629 = vpack.c.bf16 %v3622, %v3621
        %v3630 = vpack.c.bf16 %v3624, %v3623
        %v3631 = vpack.c.bf16 %v3626, %v3625
        %v3632 = vpack.c.bf16 %v3628, %v3627
        %v3633 = vpack.c.bf16 %v3598, %v3597
        %v3634 = vpack.c.bf16 %v3600, %v3599
        %v3635 = vpack.c.bf16 %v3602, %v3601
        %v3636 = vpack.c.bf16 %v3604, %v3603
        %v3637 = vrot.slane %v3597, 1
        %v3638 = vrot.slane %v3598, 1
        %v3639 = vrot.slane %v3599, 1
        %v3640 = vrot.slane %v3600, 1
        %v3641 = vrot.slane %v3601, 1
        %v3642 = vrot.slane %v3602, 1
        %v3643 = vrot.slane %v3603, 1
        %v3644 = vrot.slane %v3604, 1
        %v3645 = vsel %vm1182, %v3643, %v3644
        %v3646 = vsel %vm1182, %v3642, %v3643
        %v3647 = vsel %vm1182, %v3641, %v3642
        %v3648 = vsel %vm1182, %v3640, %v3641
        %v3649 = vsel %vm1182, %v3639, %v3640
        %v3650 = vsel %vm1182, %v3638, %v3639
        %v3651 = vsel %vm1182, %v3637, %v3638
        %v3652 = vsel %vm1182, %v3644, %v3637
        %v3653 = vmul.f32 %v3651, %v683
        %v3654 = vmul.f32 %v3650, %v684
        %v3655 = vmul.f32 %v3649, %v685
        %v3656 = vmul.f32 %v3648, %v686
        %v3657 = vmul.f32 %v3647, %v687
        %v3658 = vmul.f32 %v3646, %v688
        %v3659 = vmul.f32 %v3645, %v689
        %v3660 = vmul.f32 %v3652, %v690
        %v3661 = vpack.c.bf16 %v3654, %v3653
        %v3662 = vpack.c.bf16 %v3656, %v3655
        %v3663 = vpack.c.bf16 %v3658, %v3657
        %v3664 = vpack.c.bf16 %v3660, %v3659
        %s3665 = scalar_lea.vmem [#allocation2], 384
        %v3666 = vld [vmem:[%s3665] sm:$0xf]
        %v3667 = vld [vmem:[%s3665 + $0x4] sm:$0xf]
        %v3668 = vld [vmem:[%s3665 + $0x8] sm:$0xf]
        %v3669 = vld [vmem:[%s3665 + $0xc] sm:$0xf]
        %v3670 = vld [vmem:[%s3665 + $0x10] sm:$0xf]
        %v3671 = vld [vmem:[%s3665 + $0x14] sm:$0xf]
        %v3672 = vld [vmem:[%s3665 + $0x18] sm:$0xf]
        %v3673 = vld [vmem:[%s3665 + $0x1c] sm:$0xf]
        %v3674 = vld [vmem:[%s3665 + $0x20] sm:$0xf]
        %v3675 = vld [vmem:[%s3665 + $0x24] sm:$0xf]
        %v3676 = vld [vmem:[%s3665 + $0x28] sm:$0xf]
        %v3677 = vld [vmem:[%s3665 + $0x2c] sm:$0xf]
        %v3678 = vld [vmem:[%s3665 + $0x30] sm:$0xf]
        %v3679 = vld [vmem:[%s3665 + $0x34] sm:$0xf]
        %v3680 = vld [vmem:[%s3665 + $0x38] sm:$0xf]
        %v3681 = vld [vmem:[%s3665 + $0x3c] sm:$0xf]
        %v3682 = vld [vmem:[%s3665 + $0x40] sm:$0xf]
        %v3683 = vld [vmem:[%s3665 + $0x44] sm:$0xf]
        %v3684 = vld [vmem:[%s3665 + $0x48] sm:$0xf]
        %v3685 = vld [vmem:[%s3665 + $0x4c] sm:$0xf]
        %v3686 = vld [vmem:[%s3665 + $0x50] sm:$0xf]
        %v3687 = vld [vmem:[%s3665 + $0x54] sm:$0xf]
        %v3688 = vld [vmem:[%s3665 + $0x58] sm:$0xf]
        %v3689 = vld [vmem:[%s3665 + $0x5c] sm:$0xf]
        %v3690 = vld [vmem:[%s3665 + $0x60] sm:$0xf]
        %v3691 = vld [vmem:[%s3665 + $0x64] sm:$0xf]
        %v3692 = vld [vmem:[%s3665 + $0x68] sm:$0xf]
        %v3693 = vld [vmem:[%s3665 + $0x6c] sm:$0xf]
        %v3694 = vld [vmem:[%s3665 + $0x70] sm:$0xf]
        %v3695 = vld [vmem:[%s3665 + $0x74] sm:$0xf]
        %v3696 = vld [vmem:[%s3665 + $0x78] sm:$0xf]
        %v3697 = vld [vmem:[%s3665 + $0x7c] sm:$0xf]
        %v3698 = vld [vmem:[%s3665 + $0x80] sm:$0xf]
        %v3699 = vld [vmem:[%s3665 + $0x84] sm:$0xf]
        %v3700 = vld [vmem:[%s3665 + $0x88] sm:$0xf]
        %v3701 = vld [vmem:[%s3665 + $0x8c] sm:$0xf]
        %v3702 = vld [vmem:[%s3665 + $0x90] sm:$0xf]
        %v3703 = vld [vmem:[%s3665 + $0x94] sm:$0xf]
        %v3704 = vld [vmem:[%s3665 + $0x98] sm:$0xf]
        %v3705 = vld [vmem:[%s3665 + $0x9c] sm:$0xf]
        %v3706 = vld [vmem:[%s3665 + $0xa0] sm:$0xf]
        %v3707 = vld [vmem:[%s3665 + $0xa4] sm:$0xf]
        %v3708 = vld [vmem:[%s3665 + $0xa8] sm:$0xf]
        %v3709 = vld [vmem:[%s3665 + $0xac] sm:$0xf]
        %v3710 = vld [vmem:[%s3665 + $0xb0] sm:$0xf]
        %v3711 = vld [vmem:[%s3665 + $0xb4] sm:$0xf]
        %v3712 = vld [vmem:[%s3665 + $0xb8] sm:$0xf]
        %v3713 = vld [vmem:[%s3665 + $0xbc] sm:$0xf]
        %v3762 = vunpack.c.l.b16 %v3666
        %v3763 = vunpack.c.l.b16 %v3667
        %v3764 = vunpack.c.l.b16 %v3668
        %v3765 = vunpack.c.l.b16 %v3669
        %v3766 = vunpack.c.l.b16 %v3670
        %v3767 = vunpack.c.l.b16 %v3671
        %v3768 = vunpack.c.l.b16 %v3672
        %v3769 = vunpack.c.l.b16 %v3673
        %v3770 = vunpack.c.l.b16 %v3674
        %v3771 = vunpack.c.l.b16 %v3675
        %v3772 = vunpack.c.l.b16 %v3676
        %v3773 = vunpack.c.l.b16 %v3677
        %v3774 = vunpack.c.l.b16 %v3678
        %v3775 = vunpack.c.l.b16 %v3679
        %v3776 = vunpack.c.l.b16 %v3680
        %v3777 = vunpack.c.l.b16 %v3681
        %v3778 = vunpack.c.l.b16 %v3682
        %v3779 = vunpack.c.l.b16 %v3683
        %v3780 = vunpack.c.l.b16 %v3684
        %v3781 = vunpack.c.l.b16 %v3685
        %v3782 = vunpack.c.l.b16 %v3686
        %v3783 = vunpack.c.l.b16 %v3687
        %v3784 = vunpack.c.l.b16 %v3688
        %v3785 = vunpack.c.l.b16 %v3689
        %v3786 = vunpack.c.l.b16 %v3690
        %v3787 = vunpack.c.l.b16 %v3691
        %v3788 = vunpack.c.l.b16 %v3692
        %v3789 = vunpack.c.l.b16 %v3693
        %v3790 = vunpack.c.l.b16 %v3694
        %v3791 = vunpack.c.l.b16 %v3695
        %v3792 = vunpack.c.l.b16 %v3696
        %v3793 = vunpack.c.l.b16 %v3697
        %v3794 = vunpack.c.l.b16 %v3698
        %v3795 = vunpack.c.l.b16 %v3699
        %v3796 = vunpack.c.l.b16 %v3700
        %v3797 = vunpack.c.l.b16 %v3701
        %v3798 = vunpack.c.l.b16 %v3702
        %v3799 = vunpack.c.l.b16 %v3703
        %v3800 = vunpack.c.l.b16 %v3704
        %v3801 = vunpack.c.l.b16 %v3705
        %v3802 = vunpack.c.l.b16 %v3706
        %v3803 = vunpack.c.l.b16 %v3707
        %v3804 = vunpack.c.l.b16 %v3708
        %v3805 = vunpack.c.l.b16 %v3709
        %v3806 = vunpack.c.l.b16 %v3710
        %v3807 = vunpack.c.l.b16 %v3711
        %v3808 = vunpack.c.l.b16 %v3712
        %v3809 = vunpack.c.l.b16 %v3713
        %v3810 = vpack.c.b16 %v3763, %v3762
        %v3811 = vpack.c.b16 %v3765, %v3764
        %v3812 = vpack.c.b16 %v3767, %v3766
        %v3813 = vpack.c.b16 %v3769, %v3768
        %v3814 = vpack.c.b16 %v3771, %v3770
        %v3815 = vpack.c.b16 %v3773, %v3772
        %v3816 = vpack.c.b16 %v3775, %v3774
        %v3817 = vpack.c.b16 %v3777, %v3776
        %v3818 = vpack.c.b16 %v3779, %v3778
        %v3819 = vpack.c.b16 %v3781, %v3780
        %v3820 = vpack.c.b16 %v3783, %v3782
        %v3821 = vpack.c.b16 %v3785, %v3784
        %v3822 = vpack.c.b16 %v3787, %v3786
        %v3823 = vpack.c.b16 %v3789, %v3788
        %v3824 = vpack.c.b16 %v3791, %v3790
        %v3825 = vpack.c.b16 %v3793, %v3792
        %v3826 = vpack.c.b16 %v3795, %v3794
        %v3827 = vpack.c.b16 %v3797, %v3796
        %v3828 = vpack.c.b16 %v3799, %v3798
        %v3829 = vpack.c.b16 %v3801, %v3800
        %v3830 = vpack.c.b16 %v3803, %v3802
        %v3831 = vpack.c.b16 %v3805, %v3804
        %v3832 = vpack.c.b16 %v3807, %v3806
        %v3833 = vpack.c.b16 %v3809, %v3808
        %3858 = vmatprep.subr.bf16.mxu0 0
        %3859 = vmatpush1.bf16.msra.mxu0 %v3810
        %3860 = vmatprep.subr.bf16.mxu0 0
        %3861 = vmatpush1.bf16.msra.mxu0 %v3811
        %3862 = vmatprep.subr.bf16.mxu0 0
        %3863 = vmatpush1.bf16.msra.mxu0 %v3812
        %3864 = vmatprep.subr.bf16.mxu0 0
        %3865 = vmatpush1.bf16.msra.mxu0 %v3813
        %3866 = vmatprep.subr.bf16.mxu0 0
        %3867 = vmatpush1.bf16.msra.mxu0 %v3814
        %3868 = vmatprep.subr.bf16.mxu0 0
        %3869 = vmatpush1.bf16.msra.mxu0 %v3815
        %3870 = vmatprep.subr.bf16.mxu0 0
        %3871 = vmatpush1.bf16.msra.mxu0 %v3816
        %3872 = vmatprep.subr.bf16.mxu0 0
        %3873 = vmatpush1.bf16.msra.mxu0 %v3817
        %3874 = vmatprep.subr.bf16.mxu0 0
        %3875 = vmatpush1.bf16.msra.mxu0 %v3818
        %3876 = vmatprep.subr.bf16.mxu0 0
        %3877 = vmatpush1.bf16.msra.mxu0 %v3819
        %3878 = vmatprep.subr.bf16.mxu0 0
        %3879 = vmatpush1.bf16.msra.mxu0 %v3820
        %3880 = vmatprep.subr.bf16.mxu0 0
        %3881 = vmatpush1.bf16.msra.mxu0 %v3821
        %3882 = vmatprep.subr.bf16.mxu0 0
        %3883 = vmatpush1.bf16.msra.mxu0 %v3822
        %3884 = vmatprep.subr.bf16.mxu0 0
        %3885 = vmatpush1.bf16.msra.mxu0 %v3823
        %3886 = vmatprep.subr.bf16.mxu0 0
        %3887 = vmatpush1.bf16.msra.mxu0 %v3824
        %3888 = vmatprep.subr.bf16.mxu0 0
        %3889 = vmatpush1.bf16.msra.mxu0 %v3825
        %3890 = vmatprep.mubr.bf16.mxu0 %v3633
        %3891 = vmatmul.mubr.bf16.gmra.mrb[0].mxu0 %v3629
        %v3892 = vpop.f32.mrb[0].mxu0
        %v3893 = vadd.f32 0.0, %v3892
        %v3894 = vpop.f32.mrb[0].mxu0
        %v3895 = vpop.f32.mrb[0].mxu0
        %v3896 = vadd.f32 0.0, %v3895
        %v3897 = vpop.f32.mrb[0].mxu0
        %3898 = vmatprep.mubr.bf16.mxu0 %v3634
        %3899 = vmatmul.mubr.bf16.gmra.mrb[0].mxu0 %v3630
        %v3900 = vpop.f32.mrb[0].mxu0
        %v3901 = vadd.f32 0.0, %v3900
        %v3902 = vpop.f32.mrb[0].mxu0
        %v3903 = vpop.f32.mrb[0].mxu0
        %v3904 = vadd.f32 0.0, %v3903
        %v3905 = vpop.f32.mrb[0].mxu0
        %3906 = vmatprep.mubr.bf16.mxu0 %v3635
        %3907 = vmatmul.mubr.bf16.gmra.mrb[0].mxu0 %v3631
        %v3908 = vpop.f32.mrb[0].mxu0
        %v3909 = vadd.f32 0.0, %v3908
        %v3910 = vpop.f32.mrb[0].mxu0
        %v3911 = vpop.f32.mrb[0].mxu0
        %v3912 = vadd.f32 0.0, %v3911
        %v3913 = vpop.f32.mrb[0].mxu0
        %3914 = vmatprep.mubr.bf16.mxu0 %v3636
        %3915 = vmatmul.mubr.bf16.gmra.mrb[0].mxu0 %v3632
        %v3916 = vpop.f32.mrb[0].mxu0
        %v3917 = vadd.f32 0.0, %v3916
        %v3918 = vpop.f32.mrb[0].mxu0
        %v3919 = vpop.f32.mrb[0].mxu0
        %v3920 = vadd.f32 0.0, %v3919
        %v3921 = vpop.f32.mrb[0].mxu0
        %3922 = vdwg.mxu0
        %3923 = vmatprep.subr.bf16.mxu0 0
        %3924 = vmatpush1.bf16.msra.mxu0 %v3826
        %3925 = vmatprep.subr.bf16.mxu0 0
        %3926 = vmatpush1.bf16.msra.mxu0 %v3827
        %3927 = vmatprep.subr.bf16.mxu0 0
        %3928 = vmatpush1.bf16.msra.mxu0 %v3828
        %3929 = vmatprep.subr.bf16.mxu0 0
        %3930 = vmatpush1.bf16.msra.mxu0 %v3829
        %3931 = vmatprep.subr.bf16.mxu0 0
        %3932 = vmatpush1.bf16.msra.mxu0 %v3830
        %3933 = vmatprep.subr.bf16.mxu0 0
        %3934 = vmatpush1.bf16.msra.mxu0 %v3831
        %3935 = vmatprep.subr.bf16.mxu0 0
        %3936 = vmatpush1.bf16.msra.mxu0 %v3832
        %3937 = vmatprep.subr.bf16.mxu0 0
        %3938 = vmatpush1.bf16.msra.mxu0 %v3833
        %3939 = vmatprep.subr.bf16.mxu0 0
        %3940 = vmatpush1.bf16.msra.mxu0 0
        %3941 = vmatprep.subr.bf16.mxu0 0
        %3942 = vmatpush1.bf16.msra.mxu0 0
        %3943 = vmatprep.subr.bf16.mxu0 0
        %3944 = vmatpush1.bf16.msra.mxu0 0
        %3945 = vmatprep.subr.bf16.mxu0 0
        %3946 = vmatpush1.bf16.msra.mxu0 0
        %3947 = vmatprep.subr.bf16.mxu0 0
        %3948 = vmatpush1.bf16.msra.mxu0 0
        %3949 = vmatprep.subr.bf16.mxu0 0
        %3950 = vmatpush1.bf16.msra.mxu0 0
        %3951 = vmatprep.subr.bf16.mxu0 0
        %3952 = vmatpush1.bf16.msra.mxu0 0
        %3953 = vmatprep.subr.bf16.mxu0 0
        %3954 = vmatpush1.bf16.msra.mxu0 0
        %3955 = vmatprep.mubr.bf16.mxu0 0
        %3956 = vmatmul.mubr.bf16.gmra.mrb[0].mxu0 %v3661
        %v3957 = vpop.f32.mrb[0].mxu0
        %v3958 = vadd.f32 %v3893, %v3957
        %v3959 = vpop.f32.mrb[0].mxu0
        %v3960 = vpop.f32.mrb[0].mxu0
        %v3961 = vadd.f32 %v3896, %v3960
        %v3962 = vpop.f32.mrb[0].mxu0
        %3963 = vmatprep.mubr.bf16.mxu0 0
        %3964 = vmatmul.mubr.bf16.gmra.mrb[0].mxu0 %v3662
        %v3965 = vpop.f32.mrb[0].mxu0
        %v3966 = vadd.f32 %v3901, %v3965
        %v3967 = vpop.f32.mrb[0].mxu0
        %v3968 = vpop.f32.mrb[0].mxu0
        %v3969 = vadd.f32 %v3904, %v3968
        %v3970 = vpop.f32.mrb[0].mxu0
        %3971 = vmatprep.mubr.bf16.mxu0 0
        %3972 = vmatmul.mubr.bf16.gmra.mrb[0].mxu0 %v3663
        %v3973 = vpop.f32.mrb[0].mxu0
        %v3974 = vadd.f32 %v3909, %v3973
        %v3975 = vpop.f32.mrb[0].mxu0
        %v3976 = vpop.f32.mrb[0].mxu0
        %v3977 = vadd.f32 %v3912, %v3976
        %v3978 = vpop.f32.mrb[0].mxu0
        %3979 = vmatprep.mubr.bf16.mxu0 0
        %3980 = vmatmul.mubr.bf16.gmra.mrb[0].mxu0 %v3664
        %v3981 = vpop.f32.mrb[0].mxu0
        %v3982 = vadd.f32 %v3917, %v3981
        %v3983 = vpop.f32.mrb[0].mxu0
        %v3984 = vpop.f32.mrb[0].mxu0
        %v3985 = vadd.f32 %v3920, %v3984
        %v3986 = vpop.f32.mrb[0].mxu0
        %3987 = vdwg.mxu0
        %v3988 = vadd.f32 %v3567, %v3958
        %v3989 = vadd.f32 %v3570, %v3961
        %v3990 = vadd.f32 %v3575, %v3966
        %v3991 = vadd.f32 %v3578, %v3969
        %v3992 = vadd.f32 %v3583, %v3974
        %v3993 = vadd.f32 %v3586, %v3977
        %v3994 = vadd.f32 %v3591, %v3982
        %v3995 = vadd.f32 %v3594, %v3985
        %v3997 = vlaneseq
        %v3998 = vshrl.u32 %v3997, 7
        %v3999 = vsub.s32 0, %v3998
        %v4000 = vrot.slane %v2823, %v3999
        %v4002 = vadd.f32 %v3988, %v4000
        %v4003 = vadd.f32 %v3989, %v4000
        %v4004 = vadd.f32 %v3990, %v4000
        %v4005 = vadd.f32 %v3991, %v4000
        %v4006 = vadd.f32 %v3992, %v4000
        %v4007 = vadd.f32 %v3993, %v4000
        %v4008 = vadd.f32 %v3994, %v4000
        %v4009 = vadd.f32 %v3995, %v4000
        %v4010 = vpack.c.bf16 %v554, %v553
        %v4011 = vpack.c.bf16 %v556, %v555
        %v4012 = vpack.c.bf16 %v558, %v557
        %v4013 = vpack.c.bf16 %v560, %v559
        %v4014 = vld [vmem:[%s14] sm:$0xf]
        %v4015 = vld [vmem:[%s14 + $0x4] sm:$0xf]
        %v4016 = vld [vmem:[%s14 + $0x8] sm:$0xf]
        %v4017 = vld [vmem:[%s14 + $0xc] sm:$0xf]
        %v4018 = vld [vmem:[%s14 + $0x10] sm:$0xf]
        %v4019 = vld [vmem:[%s14 + $0x14] sm:$0xf]
        %v4020 = vld [vmem:[%s14 + $0x18] sm:$0xf]
        %v4021 = vld [vmem:[%s14 + $0x1c] sm:$0xf]
        %v4022 = vld [vmem:[%s15] sm:$0x1]
        %v4024 = vlaneseq
        %v4025 = vshrl.u32 %v4024, 7
        %v4026 = vsub.s32 0, %v4025
        %v4027 = vrot.slane %v4022, %v4026
        %v4037 = vunpack.c.l.b16 %v4014
        %v4038 = vunpack.c.l.b16 %v4015
        %v4039 = vunpack.c.l.b16 %v4016
        %v4040 = vunpack.c.l.b16 %v4017
        %v4041 = vunpack.c.l.b16 %v4018
        %v4042 = vunpack.c.l.b16 %v4019
        %v4043 = vunpack.c.l.b16 %v4020
        %v4044 = vunpack.c.l.b16 %v4021
        %v4045 = vpack.c.b16 %v4038, %v4037
        %v4046 = vpack.c.b16 %v4040, %v4039
        %v4047 = vpack.c.b16 %v4042, %v4041
        %v4048 = vpack.c.b16 %v4044, %v4043
        %v4054 = vsel %vm705, %v4010, 0
        %v4057 = vsel %vm705, %v4011, 0
        %v4060 = vsel %vm705, %v4012, 0
        %v4063 = vsel %vm705, %v4013, 0
        %4065 = vmatprep.subr.bf16.mxu0 0
        %4066 = vmatpush1.bf16.msra.mxu0 %v4045
        %4067 = vmatprep.subr.bf16.mxu0 0
        %4068 = vmatpush1.bf16.msra.mxu0 %v4046
        %4069 = vmatprep.subr.bf16.mxu0 0
        %4070 = vmatpush1.bf16.msra.mxu0 %v4047
        %4071 = vmatprep.subr.bf16.mxu0 0
        %4072 = vmatpush1.bf16.msra.mxu0 %v4048
        %4073 = vmatprep.subr.bf16.mxu0 0
        %4074 = vmatpush1.bf16.msra.mxu0 0
        %4075 = vmatprep.subr.bf16.mxu0 0
        %4076 = vmatpush1.bf16.msra.mxu0 0
        %4077 = vmatprep.subr.bf16.mxu0 0
        %4078 = vmatpush1.bf16.msra.mxu0 0
        %4079 = vmatprep.subr.bf16.mxu0 0
        %4080 = vmatpush1.bf16.msra.mxu0 0
        %4081 = vmatprep.subr.bf16.mxu0 0
        %4082 = vmatpush1.bf16.msra.mxu0 0
        %4083 = vmatprep.subr.bf16.mxu0 0
        %4084 = vmatpush1.bf16.msra.mxu0 0
        %4085 = vmatprep.subr.bf16.mxu0 0
        %4086 = vmatpush1.bf16.msra.mxu0 0
        %4087 = vmatprep.subr.bf16.mxu0 0
        %4088 = vmatpush1.bf16.msra.mxu0 0
        %4089 = vmatprep.subr.bf16.mxu0 0
        %4090 = vmatpush1.bf16.msra.mxu0 0
        %4091 = vmatprep.subr.bf16.mxu0 0
        %4092 = vmatpush1.bf16.msra.mxu0 0
        %4093 = vmatprep.subr.bf16.mxu0 0
        %4094 = vmatpush1.bf16.msra.mxu0 0
        %4095 = vmatprep.subr.bf16.mxu0 0
        %4096 = vmatpush1.bf16.msra.mxu0 0
        %4097 = vmatprep.mubr.bf16.mxu0 0
        %4098 = vmatmul.mubr.bf16.gmra.mrb[0].mxu0 %v4054
        %v4099 = vpop.f32.mrb[0].mxu0
        %v4100 = vadd.f32 %v4027, %v4099
        %v4101 = vpop.f32.mrb[0].mxu0
        %v4102 = vpop.f32.mrb[0].mxu0
        %v4103 = vadd.f32 %v4027, %v4102
        %v4104 = vpop.f32.mrb[0].mxu0
        %4105 = vmatprep.mubr.bf16.mxu0 0
        %4106 = vmatmul.mubr.bf16.gmra.mrb[0].mxu0 %v4057
        %v4107 = vpop.f32.mrb[0].mxu0
        %v4108 = vadd.f32 %v4027, %v4107
        %v4109 = vpop.f32.mrb[0].mxu0
        %v4110 = vpop.f32.mrb[0].mxu0
        %v4111 = vadd.f32 %v4027, %v4110
        %v4112 = vpop.f32.mrb[0].mxu0
        %4113 = vmatprep.mubr.bf16.mxu0 0
        %4114 = vmatmul.mubr.bf16.gmra.mrb[0].mxu0 %v4060
        %v4115 = vpop.f32.mrb[0].mxu0
        %v4116 = vadd.f32 %v4027, %v4115
        %v4117 = vpop.f32.mrb[0].mxu0
        %v4118 = vpop.f32.mrb[0].mxu0
        %v4119 = vadd.f32 %v4027, %v4118
        %v4120 = vpop.f32.mrb[0].mxu0
        %4121 = vmatprep.mubr.bf16.mxu0 0
        %4122 = vmatmul.mubr.bf16.gmra.mrb[0].mxu0 %v4063
        %v4123 = vpop.f32.mrb[0].mxu0
        %v4124 = vadd.f32 %v4027, %v4123
        %v4125 = vpop.f32.mrb[0].mxu0
        %v4126 = vpop.f32.mrb[0].mxu0
        %v4127 = vadd.f32 %v4027, %v4126
        %v4128 = vpop.f32.mrb[0].mxu0
        %4129 = vdwg.mxu0
        %v4130 = vadd.f32 %v4100, %v4002
        %v4131 = vadd.f32 %v4103, %v4003
        %v4132 = vadd.f32 %v4108, %v4004
        %v4133 = vadd.f32 %v4111, %v4005
        %v4134 = vadd.f32 %v4116, %v4006
        %v4135 = vadd.f32 %v4119, %v4007
        %v4136 = vadd.f32 %v4124, %v4008
        %v4137 = vadd.f32 %v4127, %v4009
        %4138 = vst [vmem:[%s541] sm:$0xff] %v4130
        %4139 = vst [vmem:[%s541 + $0x8] sm:$0xff] %v4131
        %4140 = vst [vmem:[%s541 + $0x10] sm:$0xff] %v4132
        %4141 = vst [vmem:[%s541 + $0x18] sm:$0xff] %v4133
        %4142 = vst [vmem:[%s541 + $0x20] sm:$0xff] %v4134
        %4143 = vst [vmem:[%s541 + $0x28] sm:$0xff] %v4135
        %4144 = vst [vmem:[%s541 + $0x30] sm:$0xff] %v4136
        %4145 = vst [vmem:[%s541 + $0x38] sm:$0xff] %v4137
        %s4146 = sand.u32 %s385, 1
        %s4147 = scalar_lea.sflag [#allocation4], %s4146
        %s4148 = sand.u32 %s385, 1
        %s4149 = smul.addr %s4148, 64
        %s4150 = scalar_lea.vmem [#allocation5], %s4149
        // Predicated region
        $region89: #{tpu_custom_call.1} parent=83 // pred_check
          %p4151 = pneg %p395
        $region90: #{tpu_custom_call.1} parent=83 // pred_check_branch
          %4153 = sbr.rel (%p4151) target = $region92
        $region91: #{tpu_custom_call.1} parent=83 // pred_region
          %s4154 = smul.u32 8, %s31
          %s4156 = ssub.s32 1024, 1024
          %4157 = vsyncadd %s4147, %s4156
          %s4158 = smul.addr %s4154, 128
          %s4159 = scalar_lea.hbm %s16, %s4158
          %s4160 = sshll.u32 %s4150, 4
          %s4161 = int_to_ptr.vmem [resolvable:$true] %s4160
          %4166 = dma.vmem_to_hbm [thread:$0]  %s4161, 1024, %s4159, %s4147, 128, 128, 8
        $region92: #{tpu_custom_call.1} parent=83 // pred_fallthru
          _
      $region84: #{tpu_custom_call.1} parent=5 // pred_fallthru
        _
      %p4167 = scmp.le.s32.totalorder 2, %s26
      // Predicated region
      $region93: #{tpu_custom_call.1} parent=5 // pred_check
        %p4168 = pneg %p4167
      $region94: #{tpu_custom_call.1} parent=5 // pred_check_branch
        %4170 = sbr.rel (%p4168) target = $region96
      $region95: #{tpu_custom_call.1} parent=5 // pred_region
        %s4171 = ssub.s32 %s26, 2
        // Predicated region
        $region97: #{tpu_custom_call.1} parent=95 // pred_check
          %p4172 = pneg %p401
        $region98: #{tpu_custom_call.1} parent=95 // pred_check_branch
          %4174 = sbr.rel (%p4172) target = $region100
        $region99: #{tpu_custom_call.1} parent=95 // pred_region
          %s4175 = sand.u32 %s386, 1
          %s4176 = scalar_lea.sflag [#allocation4], %s4175
          %s4177 = sand.u32 %s386, 1
          %s4178 = smul.addr %s4177, 64
          %s4179 = scalar_lea.vmem [#allocation5], %s4178
          %4180 = dma.done %s4176, 1024
        $region100: #{tpu_custom_call.1} parent=95 // pred_fallthru
          _
      $region96: #{tpu_custom_call.1} parent=5 // pred_fallthru
        _
    $region6: #{tpu_custom_call.1} parent=1 // loop_footer
      %s30 = sadd.s32 1, %s26
    $region7: #{tpu_custom_call.1} parent=1 // loop_footer_branch
      %25 = sbr.rel target = $region3
    $region8: #{tpu_custom_call.1} parent=1 // loop_exit
      _
    %4181 = vsyncpa [#allocation3], 1
    %s4182 = scalar_lea.sflag [#allocation3], 1
    %4183 = vsyncpa %s4182, 1
    %4184 = vsyncpa [#allocation4], 1
    %s4185 = scalar_lea.sflag [#allocation4], 1
    %4186 = vsyncpa %s4185, 1

</llo_original>
